<compile_context>
chip_gen: v7x
topology: tpu7x:2x2x1
jax: 0.10.0
libtpu: 0.0.40
codegen_flags: <defaults>
</compile_context>

<pallas_src>
import functools

import jax
import jax.numpy as jnp
from jax.experimental import pallas as pl
from jax.experimental.pallas import tpu as pltpu


def _ru(x, m):
    return (x + m - 1) // m * m


# ----------------------------------------------------------------------------
# Fused kernel: conv1 + BN1 + ReLU + conv2 + BN2 + identity add + ReLU
# One grid step == one image (per-image slab layout, interior lane-aligned).
# ----------------------------------------------------------------------------
def _qbasic_fused_kernel(x_ref, id_ref, w1_ref, b1_ref, w2_ref, b2_ref, m_ref,
                         o_ref, t_ref, *, Wp, rs, R, mxu_dtype):
    # x_ref  : (Cin, T)  zero-padded image slab; padded grid starts at rs-(Wp+1)
    # id_ref : (C2,  R)  identity, pre-sliced to the interior region [rs, rs+R)
    # w1_ref : (G1*9, Co1, Ci1)  per-(effective-)group per-tap weights, BN1 folded
    # w2_ref : (G2*9, Co2, Ci2)  per-(effective-)group per-tap weights, BN2 folded
    # b1_ref : (C1, 1), b2_ref : (C2, 1)  folded BN biases
    # m_ref  : (1, R)   interior-validity mask (zeros on pad ring / beyond grid)
    # o_ref  : (C2, R)  output region (wrapper extracts the valid interior)
    # t_ref  : (C1, T)  VMEM scratch holding the zero-haloed conv1 output
    halo = Wp + 1
    shifts = tuple((kh - 1) * Wp + (kw - 1) for kh in range(3) for kw in range(3))
    n_tap = len(shifts)
    C1 = t_ref.shape[0]
    mask = m_ref[...]                                            # (1, R) f32

    # Zero ONLY the conv2 halo columns of the scratch; interior [rs, rs+R) is fully
    # overwritten below with the masked conv1 output (tail halo covers the positive
    # shifts, front halo the negative ones).
    t_ref[:, rs - halo: rs] = jnp.zeros((C1, halo), t_ref.dtype)
    t_ref[:, rs + R: rs + R + halo] = jnp.zeros((C1, halo), t_ref.dtype)

    def grouped_conv3x3(src_ref, w_ref):
        """Per-(effective-)group, per-tap MXU accumulation.
        Returns a list of (Co, R) float32 results, one per effective group."""
        Ge = w_ref.shape[0] // n_tap
        Ci = w_ref.shape[2]
        outs = []
        for g in range(Ge):
            acc = None
            for t, s in enumerate(shifts):
                w = w_ref[g * n_tap + t].astype(mxu_dtype)              # (Co, Ci)
                xg = src_ref[g * Ci:(g + 1) * Ci,
                             rs + s: rs + s + R].astype(mxu_dtype)      # (Ci, R)
                d = jnp.dot(w, xg, preferred_element_type=jnp.float32)  # (Co, R)
                acc = d if acc is None else acc + d
            outs.append(acc)
        return outs

    # ---- conv1 + BN1(bias) + ReLU, staged into the zero-haloed VMEM scratch -----
    Co1 = w1_ref.shape[1]
    for g, y in enumerate(grouped_conv3x3(x_ref, w1_ref)):
        y = jnp.maximum(y + b1_ref[g * Co1:(g + 1) * Co1, :], 0.0) * mask
        t_ref[g * Co1:(g + 1) * Co1, rs: rs + R] = y.astype(t_ref.dtype)

    # ---- conv2 + BN2(bias) + residual + ReLU -> lane-aligned output -------------
    Co2 = w2_ref.shape[1]
    for g, y in enumerate(grouped_conv3x3(t_ref, w2_ref)):
        y = (y + b2_ref[g * Co2:(g + 1) * Co2, :]
             + id_ref[g * Co2:(g + 1) * Co2, :].astype(jnp.float32))
        o_ref[g * Co2:(g + 1) * Co2, :] = jnp.maximum(y, 0.0).astype(o_ref.dtype)


# ----------------------------------------------------------------------------
# Parameter packing (done once, outside the kernel)
# ----------------------------------------------------------------------------
def fold_bn(gamma, beta, mean, var, eps=1e-5):
    s = gamma / jnp.sqrt(var + eps)
    b = beta - mean * s
    return s, b


def choose_eff_groups(groups, cin, cout):
    """True per-group matmuls only when each group's channel counts are non-trivial
    and sublane-aligned; otherwise fold the group structure into one block-diagonal
    matrix (cheaper than many tiny MXU ops at toy sizes)."""
    if (groups > 1 and cin % groups == 0 and cout % groups == 0
            and cin // groups >= 8 and cout // groups >= 8):
        return groups
    return 1


def pack_grouped_3x3(w_oihw, scale, groups, eff_groups=None):
    """(Cout, Cin/groups, 3, 3) grouped weights -> (eff_groups*9, Co, Ci) per-tap
    matrices (tap-major kh,kw), block-diagonal inside each effective group, with the
    BN scale folded into the output channels. eff_groups must divide groups."""
    Cout, Cg_in, KH, KW = w_oihw.shape
    Cin = Cg_in * groups
    Cg_out = Cout // groups
    if eff_groups is None:
        eff_groups = groups
    assert groups % eff_groups == 0
    dense = jnp.zeros((Cout, Cin, KH, KW), w_oihw.dtype)
    for g in range(groups):
        dense = dense.at[g * Cg_out:(g + 1) * Cg_out,
                         g * Cg_in:(g + 1) * Cg_in].set(
            w_oihw[g * Cg_out:(g + 1) * Cg_out])
    dense = dense * scale[:, None, None, None]
    Ge = eff_groups
    Co, Ci = Cout // Ge, Cin // Ge
    blocks = jnp.stack([dense[g * Co:(g + 1) * Co, g * Ci:(g + 1) * Ci]
                        for g in range(Ge)], axis=0)          # (Ge, Co, Ci, 3, 3)
    blocks = jnp.transpose(blocks.reshape(Ge, Co, Ci, KH * KW), (0, 3, 1, 2))
    return blocks.reshape(Ge * KH * KW, Co, Ci)               # (Ge*9, Co, Ci)


# ----------------------------------------------------------------------------
# Forward wrapper matching QBasicBlock.forward (stride=1, no downsample path)
# ----------------------------------------------------------------------------
def qbasicblock_forward(x_nchw, w1p, b1, w2p, b2, *, groups=1, stride=1,
                        first_conv=False, last_conv=False, weight_bit=2,
                        mxu_dtype=jnp.float32):
    assert stride == 1, "stride>1 needs the external downsample module (see TODO)"
    N, Cin, H, W = x_nchw.shape
    G1 = w1p.shape[0] // 9
    Co1, Ci1 = w1p.shape[1], w1p.shape[2]
    C1 = G1 * Co1
    assert G1 * Ci1 == Cin
    G2 = w2p.shape[0] // 9
    Co2, Ci2 = w2p.shape[1], w2p.shape[2]
    C2 = G2 * Co2
    assert G2 * Ci2 == C1

    Ho, Wo = H, W
    Hp, Wp = H + 2, W + 2
    HpWp = Hp * Wp
    halo = Wp + 1
    rs = _ru(halo, 128)                         # lane-aligned interior start
    interior_len = (Ho - 1) * Wp + Wo           # span of valid interior positions
    R = _ru(interior_len, 128)                  # lane-dense region per image
    T = _ru(rs + R + halo, 128)                 # per-image slab length (incl. halos)

    def to_slab(a):                             # (N,C,H,W) -> (C, N*T) image slabs
        C = a.shape[1]
        ap = jnp.pad(a, ((0, 0), (0, 0), (1, 1), (1, 1))).reshape(N, C, HpWp)
        ap = jnp.pad(ap, ((0, 0), (0, 0), (rs - halo, T - (rs - halo) - HpWp)))
        return jnp.transpose(ap, (1, 0, 2)).reshape(C, N * T)

    def to_interior(a):                         # (N,C,H,W) -> (C, N*R), pre-sliced
        C = a.shape[1]
        ap = jnp.pad(a, ((0, 0), (0, 0), (1, 1), (1, 1))).reshape(N, C, HpWp)
        ap = jnp.pad(ap, ((0, 0), (0, 0), (0, max(0, halo + R - HpWp))))
        seg = ap[:, :, halo: halo + R]
        return jnp.transpose(seg, (1, 0, 2)).reshape(C, N * R)

    x_slab = to_slab(x_nchw)

    ident = x_nchw
    if first_conv:
        # select(): weight_bit == 2 (even) -> first inplanes//groups channels
        # TODO(synk): odd weight_bit (oneBit channel) select/addZeroS not implemented.
        ident = ident[:, :Cin // groups * (weight_bit // 2)]
    assert ident.shape[1] == C2, "identity channels must match conv2 output channels"
    id_slab = to_interior(ident)

    # validity mask for the interior region (1 on interior positions of the image)
    p = jnp.arange(R) + halo                    # position within the padded grid
    r = p // Wp
    c = p % Wp
    mask = ((p < HpWp) & (r >= 1) & (r <= Ho) & (c >= 1) & (c <= Wo))
    mask = mask.astype(jnp.float32)[None, :]

    kernel = functools.partial(_qbasic_fused_kernel, Wp=Wp, rs=rs, R=R,
                               mxu_dtype=mxu_dtype)

    out_flat = pl.pallas_call(
        kernel,
        out_shape=jax.ShapeDtypeStruct((C2, N * R), x_nchw.dtype),
        grid=(N,),
        in_specs=[
            pl.BlockSpec((Cin, T), lambda n: (0, n)),
            pl.BlockSpec((C2, R), lambda n: (0, n)),
            pl.BlockSpec(w1p.shape, lambda n: (0, 0, 0)),
            pl.BlockSpec((C1, 1), lambda n: (0, 0)),
            pl.BlockSpec(w2p.shape, lambda n: (0, 0, 0)),
            pl.BlockSpec((C2, 1), lambda n: (0, 0)),
            pl.BlockSpec((1, R), lambda n: (0, 0)),
        ],
        out_specs=pl.BlockSpec((C2, R), lambda n: (0, n)),
        scratch_shapes=[pltpu.VMEM((C1, T), mxu_dtype)],
        compiler_params=pltpu.CompilerParams(
            dimension_semantics=("parallel",),       # v7x: shard images over both TCs
            vmem_limit_bytes=32 * 1024 * 1024),      # above v5e's 16 MiB default
    )(x_slab, id_slab, w1p, b1.reshape(C1, 1), w2p, b2.reshape(C2, 1), mask)

    # extract the valid interior and go back to NCHW
    out_img = out_flat.reshape(C2, N, R)
    full = jnp.pad(out_img, ((0, 0), (0, 0), (halo, max(0, HpWp - halo - R))))
    grid4 = full[:, :, :HpWp].reshape(C2, N, Hp, Wp)
    out = jnp.transpose(grid4[:, :, 1:1 + Ho, 1:1 + Wo], (1, 0, 2, 3))

    if last_conv:
        n_chunks = (weight_bit + 1) // 2            # == 1 for weight_bit=2 -> identity
        if n_chunks > 1:
            out = out.reshape(N, n_chunks, C2 // n_chunks, Ho, Wo).mean(axis=1)
    return out


# ----------------------------------------------------------------------------
# Pure-JAX reference (lax convolutions, full precision)
# ----------------------------------------------------------------------------
def reference(x, w1, w2, s1, b1, s2, b2, *, groups, first_conv, last_conv,
              weight_bit=2):
    dn = ("NCHW", "OIHW", "NCHW")
    hi = jax.lax.Precision.HIGHEST
    y = jax.lax.conv_general_dilated(x, w1, (1, 1), ((1, 1), (1, 1)),
                                     feature_group_count=groups,
                                     dimension_numbers=dn, precision=hi)
    y = jnp.maximum(y * s1[None, :, None, None] + b1[None, :, None, None], 0.0)
    z = jax.lax.conv_general_dilated(y, w2, (1, 1), ((1, 1), (1, 1)),
                                     feature_group_count=groups,
                                     dimension_numbers=dn, precision=hi)
    z = z * s2[None, :, None, None] + b2[None, :, None, None]
    ident = x
    if first_conv:
        ident = ident[:, :x.shape[1] // groups * (weight_bit // 2)]
    out = jnp.maximum(z + ident, 0.0)
    if last_conv:
        n_chunks = (weight_bit + 1) // 2
        if n_chunks > 1:
            Nb, Cc, Hh, Ww = out.shape
            out = out.reshape(Nb, n_chunks, Cc // n_chunks, Hh, Ww).mean(axis=1)
    return out


if __name__ == "__main__":
    # Block config: inplanes == planes == 8, groups=2, stride=1, no downsample.
    N, C, H, W = 2, 8, 16, 16
    groups, stride = 2, 1
    first_conv, last_conv, weight_bit = False, False, 2

    key = jax.random.PRNGKey(0)
    ks = jax.random.split(key, 11)
    Cg = C // groups

    w1 = jax.random.normal(ks[0], (C, Cg, 3, 3), jnp.float32) * 0.2
    w2 = jax.random.normal(ks[1], (C, Cg, 3, 3), jnp.float32) * 0.2

    g1 = 1.0 + 0.1 * jax.random.normal(ks[2], (C,), jnp.float32)
    be1 = 0.1 * jax.random.normal(ks[3], (C,), jnp.float32)
    mu1 = 0.1 * jax.random.normal(ks[4], (C,), jnp.float32)
    v1 = jax.random.uniform(ks[5], (C,), jnp.float32, 0.5, 1.5)
    g2 = 1.0 + 0.1 * jax.random.normal(ks[6], (C,), jnp.float32)
    be2 = 0.1 * jax.random.normal(ks[7], (C,), jnp.float32)
    mu2 = 0.1 * jax.random.normal(ks[8], (C,), jnp.float32)
    v2 = jax.random.uniform(ks[9], (C,), jnp.float32, 0.5, 1.5)

    s1, b1 = fold_bn(g1, be1, mu1, v1)
    s2, b2 = fold_bn(g2, be2, mu2, v2)

    # Per-group channels are trivial (4) at this size -> fold groups into one
    # block-diagonal matrix; at production sizes eff_groups == groups (no wasted MACs).
    ge1 = choose_eff_groups(groups, C, C)
    ge2 = choose_eff_groups(groups, C, C)
    w1p = pack_grouped_3x3(w1, s1, groups, ge1)   # (ge1*9, Co, Ci), BN1 folded
    w2p = pack_grouped_3x3(w2, s2, groups, ge2)   # (ge2*9, Co, Ci), BN2 folded

    x = jax.random.normal(ks[10], (N, C, H, W), jnp.float32)

    fwd = jax.jit(functools.partial(
        qbasicblock_forward, groups=groups, stride=stride,
        first_conv=first_conv, last_conv=last_conv, weight_bit=weight_bit,
        mxu_dtype=jnp.float32))   # production/quantized path may use jnp.bfloat16
    out = jax.block_until_ready(fwd(x, w1p, b1, w2p, b2))

    ref = jax.block_until_ready(
        reference(x, w1, w2, s1, b1, s2, b2, groups=groups,
                  first_conv=first_conv, last_conv=last_conv,
                  weight_bit=weight_bit))

    assert out.shape == (N, C, H, W), out.shape
    err = float(jnp.max(jnp.abs(out - ref)))
    assert jnp.allclose(out, ref, atol=5e-4, rtol=5e-4), err
    print("KERNEL_OK")
</pallas_src>

<mosaic_0001>
module attributes {stable_mosaic.version = 11 : i64} {
  func.func @_qbasic_fused_kernel(%arg0: i32, %arg1: memref<8x640xf32, #tpu.memory_space<vmem>>, %arg2: memref<8x384xf32, #tpu.memory_space<vmem>>, %arg3: memref<9x8x8xf32, #tpu.memory_space<vmem>>, %arg4: memref<8x1xf32, #tpu.memory_space<vmem>>, %arg5: memref<9x8x8xf32, #tpu.memory_space<vmem>>, %arg6: memref<8x1xf32, #tpu.memory_space<vmem>>, %arg7: memref<1x384xf32, #tpu.memory_space<vmem>>, %arg8: memref<8x384xf32, #tpu.memory_space<vmem>>, %arg9: memref<8x640xf32, #tpu.memory_space<vmem>>) attributes {dimension_semantics = [#tpu.dimension_semantics<parallel>], iteration_bounds = array<i64: 2>, scalar_prefetch = 0 : i64, scratch_operands = 1 : i64, tpu.core_type = #tpu.core_type<tc>, window_params = [{transform_indices = @transform_0, window_bounds = array<i64: 8, 640>}, {transform_indices = @transform_1, window_bounds = array<i64: 8, 384>}, {pipeline_mode = #tpu.pipeline_mode<synchronous>, transform_indices = @transform_2, window_bounds = array<i64: 9, 8, 8>}, {pipeline_mode = #tpu.pipeline_mode<synchronous>, transform_indices = @transform_3, window_bounds = array<i64: 8, 1>}, {pipeline_mode = #tpu.pipeline_mode<synchronous>, transform_indices = @transform_4, window_bounds = array<i64: 9, 8, 8>}, {pipeline_mode = #tpu.pipeline_mode<synchronous>, transform_indices = @transform_5, window_bounds = array<i64: 8, 1>}, {pipeline_mode = #tpu.pipeline_mode<synchronous>, transform_indices = @transform_6, window_bounds = array<i64: 1, 384>}, {transform_indices = @transform_7, window_bounds = array<i64: 8, 384>}]} {
    %c0 = arith.constant 0 : index
    %c0_0 = arith.constant 0 : index
    %0 = vector.load %arg7[%c0, %c0_0] : memref<1x384xf32, #tpu.memory_space<vmem>>, vector<1x384xf32>
    %cst = arith.constant 0.000000e+00 : f32
    %1 = vector.broadcast %cst : f32 to vector<8x19xf32>
    %c0_1 = arith.constant 0 : index
    %c109 = arith.constant 109 : index
    %2 = vector.load %arg9[%c0_1, %c109] : memref<8x640xf32, #tpu.memory_space<vmem>>, vector<8x19xf32>
    tpu.vector_store %arg9[%c0_1, %c109], %1 {strides = array<i32>} : memref<8x640xf32, #tpu.memory_space<vmem>>, vector<8x19xf32>,
    %cst_2 = arith.constant 0.000000e+00 : f32
    %3 = vector.broadcast %cst_2 : f32 to vector<8x19xf32>
    %c0_3 = arith.constant 0 : index
    %c512 = arith.constant 512 : index
    %4 = vector.load %arg9[%c0_3, %c512] : memref<8x640xf32, #tpu.memory_space<vmem>>, vector<8x19xf32>
    tpu.vector_store %arg9[%c0_3, %c512], %3 {strides = array<i32>} : memref<8x640xf32, #tpu.memory_space<vmem>>, vector<8x19xf32>,
    %c0_4 = arith.constant 0 : index
    %c0_5 = arith.constant 0 : index
    %c0_6 = arith.constant 0 : index
    %5 = vector.load %arg3[%c0_4, %c0_5, %c0_6] : memref<9x8x8xf32, #tpu.memory_space<vmem>>, vector<1x8x8xf32>
    %6 = vector.shape_cast %5 : vector<1x8x8xf32> to vector<8x8xf32>
    %c0_7 = arith.constant 0 : index
    %c109_8 = arith.constant 109 : index
    %7 = vector.load %arg1[%c0_7, %c109_8] : memref<8x640xf32, #tpu.memory_space<vmem>>, vector<8x384xf32>
    %cst_9 = arith.constant dense<0.000000e+00> : vector<8x384xf32>
    %8 = tpu.matmul %6, %7, %cst_9 {dimension_numbers = #tpu.dot_dimension_numbers<[1], [0], [0], [1], [0, 0, 1, 1], [], []>} : vector<8x8xf32>, vector<8x384xf32>, vector<8x384xf32> -> vector<8x384xf32>
    %c1 = arith.constant 1 : index
    %c0_10 = arith.constant 0 : index
    %c0_11 = arith.constant 0 : index
    %9 = vector.load %arg3[%c1, %c0_10, %c0_11] : memref<9x8x8xf32, #tpu.memory_space<vmem>>, vector<1x8x8xf32>
    %10 = vector.shape_cast %9 : vector<1x8x8xf32> to vector<8x8xf32>
    %c0_12 = arith.constant 0 : index
    %c110 = arith.constant 110 : index
    %11 = vector.load %arg1[%c0_12, %c110] : memref<8x640xf32, #tpu.memory_space<vmem>>, vector<8x384xf32>
    %cst_13 = arith.constant dense<0.000000e+00> : vector<8x384xf32>
    %12 = tpu.matmul %10, %11, %cst_13 {dimension_numbers = #tpu.dot_dimension_numbers<[1], [0], [0], [1], [0, 0, 1, 1], [], []>} : vector<8x8xf32>, vector<8x384xf32>, vector<8x384xf32> -> vector<8x384xf32>
    %13 = arith.addf %8, %12 : vector<8x384xf32>
    %c2 = arith.constant 2 : index
    %c0_14 = arith.constant 0 : index
    %c0_15 = arith.constant 0 : index
    %14 = vector.load %arg3[%c2, %c0_14, %c0_15] : memref<9x8x8xf32, #tpu.memory_space<vmem>>, vector<1x8x8xf32>
    %15 = vector.shape_cast %14 : vector<1x8x8xf32> to vector<8x8xf32>
    %c0_16 = arith.constant 0 : index
    %c111 = arith.constant 111 : index
    %16 = vector.load %arg1[%c0_16, %c111] : memref<8x640xf32, #tpu.memory_space<vmem>>, vector<8x384xf32>
    %cst_17 = arith.constant dense<0.000000e+00> : vector<8x384xf32>
    %17 = tpu.matmul %15, %16, %cst_17 {dimension_numbers = #tpu.dot_dimension_numbers<[1], [0], [0], [1], [0, 0, 1, 1], [], []>} : vector<8x8xf32>, vector<8x384xf32>, vector<8x384xf32> -> vector<8x384xf32>
    %18 = arith.addf %13, %17 : vector<8x384xf32>
    %c3 = arith.constant 3 : index
    %c0_18 = arith.constant 0 : index
    %c0_19 = arith.constant 0 : index
    %19 = vector.load %arg3[%c3, %c0_18, %c0_19] : memref<9x8x8xf32, #tpu.memory_space<vmem>>, vector<1x8x8xf32>
    %20 = vector.shape_cast %19 : vector<1x8x8xf32> to vector<8x8xf32>
    %c0_20 = arith.constant 0 : index
    %c127 = arith.constant 127 : index
    %21 = vector.load %arg1[%c0_20, %c127] : memref<8x640xf32, #tpu.memory_space<vmem>>, vector<8x384xf32>
    %cst_21 = arith.constant dense<0.000000e+00> : vector<8x384xf32>
    %22 = tpu.matmul %20, %21, %cst_21 {dimension_numbers = #tpu.dot_dimension_numbers<[1], [0], [0], [1], [0, 0, 1, 1], [], []>} : vector<8x8xf32>, vector<8x384xf32>, vector<8x384xf32> -> vector<8x384xf32>
    %23 = arith.addf %18, %22 : vector<8x384xf32>
    %c4 = arith.constant 4 : index
    %c0_22 = arith.constant 0 : index
    %c0_23 = arith.constant 0 : index
    %24 = vector.load %arg3[%c4, %c0_22, %c0_23] : memref<9x8x8xf32, #tpu.memory_space<vmem>>, vector<1x8x8xf32>
    %25 = vector.shape_cast %24 : vector<1x8x8xf32> to vector<8x8xf32>
    %c0_24 = arith.constant 0 : index
    %c128 = arith.constant 128 : index
    %26 = vector.load %arg1[%c0_24, %c128] : memref<8x640xf32, #tpu.memory_space<vmem>>, vector<8x384xf32>
    %cst_25 = arith.constant dense<0.000000e+00> : vector<8x384xf32>
    %27 = tpu.matmul %25, %26, %cst_25 {dimension_numbers = #tpu.dot_dimension_numbers<[1], [0], [0], [1], [0, 0, 1, 1], [], []>} : vector<8x8xf32>, vector<8x384xf32>, vector<8x384xf32> -> vector<8x384xf32>
    %28 = arith.addf %23, %27 : vector<8x384xf32>
    %c5 = arith.constant 5 : index
    %c0_26 = arith.constant 0 : index
    %c0_27 = arith.constant 0 : index
    %29 = vector.load %arg3[%c5, %c0_26, %c0_27] : memref<9x8x8xf32, #tpu.memory_space<vmem>>, vector<1x8x8xf32>
    %30 = vector.shape_cast %29 : vector<1x8x8xf32> to vector<8x8xf32>
    %c0_28 = arith.constant 0 : index
    %c129 = arith.constant 129 : index
    %31 = vector.load %arg1[%c0_28, %c129] : memref<8x640xf32, #tpu.memory_space<vmem>>, vector<8x384xf32>
    %cst_29 = arith.constant dense<0.000000e+00> : vector<8x384xf32>
    %32 = tpu.matmul %30, %31, %cst_29 {dimension_numbers = #tpu.dot_dimension_numbers<[1], [0], [0], [1], [0, 0, 1, 1], [], []>} : vector<8x8xf32>, vector<8x384xf32>, vector<8x384xf32> -> vector<8x384xf32>
    %33 = arith.addf %28, %32 : vector<8x384xf32>
    %c6 = arith.constant 6 : index
    %c0_30 = arith.constant 0 : index
    %c0_31 = arith.constant 0 : index
    %34 = vector.load %arg3[%c6, %c0_30, %c0_31] : memref<9x8x8xf32, #tpu.memory_space<vmem>>, vector<1x8x8xf32>
    %35 = vector.shape_cast %34 : vector<1x8x8xf32> to vector<8x8xf32>
    %c0_32 = arith.constant 0 : index
    %c145 = arith.constant 145 : index
    %36 = vector.load %arg1[%c0_32, %c145] : memref<8x640xf32, #tpu.memory_space<vmem>>, vector<8x384xf32>
    %cst_33 = arith.constant dense<0.000000e+00> : vector<8x384xf32>
    %37 = tpu.matmul %35, %36, %cst_33 {dimension_numbers = #tpu.dot_dimension_numbers<[1], [0], [0], [1], [0, 0, 1, 1], [], []>} : vector<8x8xf32>, vector<8x384xf32>, vector<8x384xf32> -> vector<8x384xf32>
    %38 = arith.addf %33, %37 : vector<8x384xf32>
    %c7 = arith.constant 7 : index
    %c0_34 = arith.constant 0 : index
    %c0_35 = arith.constant 0 : index
    %39 = vector.load %arg3[%c7, %c0_34, %c0_35] : memref<9x8x8xf32, #tpu.memory_space<vmem>>, vector<1x8x8xf32>
    %40 = vector.shape_cast %39 : vector<1x8x8xf32> to vector<8x8xf32>
    %c0_36 = arith.constant 0 : index
    %c146 = arith.constant 146 : index
    %41 = vector.load %arg1[%c0_36, %c146] : memref<8x640xf32, #tpu.memory_space<vmem>>, vector<8x384xf32>
    %cst_37 = arith.constant dense<0.000000e+00> : vector<8x384xf32>
    %42 = tpu.matmul %40, %41, %cst_37 {dimension_numbers = #tpu.dot_dimension_numbers<[1], [0], [0], [1], [0, 0, 1, 1], [], []>} : vector<8x8xf32>, vector<8x384xf32>, vector<8x384xf32> -> vector<8x384xf32>
    %43 = arith.addf %38, %42 : vector<8x384xf32>
    %c8 = arith.constant 8 : index
    %c0_38 = arith.constant 0 : index
    %c0_39 = arith.constant 0 : index
    %44 = vector.load %arg3[%c8, %c0_38, %c0_39] : memref<9x8x8xf32, #tpu.memory_space<vmem>>, vector<1x8x8xf32>
    %45 = vector.shape_cast %44 : vector<1x8x8xf32> to vector<8x8xf32>
    %c0_40 = arith.constant 0 : index
    %c147 = arith.constant 147 : index
    %46 = vector.load %arg1[%c0_40, %c147] : memref<8x640xf32, #tpu.memory_space<vmem>>, vector<8x384xf32>
    %cst_41 = arith.constant dense<0.000000e+00> : vector<8x384xf32>
    %47 = tpu.matmul %45, %46, %cst_41 {dimension_numbers = #tpu.dot_dimension_numbers<[1], [0], [0], [1], [0, 0, 1, 1], [], []>} : vector<8x8xf32>, vector<8x384xf32>, vector<8x384xf32> -> vector<8x384xf32>
    %48 = arith.addf %43, %47 : vector<8x384xf32>
    %c0_42 = arith.constant 0 : index
    %c0_43 = arith.constant 0 : index
    %49 = vector.load %arg4[%c0_42, %c0_43] : memref<8x1xf32, #tpu.memory_space<vmem>>, vector<8x1xf32>
    %50 = vector.broadcast %49 : vector<8x1xf32> to vector<8x384xf32>
    %51 = arith.addf %48, %50 : vector<8x384xf32>
    %cst_44 = arith.constant 0.000000e+00 : f32
    %52 = vector.broadcast %cst_44 : f32 to vector<8x384xf32>
    %53 = arith.maximumf %51, %52 : vector<8x384xf32>
    %54 = vector.broadcast %0 : vector<1x384xf32> to vector<8x384xf32>
    %55 = arith.mulf %53, %54 : vector<8x384xf32>
    %c0_45 = arith.constant 0 : index
    %c128_46 = arith.constant 128 : index
    %56 = vector.load %arg9[%c0_45, %c128_46] : memref<8x640xf32, #tpu.memory_space<vmem>>, vector<8x384xf32>
    tpu.vector_store %arg9[%c0_45, %c128_46], %55 {strides = array<i32>} : memref<8x640xf32, #tpu.memory_space<vmem>>, vector<8x384xf32>,
    %c0_47 = arith.constant 0 : index
    %c0_48 = arith.constant 0 : index
    %c0_49 = arith.constant 0 : index
    %57 = vector.load %arg5[%c0_47, %c0_48, %c0_49] : memref<9x8x8xf32, #tpu.memory_space<vmem>>, vector<1x8x8xf32>
    %58 = vector.shape_cast %57 : vector<1x8x8xf32> to vector<8x8xf32>
    %c0_50 = arith.constant 0 : index
    %c109_51 = arith.constant 109 : index
    %59 = vector.load %arg9[%c0_50, %c109_51] : memref<8x640xf32, #tpu.memory_space<vmem>>, vector<8x384xf32>
    %cst_52 = arith.constant dense<0.000000e+00> : vector<8x384xf32>
    %60 = tpu.matmul %58, %59, %cst_52 {dimension_numbers = #tpu.dot_dimension_numbers<[1], [0], [0], [1], [0, 0, 1, 1], [], []>} : vector<8x8xf32>, vector<8x384xf32>, vector<8x384xf32> -> vector<8x384xf32>
    %c1_53 = arith.constant 1 : index
    %c0_54 = arith.constant 0 : index
    %c0_55 = arith.constant 0 : index
    %61 = vector.load %arg5[%c1_53, %c0_54, %c0_55] : memref<9x8x8xf32, #tpu.memory_space<vmem>>, vector<1x8x8xf32>
    %62 = vector.shape_cast %61 : vector<1x8x8xf32> to vector<8x8xf32>
    %c0_56 = arith.constant 0 : index
    %c110_57 = arith.constant 110 : index
    %63 = vector.load %arg9[%c0_56, %c110_57] : memref<8x640xf32, #tpu.memory_space<vmem>>, vector<8x384xf32>
    %cst_58 = arith.constant dense<0.000000e+00> : vector<8x384xf32>
    %64 = tpu.matmul %62, %63, %cst_58 {dimension_numbers = #tpu.dot_dimension_numbers<[1], [0], [0], [1], [0, 0, 1, 1], [], []>} : vector<8x8xf32>, vector<8x384xf32>, vector<8x384xf32> -> vector<8x384xf32>
    %65 = arith.addf %60, %64 : vector<8x384xf32>
    %c2_59 = arith.constant 2 : index
    %c0_60 = arith.constant 0 : index
    %c0_61 = arith.constant 0 : index
    %66 = vector.load %arg5[%c2_59, %c0_60, %c0_61] : memref<9x8x8xf32, #tpu.memory_space<vmem>>, vector<1x8x8xf32>
    %67 = vector.shape_cast %66 : vector<1x8x8xf32> to vector<8x8xf32>
    %c0_62 = arith.constant 0 : index
    %c111_63 = arith.constant 111 : index
    %68 = vector.load %arg9[%c0_62, %c111_63] : memref<8x640xf32, #tpu.memory_space<vmem>>, vector<8x384xf32>
    %cst_64 = arith.constant dense<0.000000e+00> : vector<8x384xf32>
    %69 = tpu.matmul %67, %68, %cst_64 {dimension_numbers = #tpu.dot_dimension_numbers<[1], [0], [0], [1], [0, 0, 1, 1], [], []>} : vector<8x8xf32>, vector<8x384xf32>, vector<8x384xf32> -> vector<8x384xf32>
    %70 = arith.addf %65, %69 : vector<8x384xf32>
    %c3_65 = arith.constant 3 : index
    %c0_66 = arith.constant 0 : index
    %c0_67 = arith.constant 0 : index
    %71 = vector.load %arg5[%c3_65, %c0_66, %c0_67] : memref<9x8x8xf32, #tpu.memory_space<vmem>>, vector<1x8x8xf32>
    %72 = vector.shape_cast %71 : vector<1x8x8xf32> to vector<8x8xf32>
    %c0_68 = arith.constant 0 : index
    %c127_69 = arith.constant 127 : index
    %73 = vector.load %arg9[%c0_68, %c127_69] : memref<8x640xf32, #tpu.memory_space<vmem>>, vector<8x384xf32>
    %cst_70 = arith.constant dense<0.000000e+00> : vector<8x384xf32>
    %74 = tpu.matmul %72, %73, %cst_70 {dimension_numbers = #tpu.dot_dimension_numbers<[1], [0], [0], [1], [0, 0, 1, 1], [], []>} : vector<8x8xf32>, vector<8x384xf32>, vector<8x384xf32> -> vector<8x384xf32>
    %75 = arith.addf %70, %74 : vector<8x384xf32>
    %c4_71 = arith.constant 4 : index
    %c0_72 = arith.constant 0 : index
    %c0_73 = arith.constant 0 : index
    %76 = vector.load %arg5[%c4_71, %c0_72, %c0_73] : memref<9x8x8xf32, #tpu.memory_space<vmem>>, vector<1x8x8xf32>
    %77 = vector.shape_cast %76 : vector<1x8x8xf32> to vector<8x8xf32>
    %c0_74 = arith.constant 0 : index
    %c128_75 = arith.constant 128 : index
    %78 = vector.load %arg9[%c0_74, %c128_75] : memref<8x640xf32, #tpu.memory_space<vmem>>, vector<8x384xf32>
    %cst_76 = arith.constant dense<0.000000e+00> : vector<8x384xf32>
    %79 = tpu.matmul %77, %78, %cst_76 {dimension_numbers = #tpu.dot_dimension_numbers<[1], [0], [0], [1], [0, 0, 1, 1], [], []>} : vector<8x8xf32>, vector<8x384xf32>, vector<8x384xf32> -> vector<8x384xf32>
    %80 = arith.addf %75, %79 : vector<8x384xf32>
    %c5_77 = arith.constant 5 : index
    %c0_78 = arith.constant 0 : index
    %c0_79 = arith.constant 0 : index
    %81 = vector.load %arg5[%c5_77, %c0_78, %c0_79] : memref<9x8x8xf32, #tpu.memory_space<vmem>>, vector<1x8x8xf32>
    %82 = vector.shape_cast %81 : vector<1x8x8xf32> to vector<8x8xf32>
    %c0_80 = arith.constant 0 : index
    %c129_81 = arith.constant 129 : index
    %83 = vector.load %arg9[%c0_80, %c129_81] : memref<8x640xf32, #tpu.memory_space<vmem>>, vector<8x384xf32>
    %cst_82 = arith.constant dense<0.000000e+00> : vector<8x384xf32>
    %84 = tpu.matmul %82, %83, %cst_82 {dimension_numbers = #tpu.dot_dimension_numbers<[1], [0], [0], [1], [0, 0, 1, 1], [], []>} : vector<8x8xf32>, vector<8x384xf32>, vector<8x384xf32> -> vector<8x384xf32>
    %85 = arith.addf %80, %84 : vector<8x384xf32>
    %c6_83 = arith.constant 6 : index
    %c0_84 = arith.constant 0 : index
    %c0_85 = arith.constant 0 : index
    %86 = vector.load %arg5[%c6_83, %c0_84, %c0_85] : memref<9x8x8xf32, #tpu.memory_space<vmem>>, vector<1x8x8xf32>
    %87 = vector.shape_cast %86 : vector<1x8x8xf32> to vector<8x8xf32>
    %c0_86 = arith.constant 0 : index
    %c145_87 = arith.constant 145 : index
    %88 = vector.load %arg9[%c0_86, %c145_87] : memref<8x640xf32, #tpu.memory_space<vmem>>, vector<8x384xf32>
    %cst_88 = arith.constant dense<0.000000e+00> : vector<8x384xf32>
    %89 = tpu.matmul %87, %88, %cst_88 {dimension_numbers = #tpu.dot_dimension_numbers<[1], [0], [0], [1], [0, 0, 1, 1], [], []>} : vector<8x8xf32>, vector<8x384xf32>, vector<8x384xf32> -> vector<8x384xf32>
    %90 = arith.addf %85, %89 : vector<8x384xf32>
    %c7_89 = arith.constant 7 : index
    %c0_90 = arith.constant 0 : index
    %c0_91 = arith.constant 0 : index
    %91 = vector.load %arg5[%c7_89, %c0_90, %c0_91] : memref<9x8x8xf32, #tpu.memory_space<vmem>>, vector<1x8x8xf32>
    %92 = vector.shape_cast %91 : vector<1x8x8xf32> to vector<8x8xf32>
    %c0_92 = arith.constant 0 : index
    %c146_93 = arith.constant 146 : index
    %93 = vector.load %arg9[%c0_92, %c146_93] : memref<8x640xf32, #tpu.memory_space<vmem>>, vector<8x384xf32>
    %cst_94 = arith.constant dense<0.000000e+00> : vector<8x384xf32>
    %94 = tpu.matmul %92, %93, %cst_94 {dimension_numbers = #tpu.dot_dimension_numbers<[1], [0], [0], [1], [0, 0, 1, 1], [], []>} : vector<8x8xf32>, vector<8x384xf32>, vector<8x384xf32> -> vector<8x384xf32>
    %95 = arith.addf %90, %94 : vector<8x384xf32>
    %c8_95 = arith.constant 8 : index
    %c0_96 = arith.constant 0 : index
    %c0_97 = arith.constant 0 : index
    %96 = vector.load %arg5[%c8_95, %c0_96, %c0_97] : memref<9x8x8xf32, #tpu.memory_space<vmem>>, vector<1x8x8xf32>
    %97 = vector.shape_cast %96 : vector<1x8x8xf32> to vector<8x8xf32>
    %c0_98 = arith.constant 0 : index
    %c147_99 = arith.constant 147 : index
    %98 = vector.load %arg9[%c0_98, %c147_99] : memref<8x640xf32, #tpu.memory_space<vmem>>, vector<8x384xf32>
    %cst_100 = arith.constant dense<0.000000e+00> : vector<8x384xf32>
    %99 = tpu.matmul %97, %98, %cst_100 {dimension_numbers = #tpu.dot_dimension_numbers<[1], [0], [0], [1], [0, 0, 1, 1], [], []>} : vector<8x8xf32>, vector<8x384xf32>, vector<8x384xf32> -> vector<8x384xf32>
    %100 = arith.addf %95, %99 : vector<8x384xf32>
    %c0_101 = arith.constant 0 : index
    %c0_102 = arith.constant 0 : index
    %101 = vector.load %arg6[%c0_101, %c0_102] : memref<8x1xf32, #tpu.memory_space<vmem>>, vector<8x1xf32>
    %102 = vector.broadcast %101 : vector<8x1xf32> to vector<8x384xf32>
    %103 = arith.addf %100, %102 : vector<8x384xf32>
    %c0_103 = arith.constant 0 : index
    %c0_104 = arith.constant 0 : index
    %104 = vector.load %arg2[%c0_103, %c0_104] : memref<8x384xf32, #tpu.memory_space<vmem>>, vector<8x384xf32>
    %105 = arith.addf %103, %104 : vector<8x384xf32>
    %cst_105 = arith.constant 0.000000e+00 : f32
    %106 = vector.broadcast %cst_105 : f32 to vector<8x384xf32>
    %107 = arith.maximumf %105, %106 : vector<8x384xf32>
    %c0_106 = arith.constant 0 : index
    %c0_107 = arith.constant 0 : index
    %108 = vector.load %arg8[%c0_106, %c0_107] : memref<8x384xf32, #tpu.memory_space<vmem>>, vector<8x384xf32>
    tpu.vector_store %arg8[%c0_106, %c0_107], %107 {strides = array<i32>} : memref<8x384xf32, #tpu.memory_space<vmem>>, vector<8x384xf32>,
    return
  }
  func.func @transform_0(%arg0: i32) -> (i32, i32) {
    %c0_i32 = arith.constant 0 : i32
    %c0_i32_0 = arith.constant 0 : i32
    return %c0_i32, %arg0 : i32, i32
  }
  func.func @transform_1(%arg0: i32) -> (i32, i32) {
    %c0_i32 = arith.constant 0 : i32
    %c0_i32_0 = arith.constant 0 : i32
    return %c0_i32, %arg0 : i32, i32
  }
  func.func @transform_2(%arg0: i32) -> (i32, i32, i32) {
    %c0_i32 = arith.constant 0 : i32
    %c0_i32_0 = arith.constant 0 : i32
    %c0_i32_1 = arith.constant 0 : i32
    %c0_i32_2 = arith.constant 0 : i32
    return %c0_i32, %c0_i32_0, %c0_i32_1 : i32, i32, i32
  }
  func.func @transform_3(%arg0: i32) -> (i32, i32) {
    %c0_i32 = arith.constant 0 : i32
    %c0_i32_0 = arith.constant 0 : i32
    %c0_i32_1 = arith.constant 0 : i32
    return %c0_i32, %c0_i32_0 : i32, i32
  }
  func.func @transform_4(%arg0: i32) -> (i32, i32, i32) {
    %c0_i32 = arith.constant 0 : i32
    %c0_i32_0 = arith.constant 0 : i32
    %c0_i32_1 = arith.constant 0 : i32
    %c0_i32_2 = arith.constant 0 : i32
    return %c0_i32, %c0_i32_0, %c0_i32_1 : i32, i32, i32
  }
  func.func @transform_5(%arg0: i32) -> (i32, i32) {
    %c0_i32 = arith.constant 0 : i32
    %c0_i32_0 = arith.constant 0 : i32
    %c0_i32_1 = arith.constant 0 : i32
    return %c0_i32, %c0_i32_0 : i32, i32
  }
  func.func @transform_6(%arg0: i32) -> (i32, i32) {
    %c0_i32 = arith.constant 0 : i32
    %c0_i32_0 = arith.constant 0 : i32
    %c0_i32_1 = arith.constant 0 : i32
    return %c0_i32, %c0_i32_0 : i32, i32
  }
  func.func @transform_7(%arg0: i32) -> (i32, i32) {
    %c0_i32 = arith.constant 0 : i32
    %c0_i32_0 = arith.constant 0 : i32
    return %c0_i32, %arg0 : i32, i32
  }
}

</mosaic_0001>

<llo_original>
// kernel: qbasicblock_forward.1
$region0: #{qbasicblock_forward.1}
  #allocation0 [shape = 'u32[]', space=smem, size = 0x4, offset = 0x4, fixed_abs, tag = 'smem constant byte address 0x4 - core index']
  #allocation1 [shape = 'u32[144,128]{1,0:T(1,128)}', space=vmem, size = 0x12000, scoped, tag = 'internal scratch']
  #allocation2 [shape = 'f32[8,640]{1,0:T(8,128)}', space=vmem, size = 0x5000, scoped, tag = 'scratch operand']
  %s0 = inlined_call_operand.vmem [shape: f32[8,1280], index: 0, kind: input, shape index: {}]
  %s1 = inlined_call_operand.vmem [shape: f32[8,768], index: 1, kind: input, shape index: {}]
  %s2 = inlined_call_operand.vmem [shape: f32[9,8,8], index: 2, kind: input, shape index: {}]
  %s3 = inlined_call_operand.vmem [shape: f32[8,1], index: 3, kind: input, shape index: {}]
  %s4 = inlined_call_operand.vmem [shape: f32[9,8,8], index: 4, kind: input, shape index: {}]
  %s5 = inlined_call_operand.vmem [shape: f32[8,1], index: 5, kind: input, shape index: {}]
  %s6 = inlined_call_operand.vmem [shape: f32[1,384], index: 6, kind: input, shape index: {}]
  %s7 = inlined_call_operand.vmem [shape: f32[8,768], index: 7, kind: output, shape index: {}]
  %s8 = sld [smem:[#allocation0]]
  $region61: #{qbasicblock_forward.1} parent=0
    _
  %s10 = ssub.s32 1, %s8
  %s11 = scalar_select 0, %s10, %s8
  loop: start=0, step=1, limit=4
  $region2: #{qbasicblock_forward.1} parent=0 // loop_pre_header
    _
  $region3: #{qbasicblock_forward.1} parent=0 // loop_header
    %s13 = sphi 0, %s17
    %p14 = scmp.ge.s32.totalorder %s13, 4
    %s23 = sphi 0, %s25
    %s26 = sphi 0, %s23
    %s27 = sphi 0, %s26
    %s43 = sphi 0, %s27
    %s49 = sphi 0, %s51
    %s52 = sphi 0, %s49
    %s53 = sphi 0, %s52
    %s69 = sphi 0, %s53
    %s73 = sphi 0, %s73
    %s75 = sphi 0, %s73
    %s76 = sphi 0, %s75
    %s90 = sphi 0, %s76
    %s94 = sphi 0, %s94
    %s96 = sphi 0, %s94
    %s97 = sphi 0, %s96
    %s111 = sphi 0, %s97
    %s115 = sphi 0, %s115
    %s117 = sphi 0, %s115
    %s118 = sphi 0, %s117
    %s132 = sphi 0, %s118
    %s136 = sphi 0, %s136
    %s138 = sphi 0, %s136
    %s139 = sphi 0, %s138
    %s153 = sphi 0, %s139
    %s157 = sphi 0, %s157
    %s159 = sphi 0, %s157
    %s160 = sphi 0, %s159
    %s174 = sphi 0, %s160
    %s180 = sphi 0, %s182
    %s183 = sphi 0, %s180
    %s184 = sphi 0, %s183
    %s200 = sphi 0, %s184
  $region4: #{qbasicblock_forward.1} parent=0 // loop_header_branch
    %16 = sbr.rel (%p14) target = $region8
  $region5: #{qbasicblock_forward.1} parent=0 // loop_body
    %s18 = ssub.s32 %s13, 1
    %s19 = ssub.s32 %s13, 2
    %s20 = sadd.s32 %s13, 1
    %s21 = ssub.s32 %s13, %s20
    %p22 = scmp.eq.s32.totalorder %s21, 0
    %s24 = sadd.s32 %s23, 1
    %s25 = scalar_select %p22, %s23, %s24
    %p28 = pneg %p22
    %p29 = scmp.eq.s32.totalorder %s13, 1
    %p30 = por %p28, %p29
    %p31 = scmp.ne.s32.totalorder %s23, %s26
    %p32 = scmp.eq.s32.totalorder %s13, 0
    %p33 = por %p31, %p32
    %p34 = scmp.ne.s32.totalorder %s23, %s26
    %p35 = scmp.eq.s32.totalorder %s18, 1
    %p36 = por %p34, %p35
    %p37 = scmp.ne.s32.totalorder %s26, %s27
    %p38 = scmp.eq.s32.totalorder %s18, 0
    %p39 = por %p37, %p38
    %p40 = scmp.ne.s32.totalorder %s26, %s27
    %p41 = scmp.eq.s32.totalorder %s19, 1
    %p42 = por %p40, %p41
    %p44 = scmp.ne.s32.totalorder %s27, %s43
    %p45 = scmp.eq.s32.totalorder %s19, 0
    %p46 = por %p44, %p45
    %s47 = ssub.s32 %s13, %s20
    %p48 = scmp.eq.s32.totalorder %s47, 0
    %s50 = sadd.s32 %s49, 1
    %s51 = scalar_select %p48, %s49, %s50
    %p54 = pneg %p48
    %p55 = scmp.eq.s32.totalorder %s13, 1
    %p56 = por %p54, %p55
    %p57 = scmp.ne.s32.totalorder %s49, %s52
    %p58 = scmp.eq.s32.totalorder %s13, 0
    %p59 = por %p57, %p58
    %p60 = scmp.ne.s32.totalorder %s49, %s52
    %p61 = scmp.eq.s32.totalorder %s18, 1
    %p62 = por %p60, %p61
    %p63 = scmp.ne.s32.totalorder %s52, %s53
    %p64 = scmp.eq.s32.totalorder %s18, 0
    %p65 = por %p63, %p64
    %p66 = scmp.ne.s32.totalorder %s52, %s53
    %p67 = scmp.eq.s32.totalorder %s19, 1
    %p68 = por %p66, %p67
    %p70 = scmp.ne.s32.totalorder %s53, %s69
    %p71 = scmp.eq.s32.totalorder %s19, 0
    %p72 = por %p70, %p71
    %s74 = sadd.s32 %s73, 1
    %p77 = scmp.eq.s32.totalorder %s13, 1
    %p78 = scmp.ne.s32.totalorder %s73, %s75
    %p79 = scmp.eq.s32.totalorder %s13, 0
    %p80 = por %p78, %p79
    %p81 = scmp.ne.s32.totalorder %s73, %s75
    %p82 = scmp.eq.s32.totalorder %s18, 1
    %p83 = por %p81, %p82
    %p84 = scmp.ne.s32.totalorder %s75, %s76
    %p85 = scmp.eq.s32.totalorder %s18, 0
    %p86 = por %p84, %p85
    %p87 = scmp.ne.s32.totalorder %s75, %s76
    %p88 = scmp.eq.s32.totalorder %s19, 1
    %p89 = por %p87, %p88
    %p91 = scmp.ne.s32.totalorder %s76, %s90
    %p92 = scmp.eq.s32.totalorder %s19, 0
    %p93 = por %p91, %p92
    %s95 = sadd.s32 %s94, 1
    %p98 = scmp.eq.s32.totalorder %s13, 1
    %p99 = scmp.ne.s32.totalorder %s94, %s96
    %p100 = scmp.eq.s32.totalorder %s13, 0
    %p101 = por %p99, %p100
    %p102 = scmp.ne.s32.totalorder %s94, %s96
    %p103 = scmp.eq.s32.totalorder %s18, 1
    %p104 = por %p102, %p103
    %p105 = scmp.ne.s32.totalorder %s96, %s97
    %p106 = scmp.eq.s32.totalorder %s18, 0
    %p107 = por %p105, %p106
    %p108 = scmp.ne.s32.totalorder %s96, %s97
    %p109 = scmp.eq.s32.totalorder %s19, 1
    %p110 = por %p108, %p109
    %p112 = scmp.ne.s32.totalorder %s97, %s111
    %p113 = scmp.eq.s32.totalorder %s19, 0
    %p114 = por %p112, %p113
    %s116 = sadd.s32 %s115, 1
    %p119 = scmp.eq.s32.totalorder %s13, 1
    %p120 = scmp.ne.s32.totalorder %s115, %s117
    %p121 = scmp.eq.s32.totalorder %s13, 0
    %p122 = por %p120, %p121
    %p123 = scmp.ne.s32.totalorder %s115, %s117
    %p124 = scmp.eq.s32.totalorder %s18, 1
    %p125 = por %p123, %p124
    %p126 = scmp.ne.s32.totalorder %s117, %s118
    %p127 = scmp.eq.s32.totalorder %s18, 0
    %p128 = por %p126, %p127
    %p129 = scmp.ne.s32.totalorder %s117, %s118
    %p130 = scmp.eq.s32.totalorder %s19, 1
    %p131 = por %p129, %p130
    %p133 = scmp.ne.s32.totalorder %s118, %s132
    %p134 = scmp.eq.s32.totalorder %s19, 0
    %p135 = por %p133, %p134
    %s137 = sadd.s32 %s136, 1
    %p140 = scmp.eq.s32.totalorder %s13, 1
    %p141 = scmp.ne.s32.totalorder %s136, %s138
    %p142 = scmp.eq.s32.totalorder %s13, 0
    %p143 = por %p141, %p142
    %p144 = scmp.ne.s32.totalorder %s136, %s138
    %p145 = scmp.eq.s32.totalorder %s18, 1
    %p146 = por %p144, %p145
    %p147 = scmp.ne.s32.totalorder %s138, %s139
    %p148 = scmp.eq.s32.totalorder %s18, 0
    %p149 = por %p147, %p148
    %p150 = scmp.ne.s32.totalorder %s138, %s139
    %p151 = scmp.eq.s32.totalorder %s19, 1
    %p152 = por %p150, %p151
    %p154 = scmp.ne.s32.totalorder %s139, %s153
    %p155 = scmp.eq.s32.totalorder %s19, 0
    %p156 = por %p154, %p155
    %s158 = sadd.s32 %s157, 1
    %p161 = scmp.eq.s32.totalorder %s13, 1
    %p162 = scmp.ne.s32.totalorder %s157, %s159
    %p163 = scmp.eq.s32.totalorder %s13, 0
    %p164 = por %p162, %p163
    %p165 = scmp.ne.s32.totalorder %s157, %s159
    %p166 = scmp.eq.s32.totalorder %s18, 1
    %p167 = por %p165, %p166
    %p168 = scmp.ne.s32.totalorder %s159, %s160
    %p169 = scmp.eq.s32.totalorder %s18, 0
    %p170 = por %p168, %p169
    %p171 = scmp.ne.s32.totalorder %s159, %s160
    %p172 = scmp.eq.s32.totalorder %s19, 1
    %p173 = por %p171, %p172
    %p175 = scmp.ne.s32.totalorder %s160, %s174
    %p176 = scmp.eq.s32.totalorder %s19, 0
    %p177 = por %p175, %p176
    %s178 = ssub.s32 %s13, %s20
    %p179 = scmp.eq.s32.totalorder %s178, 0
    %s181 = sadd.s32 %s180, 1
    %s182 = scalar_select %p179, %s180, %s181
    %p185 = pneg %p179
    %p186 = scmp.eq.s32.totalorder %s13, 1
    %p187 = por %p185, %p186
    %p188 = scmp.ne.s32.totalorder %s180, %s183
    %p189 = scmp.eq.s32.totalorder %s13, 0
    %p190 = por %p188, %p189
    %p191 = scmp.ne.s32.totalorder %s180, %s183
    %p192 = scmp.eq.s32.totalorder %s18, 1
    %p193 = por %p191, %p192
    %p194 = scmp.ne.s32.totalorder %s183, %s184
    %p195 = scmp.eq.s32.totalorder %s18, 0
    %p196 = por %p194, %p195
    %p197 = scmp.ne.s32.totalorder %s183, %s184
    %p198 = scmp.eq.s32.totalorder %s19, 1
    %p199 = por %p197, %p198
    %p201 = scmp.ne.s32.totalorder %s184, %s200
    %p202 = scmp.eq.s32.totalorder %s19, 0
    %p203 = por %p201, %p202
    %p204 = scmp.le.s32.totalorder 1, %s13
    %p205 = scmp.lt.s32.totalorder %s13, 3
    %p206 = pnand %p204, %p205
    %p207 = pneg %p206
    // Predicated region
    $region9: #{qbasicblock_forward.1} parent=5 // pred_check
      _
    $region10: #{qbasicblock_forward.1} parent=5 // pred_check_branch
      %209 = sbr.rel (%p206) target = $region12
    $region11: #{qbasicblock_forward.1} parent=5 // pred_region
      %s210 = ssub.s32 %s13, 1
      // Predicated region
      $region13: #{qbasicblock_forward.1} parent=11 // pred_check
        %p211 = pneg %p86
      $region14: #{qbasicblock_forward.1} parent=11 // pred_check_branch
        %213 = sbr.rel (%p211) target = $region16
      $region15: #{qbasicblock_forward.1} parent=11 // pred_region
        _
      $region16: #{qbasicblock_forward.1} parent=11 // pred_fallthru
        _
      // Predicated region
      $region17: #{qbasicblock_forward.1} parent=11 // pred_check
        %p214 = pneg %p107
      $region18: #{qbasicblock_forward.1} parent=11 // pred_check_branch
        %216 = sbr.rel (%p214) target = $region20
      $region19: #{qbasicblock_forward.1} parent=11 // pred_region
        _
      $region20: #{qbasicblock_forward.1} parent=11 // pred_fallthru
        _
      // Predicated region
      $region21: #{qbasicblock_forward.1} parent=11 // pred_check
        %p217 = pneg %p128
      $region22: #{qbasicblock_forward.1} parent=11 // pred_check_branch
        %219 = sbr.rel (%p217) target = $region24
      $region23: #{qbasicblock_forward.1} parent=11 // pred_region
        _
      $region24: #{qbasicblock_forward.1} parent=11 // pred_fallthru
        _
      // Predicated region
      $region25: #{qbasicblock_forward.1} parent=11 // pred_check
        %p220 = pneg %p149
      $region26: #{qbasicblock_forward.1} parent=11 // pred_check_branch
        %222 = sbr.rel (%p220) target = $region28
      $region27: #{qbasicblock_forward.1} parent=11 // pred_region
        _
      $region28: #{qbasicblock_forward.1} parent=11 // pred_fallthru
        _
      // Predicated region
      $region29: #{qbasicblock_forward.1} parent=11 // pred_check
        %p223 = pneg %p170
      $region30: #{qbasicblock_forward.1} parent=11 // pred_check_branch
        %225 = sbr.rel (%p223) target = $region32
      $region31: #{qbasicblock_forward.1} parent=11 // pred_region
        _
      $region32: #{qbasicblock_forward.1} parent=11 // pred_fallthru
        _
    $region12: #{qbasicblock_forward.1} parent=5 // pred_fallthru
      _
    %p226 = scmp.lt.s32.totalorder %s13, 2
    // Predicated region
    $region33: #{qbasicblock_forward.1} parent=5 // pred_check
      %p227 = pneg %p226
    $region34: #{qbasicblock_forward.1} parent=5 // pred_check_branch
      %229 = sbr.rel (%p227) target = $region36
    $region35: #{qbasicblock_forward.1} parent=5 // pred_region
      // Predicated region
      $region37: #{qbasicblock_forward.1} parent=35 // pred_check
        %p230 = pneg %p33
      $region38: #{qbasicblock_forward.1} parent=35 // pred_check_branch
        %232 = sbr.rel (%p230) target = $region40
      $region39: #{qbasicblock_forward.1} parent=35 // pred_region
        %s233 = smul.u32 5, %s13
        %p234 = scmp.lt.s32.totalorder %s233, 9
        %s235 = scalar_select %p234, %s233, 9
        %s236 = smul.addr %s235, 8
        %s237 = scalar_lea.vmem %s0, %s236
        %s238 = smul.u32 5, %s13
      $region40: #{qbasicblock_forward.1} parent=35 // pred_fallthru
        _
      // Predicated region
      $region41: #{qbasicblock_forward.1} parent=35 // pred_check
        %p239 = pneg %p59
      $region42: #{qbasicblock_forward.1} parent=35 // pred_check_branch
        %241 = sbr.rel (%p239) target = $region44
      $region43: #{qbasicblock_forward.1} parent=35 // pred_region
        %s242 = smul.u32 3, %s13
        %p243 = scmp.lt.s32.totalorder %s242, 5
        %s244 = scalar_select %p243, %s242, 5
        %s245 = smul.addr %s244, 8
        %s246 = scalar_lea.vmem %s1, %s245
        %s247 = smul.u32 3, %s13
      $region44: #{qbasicblock_forward.1} parent=35 // pred_fallthru
        _
    $region36: #{qbasicblock_forward.1} parent=5 // pred_fallthru
      _
    %p248 = scmp.le.s32.totalorder 1, %s13
    %p249 = scmp.lt.s32.totalorder %s13, 3
    %p250 = pnand %p248, %p249
    %p251 = pneg %p250
    // Predicated region
    $region45: #{qbasicblock_forward.1} parent=5 // pred_check
      _
    $region46: #{qbasicblock_forward.1} parent=5 // pred_check_branch
      %253 = sbr.rel (%p250) target = $region48
    $region47: #{qbasicblock_forward.1} parent=5 // pred_region
      %s254 = ssub.s32 %s13, 1
      %s255 = smul.u32 5, %s18
      %p256 = scmp.lt.s32.totalorder %s255, 9
      %s257 = scalar_select %p256, %s255, 9
      %s258 = smul.addr %s257, 8
      %s259 = scalar_lea.vmem %s0, %s258
      %p260 = pneg %p39
      %p261 = pneg %p36
      %s262 = smul.u32 3, %s18
      %p263 = scmp.lt.s32.totalorder %s262, 5
      %s264 = scalar_select %p263, %s262, 5
      %s265 = smul.addr %s264, 8
      %s266 = scalar_lea.vmem %s1, %s265
      %p267 = pneg %p65
      %p268 = pneg %p62
      %p269 = pneg %p86
      %p270 = pneg %p83
      %p271 = pneg %p107
      %p272 = pneg %p104
      %p273 = pneg %p128
      %p274 = pneg %p125
      %p275 = pneg %p149
      %p276 = pneg %p146
      %p277 = pneg %p170
      %p278 = pneg %p167
      %p279 = pneg %p196
      %p280 = pneg %p193
      %s281 = smul.u32 3, %s18
      %p282 = scmp.lt.s32.totalorder %s281, 5
      %s283 = scalar_select %p282, %s281, 5
      %s284 = smul.addr %s283, 8
      %s285 = scalar_lea.vmem %s7, %s284
      %s286 = smul.u32 5, %s18
      %p287 = scmp.lt.s32.totalorder %s286, 9
      %s288 = scalar_select %p287, %s286, 9
      %s289 = smul.addr %s288, 8
      %s290 = scalar_lea.vmem %s0, %s289
      %s291 = smul.u32 5, %s18
      %s292 = smul.u32 3, %s18
      %p293 = scmp.lt.s32.totalorder %s292, 5
      %s294 = scalar_select %p293, %s292, 5
      %s295 = smul.addr %s294, 8
      %s296 = scalar_lea.vmem %s1, %s295
      %s297 = smul.u32 3, %s18
      %s298 = smul.u32 3, %s18
      %p299 = scmp.lt.s32.totalorder %s298, 5
      %s300 = scalar_select %p299, %s298, 5
      %s301 = smul.addr %s300, 8
      %s302 = scalar_lea.vmem %s7, %s301
      %s303 = smul.u32 3, %s18
      %v304 = vld [vmem:[%s6] sm:$0x7]
      %vm305 = vcmask 1048424
      %306 = vst.msk [vmem:[#allocation2] sm:$0xff] %vm305, 0.0
      %vm307 = vcmask 154624
      %308 = vst.msk [vmem:[#allocation2 + $0x20] sm:$0xff] %vm307, 0.0
      %v309 = vld [vmem:[%s2] sm:$0xff]
      %v310 = vld [vmem:[%s290] sm:$0xff]
      %v311 = vld [vmem:[%s290 + $0x8] sm:$0xff]
      %v312 = vld [vmem:[%s290 + $0x10] sm:$0xff]
      %v313 = vld [vmem:[%s290 + $0x18] sm:$0xff]
      %s314 = scalar_lea.vmem %s2, 8
      %v315 = vld [vmem:[%s314] sm:$0xff]
      %320 = vrot.lane.b32.xlu0 %v310, 18
      %v321 = vpop.permute.xlu0 %320
      %322 = vrot.lane.b32.xlu0 %v311, 18
      %v323 = vpop.permute.xlu0 %322
      %324 = vrot.lane.b32.xlu0 %v312, 18
      %v325 = vpop.permute.xlu0 %324
      %326 = vrot.lane.b32.xlu0 %v313, 18
      %v327 = vpop.permute.xlu0 %326
      %vm328 = vcmask 146432
      %v329 = vsel %vm328, %v321, %v323
      %v330 = vsel %vm328, %v323, %v325
      %v331 = vsel %vm328, %v325, %v327
      %vm335 = vcmask 64512
      %v337 = vsel %vm335, %v315, 0
      %339 = vmatprep.subr.mxu0 %v330
      %340 = vmatpush1.msra.mxu0 %v329
      %341 = vmatprep.subr.mxu0 0.0
      %342 = vmatpush1.msra.mxu0 0.0
      %343 = vmatprep.subr.mxu0 0.0
      %344 = vmatpush1.msra.mxu0 0.0
      %345 = vmatprep.subr.mxu0 0.0
      %346 = vmatpush1.msra.mxu0 0.0
      %347 = vmatprep.subr.mxu0 0.0
      %348 = vmatpush1.msra.mxu0 0.0
      %349 = vmatprep.subr.mxu0 0.0
      %350 = vmatpush1.msra.mxu0 0.0
      %351 = vmatprep.subr.mxu0 0.0
      %352 = vmatpush1.msra.mxu0 0.0
      %353 = vmatprep.subr.mxu0 0.0
      %354 = vmatpush1.msra.mxu0 0.0
      %355 = vmatprep.subr.mxu0 0.0
      %356 = vmatpush1.msra.mxu0 0.0
      %357 = vmatprep.subr.mxu0 0.0
      %358 = vmatpush1.msra.mxu0 0.0
      %359 = vmatprep.subr.mxu0 0.0
      %360 = vmatpush1.msra.mxu0 0.0
      %361 = vmatprep.subr.mxu0 0.0
      %362 = vmatpush1.msra.mxu0 0.0
      %363 = vmatprep.subr.mxu0 0.0
      %364 = vmatpush1.msra.mxu0 0.0
      %365 = vmatprep.subr.mxu0 0.0
      %366 = vmatpush1.msra.mxu0 0.0
      %367 = vmatprep.subr.mxu0 0.0
      %368 = vmatpush1.msra.mxu0 0.0
      %369 = vmatprep.subr.mxu0 0.0
      %370 = vmatpush1.msra.mxu0 0.0
      %371 = vmatprep.subr.mxu0 0.0
      %372 = vmatpush1.msra.mxu0 0.0
      %373 = vmatprep.subr.mxu0 0.0
      %374 = vmatpush1.msra.mxu0 0.0
      %375 = vmatprep.subr.mxu0 0.0
      %376 = vmatpush1.msra.mxu0 0.0
      %377 = vmatprep.subr.mxu0 0.0
      %378 = vmatpush1.msra.mxu0 0.0
      %379 = vmatprep.subr.mxu0 0.0
      %380 = vmatpush1.msra.mxu0 0.0
      %381 = vmatprep.subr.mxu0 0.0
      %382 = vmatpush1.msra.mxu0 0.0
      %383 = vmatprep.subr.mxu0 0.0
      %384 = vmatpush1.msra.mxu0 0.0
      %385 = vmatprep.subr.mxu0 0.0
      %386 = vmatpush1.msra.mxu0 0.0
      %387 = vmatprep.subr.mxu0 0.0
      %388 = vmatpush1.msra.mxu0 0.0
      %389 = vmatprep.subr.mxu0 0.0
      %390 = vmatpush1.msra.mxu0 0.0
      %391 = vmatprep.subr.mxu0 0.0
      %392 = vmatpush1.msra.mxu0 0.0
      %393 = vmatprep.subr.mxu0 0.0
      %394 = vmatpush1.msra.mxu0 0.0
      %395 = vmatprep.subr.mxu0 0.0
      %396 = vmatpush1.msra.mxu0 0.0
      %397 = vmatprep.subr.mxu0 0.0
      %398 = vmatpush1.msra.mxu0 0.0
      %399 = vmatprep.subr.mxu0 0.0
      %400 = vmatpush1.msra.mxu0 0.0
      %401 = vmatprep.subr.mxu0 0.0
      %402 = vmatpush1.msra.mxu0 0.0
      %403 = vmatprep.mubr.f32.mxu0 0.0
      %404 = vmatmul.mubr.f32.gmra.mrb[0].mxu0 %v337
      %v405 = vpop.f32.mrb[0].mxu0
      %v406 = vadd.f32 0.0, %v405
      %v407 = vpop.f32.mrb[0].mxu0
      %v408 = vadd.f32 0.0, %v407
      %409 = vdwg.mxu0
      %410 = vmatprep.subr.mxu0 0.0
      %411 = vmatpush1.msra.mxu0 %v331
      %412 = vmatprep.subr.mxu0 0.0
      %413 = vmatpush1.msra.mxu0 0.0
      %414 = vmatprep.subr.mxu0 0.0
      %415 = vmatpush1.msra.mxu0 0.0
      %416 = vmatprep.subr.mxu0 0.0
      %417 = vmatpush1.msra.mxu0 0.0
      %418 = vmatprep.subr.mxu0 0.0
      %419 = vmatpush1.msra.mxu0 0.0
      %420 = vmatprep.subr.mxu0 0.0
      %421 = vmatpush1.msra.mxu0 0.0
      %422 = vmatprep.subr.mxu0 0.0
      %423 = vmatpush1.msra.mxu0 0.0
      %424 = vmatprep.subr.mxu0 0.0
      %425 = vmatpush1.msra.mxu0 0.0
      %426 = vmatprep.subr.mxu0 0.0
      %427 = vmatpush1.msra.mxu0 0.0
      %428 = vmatprep.subr.mxu0 0.0
      %429 = vmatpush1.msra.mxu0 0.0
      %430 = vmatprep.subr.mxu0 0.0
      %431 = vmatpush1.msra.mxu0 0.0
      %432 = vmatprep.subr.mxu0 0.0
      %433 = vmatpush1.msra.mxu0 0.0
      %434 = vmatprep.subr.mxu0 0.0
      %435 = vmatpush1.msra.mxu0 0.0
      %436 = vmatprep.subr.mxu0 0.0
      %437 = vmatpush1.msra.mxu0 0.0
      %438 = vmatprep.subr.mxu0 0.0
      %439 = vmatpush1.msra.mxu0 0.0
      %440 = vmatprep.subr.mxu0 0.0
      %441 = vmatpush1.msra.mxu0 0.0
      %442 = vmatprep.subr.mxu0 0.0
      %443 = vmatpush1.msra.mxu0 0.0
      %444 = vmatprep.subr.mxu0 0.0
      %445 = vmatpush1.msra.mxu0 0.0
      %446 = vmatprep.subr.mxu0 0.0
      %447 = vmatpush1.msra.mxu0 0.0
      %448 = vmatprep.subr.mxu0 0.0
      %449 = vmatpush1.msra.mxu0 0.0
      %450 = vmatprep.subr.mxu0 0.0
      %451 = vmatpush1.msra.mxu0 0.0
      %452 = vmatprep.subr.mxu0 0.0
      %453 = vmatpush1.msra.mxu0 0.0
      %454 = vmatprep.subr.mxu0 0.0
      %455 = vmatpush1.msra.mxu0 0.0
      %456 = vmatprep.subr.mxu0 0.0
      %457 = vmatpush1.msra.mxu0 0.0
      %458 = vmatprep.subr.mxu0 0.0
      %459 = vmatpush1.msra.mxu0 0.0
      %460 = vmatprep.subr.mxu0 0.0
      %461 = vmatpush1.msra.mxu0 0.0
      %462 = vmatprep.subr.mxu0 0.0
      %463 = vmatpush1.msra.mxu0 0.0
      %464 = vmatprep.subr.mxu0 0.0
      %465 = vmatpush1.msra.mxu0 0.0
      %466 = vmatprep.subr.mxu0 0.0
      %467 = vmatpush1.msra.mxu0 0.0
      %468 = vmatprep.subr.mxu0 0.0
      %469 = vmatpush1.msra.mxu0 0.0
      %470 = vmatprep.subr.mxu0 0.0
      %471 = vmatpush1.msra.mxu0 0.0
      %472 = vmatprep.subr.mxu0 0.0
      %473 = vmatpush1.msra.mxu0 0.0
      %474 = vmatprep.mubr.f32.mxu0 0.0
      %475 = vmatmul.mubr.f32.gmra.mrb[0].mxu0 %v337
      %v476 = vpop.f32.mrb[0].mxu0
      %v477 = vadd.f32 0.0, %v476
      %v478 = vpop.f32.mrb[0].mxu0
      %479 = vdwg.mxu0
      %480 = vrot.lane.b32.xlu0 %v310, 19
      %v481 = vpop.permute.xlu0 %480
      %482 = vrot.lane.b32.xlu0 %v311, 19
      %v483 = vpop.permute.xlu0 %482
      %484 = vrot.lane.b32.xlu0 %v312, 19
      %v485 = vpop.permute.xlu0 %484
      %486 = vrot.lane.b32.xlu0 %v313, 19
      %v487 = vpop.permute.xlu0 %486
      %v488 = vsel %vm307, %v481, %v483
      %v489 = vsel %vm307, %v483, %v485
      %v490 = vsel %vm307, %v485, %v487
      %v495 = vsel %vm335, %v309, 0
      %497 = vmatprep.subr.mxu0 %v489
      %498 = vmatpush1.msra.mxu0 %v488
      %499 = vmatprep.subr.mxu0 0.0
      %500 = vmatpush1.msra.mxu0 0.0
      %501 = vmatprep.subr.mxu0 0.0
      %502 = vmatpush1.msra.mxu0 0.0
      %503 = vmatprep.subr.mxu0 0.0
      %504 = vmatpush1.msra.mxu0 0.0
      %505 = vmatprep.subr.mxu0 0.0
      %506 = vmatpush1.msra.mxu0 0.0
      %507 = vmatprep.subr.mxu0 0.0
      %508 = vmatpush1.msra.mxu0 0.0
      %509 = vmatprep.subr.mxu0 0.0
      %510 = vmatpush1.msra.mxu0 0.0
      %511 = vmatprep.subr.mxu0 0.0
      %512 = vmatpush1.msra.mxu0 0.0
      %513 = vmatprep.subr.mxu0 0.0
      %514 = vmatpush1.msra.mxu0 0.0
      %515 = vmatprep.subr.mxu0 0.0
      %516 = vmatpush1.msra.mxu0 0.0
      %517 = vmatprep.subr.mxu0 0.0
      %518 = vmatpush1.msra.mxu0 0.0
      %519 = vmatprep.subr.mxu0 0.0
      %520 = vmatpush1.msra.mxu0 0.0
      %521 = vmatprep.subr.mxu0 0.0
      %522 = vmatpush1.msra.mxu0 0.0
      %523 = vmatprep.subr.mxu0 0.0
      %524 = vmatpush1.msra.mxu0 0.0
      %525 = vmatprep.subr.mxu0 0.0
      %526 = vmatpush1.msra.mxu0 0.0
      %527 = vmatprep.subr.mxu0 0.0
      %528 = vmatpush1.msra.mxu0 0.0
      %529 = vmatprep.subr.mxu0 0.0
      %530 = vmatpush1.msra.mxu0 0.0
      %531 = vmatprep.subr.mxu0 0.0
      %532 = vmatpush1.msra.mxu0 0.0
      %533 = vmatprep.subr.mxu0 0.0
      %534 = vmatpush1.msra.mxu0 0.0
      %535 = vmatprep.subr.mxu0 0.0
      %536 = vmatpush1.msra.mxu0 0.0
      %537 = vmatprep.subr.mxu0 0.0
      %538 = vmatpush1.msra.mxu0 0.0
      %539 = vmatprep.subr.mxu0 0.0
      %540 = vmatpush1.msra.mxu0 0.0
      %541 = vmatprep.subr.mxu0 0.0
      %542 = vmatpush1.msra.mxu0 0.0
      %543 = vmatprep.subr.mxu0 0.0
      %544 = vmatpush1.msra.mxu0 0.0
      %545 = vmatprep.subr.mxu0 0.0
      %546 = vmatpush1.msra.mxu0 0.0
      %547 = vmatprep.subr.mxu0 0.0
      %548 = vmatpush1.msra.mxu0 0.0
      %549 = vmatprep.subr.mxu0 0.0
      %550 = vmatpush1.msra.mxu0 0.0
      %551 = vmatprep.subr.mxu0 0.0
      %552 = vmatpush1.msra.mxu0 0.0
      %553 = vmatprep.subr.mxu0 0.0
      %554 = vmatpush1.msra.mxu0 0.0
      %555 = vmatprep.subr.mxu0 0.0
      %556 = vmatpush1.msra.mxu0 0.0
      %557 = vmatprep.subr.mxu0 0.0
      %558 = vmatpush1.msra.mxu0 0.0
      %559 = vmatprep.subr.mxu0 0.0
      %560 = vmatpush1.msra.mxu0 0.0
      %561 = vmatprep.mubr.f32.mxu0 0.0
      %562 = vmatmul.mubr.f32.gmra.mrb[0].mxu0 %v495
      %v563 = vpop.f32.mrb[0].mxu0
      %v564 = vadd.f32 %v406, %v563
      %v565 = vpop.f32.mrb[0].mxu0
      %v566 = vadd.f32 %v408, %v565
      %567 = vdwg.mxu0
      %568 = vmatprep.subr.mxu0 0.0
      %569 = vmatpush1.msra.mxu0 %v490
      %570 = vmatprep.subr.mxu0 0.0
      %571 = vmatpush1.msra.mxu0 0.0
      %572 = vmatprep.subr.mxu0 0.0
      %573 = vmatpush1.msra.mxu0 0.0
      %574 = vmatprep.subr.mxu0 0.0
      %575 = vmatpush1.msra.mxu0 0.0
      %576 = vmatprep.subr.mxu0 0.0
      %577 = vmatpush1.msra.mxu0 0.0
      %578 = vmatprep.subr.mxu0 0.0
      %579 = vmatpush1.msra.mxu0 0.0
      %580 = vmatprep.subr.mxu0 0.0
      %581 = vmatpush1.msra.mxu0 0.0
      %582 = vmatprep.subr.mxu0 0.0
      %583 = vmatpush1.msra.mxu0 0.0
      %584 = vmatprep.subr.mxu0 0.0
      %585 = vmatpush1.msra.mxu0 0.0
      %586 = vmatprep.subr.mxu0 0.0
      %587 = vmatpush1.msra.mxu0 0.0
      %588 = vmatprep.subr.mxu0 0.0
      %589 = vmatpush1.msra.mxu0 0.0
      %590 = vmatprep.subr.mxu0 0.0
      %591 = vmatpush1.msra.mxu0 0.0
      %592 = vmatprep.subr.mxu0 0.0
      %593 = vmatpush1.msra.mxu0 0.0
      %594 = vmatprep.subr.mxu0 0.0
      %595 = vmatpush1.msra.mxu0 0.0
      %596 = vmatprep.subr.mxu0 0.0
      %597 = vmatpush1.msra.mxu0 0.0
      %598 = vmatprep.subr.mxu0 0.0
      %599 = vmatpush1.msra.mxu0 0.0
      %600 = vmatprep.subr.mxu0 0.0
      %601 = vmatpush1.msra.mxu0 0.0
      %602 = vmatprep.subr.mxu0 0.0
      %603 = vmatpush1.msra.mxu0 0.0
      %604 = vmatprep.subr.mxu0 0.0
      %605 = vmatpush1.msra.mxu0 0.0
      %606 = vmatprep.subr.mxu0 0.0
      %607 = vmatpush1.msra.mxu0 0.0
      %608 = vmatprep.subr.mxu0 0.0
      %609 = vmatpush1.msra.mxu0 0.0
      %610 = vmatprep.subr.mxu0 0.0
      %611 = vmatpush1.msra.mxu0 0.0
      %612 = vmatprep.subr.mxu0 0.0
      %613 = vmatpush1.msra.mxu0 0.0
      %614 = vmatprep.subr.mxu0 0.0
      %615 = vmatpush1.msra.mxu0 0.0
      %616 = vmatprep.subr.mxu0 0.0
      %617 = vmatpush1.msra.mxu0 0.0
      %618 = vmatprep.subr.mxu0 0.0
      %619 = vmatpush1.msra.mxu0 0.0
      %620 = vmatprep.subr.mxu0 0.0
      %621 = vmatpush1.msra.mxu0 0.0
      %622 = vmatprep.subr.mxu0 0.0
      %623 = vmatpush1.msra.mxu0 0.0
      %624 = vmatprep.subr.mxu0 0.0
      %625 = vmatpush1.msra.mxu0 0.0
      %626 = vmatprep.subr.mxu0 0.0
      %627 = vmatpush1.msra.mxu0 0.0
      %628 = vmatprep.subr.mxu0 0.0
      %629 = vmatpush1.msra.mxu0 0.0
      %630 = vmatprep.subr.mxu0 0.0
      %631 = vmatpush1.msra.mxu0 0.0
      %632 = vmatprep.mubr.f32.mxu0 0.0
      %633 = vmatmul.mubr.f32.gmra.mrb[0].mxu0 %v495
      %v634 = vpop.f32.mrb[0].mxu0
      %v635 = vadd.f32 %v477, %v634
      %v636 = vpop.f32.mrb[0].mxu0
      %637 = vdwg.mxu0
      %s638 = scalar_lea.vmem %s2, 16
      %v639 = vld [vmem:[%s638] sm:$0xff]
      %640 = vrot.lane.b32.xlu0 %v310, 17
      %v641 = vpop.permute.xlu0 %640
      %642 = vrot.lane.b32.xlu0 %v311, 17
      %v643 = vpop.permute.xlu0 %642
      %644 = vrot.lane.b32.xlu0 %v312, 17
      %v645 = vpop.permute.xlu0 %644
      %646 = vrot.lane.b32.xlu0 %v313, 17
      %v647 = vpop.permute.xlu0 %646
      %vm648 = vcmask 138240
      %v649 = vsel %vm648, %v641, %v643
      %v650 = vsel %vm648, %v643, %v645
      %v651 = vsel %vm648, %v645, %v647
      %v656 = vsel %vm335, %v639, 0
      %658 = vmatprep.subr.mxu0 %v650
      %659 = vmatpush1.msra.mxu0 %v649
      %660 = vmatprep.subr.mxu0 0.0
      %661 = vmatpush1.msra.mxu0 0.0
      %662 = vmatprep.subr.mxu0 0.0
      %663 = vmatpush1.msra.mxu0 0.0
      %664 = vmatprep.subr.mxu0 0.0
      %665 = vmatpush1.msra.mxu0 0.0
      %666 = vmatprep.subr.mxu0 0.0
      %667 = vmatpush1.msra.mxu0 0.0
      %668 = vmatprep.subr.mxu0 0.0
      %669 = vmatpush1.msra.mxu0 0.0
      %670 = vmatprep.subr.mxu0 0.0
      %671 = vmatpush1.msra.mxu0 0.0
      %672 = vmatprep.subr.mxu0 0.0
      %673 = vmatpush1.msra.mxu0 0.0
      %674 = vmatprep.subr.mxu0 0.0
      %675 = vmatpush1.msra.mxu0 0.0
      %676 = vmatprep.subr.mxu0 0.0
      %677 = vmatpush1.msra.mxu0 0.0
      %678 = vmatprep.subr.mxu0 0.0
      %679 = vmatpush1.msra.mxu0 0.0
      %680 = vmatprep.subr.mxu0 0.0
      %681 = vmatpush1.msra.mxu0 0.0
      %682 = vmatprep.subr.mxu0 0.0
      %683 = vmatpush1.msra.mxu0 0.0
      %684 = vmatprep.subr.mxu0 0.0
      %685 = vmatpush1.msra.mxu0 0.0
      %686 = vmatprep.subr.mxu0 0.0
      %687 = vmatpush1.msra.mxu0 0.0
      %688 = vmatprep.subr.mxu0 0.0
      %689 = vmatpush1.msra.mxu0 0.0
      %690 = vmatprep.subr.mxu0 0.0
      %691 = vmatpush1.msra.mxu0 0.0
      %692 = vmatprep.subr.mxu0 0.0
      %693 = vmatpush1.msra.mxu0 0.0
      %694 = vmatprep.subr.mxu0 0.0
      %695 = vmatpush1.msra.mxu0 0.0
      %696 = vmatprep.subr.mxu0 0.0
      %697 = vmatpush1.msra.mxu0 0.0
      %698 = vmatprep.subr.mxu0 0.0
      %699 = vmatpush1.msra.mxu0 0.0
      %700 = vmatprep.subr.mxu0 0.0
      %701 = vmatpush1.msra.mxu0 0.0
      %702 = vmatprep.subr.mxu0 0.0
      %703 = vmatpush1.msra.mxu0 0.0
      %704 = vmatprep.subr.mxu0 0.0
      %705 = vmatpush1.msra.mxu0 0.0
      %706 = vmatprep.subr.mxu0 0.0
      %707 = vmatpush1.msra.mxu0 0.0
      %708 = vmatprep.subr.mxu0 0.0
      %709 = vmatpush1.msra.mxu0 0.0
      %710 = vmatprep.subr.mxu0 0.0
      %711 = vmatpush1.msra.mxu0 0.0
      %712 = vmatprep.subr.mxu0 0.0
      %713 = vmatpush1.msra.mxu0 0.0
      %714 = vmatprep.subr.mxu0 0.0
      %715 = vmatpush1.msra.mxu0 0.0
      %716 = vmatprep.subr.mxu0 0.0
      %717 = vmatpush1.msra.mxu0 0.0
      %718 = vmatprep.subr.mxu0 0.0
      %719 = vmatpush1.msra.mxu0 0.0
      %720 = vmatprep.subr.mxu0 0.0
      %721 = vmatpush1.msra.mxu0 0.0
      %722 = vmatprep.mubr.f32.mxu0 0.0
      %723 = vmatmul.mubr.f32.gmra.mrb[0].mxu0 %v656
      %v724 = vpop.f32.mrb[0].mxu0
      %v725 = vadd.f32 0.0, %v724
      %v726 = vpop.f32.mrb[0].mxu0
      %v727 = vadd.f32 0.0, %v726
      %728 = vdwg.mxu0
      %729 = vmatprep.subr.mxu0 0.0
      %730 = vmatpush1.msra.mxu0 %v651
      %731 = vmatprep.subr.mxu0 0.0
      %732 = vmatpush1.msra.mxu0 0.0
      %733 = vmatprep.subr.mxu0 0.0
      %734 = vmatpush1.msra.mxu0 0.0
      %735 = vmatprep.subr.mxu0 0.0
      %736 = vmatpush1.msra.mxu0 0.0
      %737 = vmatprep.subr.mxu0 0.0
      %738 = vmatpush1.msra.mxu0 0.0
      %739 = vmatprep.subr.mxu0 0.0
      %740 = vmatpush1.msra.mxu0 0.0
      %741 = vmatprep.subr.mxu0 0.0
      %742 = vmatpush1.msra.mxu0 0.0
      %743 = vmatprep.subr.mxu0 0.0
      %744 = vmatpush1.msra.mxu0 0.0
      %745 = vmatprep.subr.mxu0 0.0
      %746 = vmatpush1.msra.mxu0 0.0
      %747 = vmatprep.subr.mxu0 0.0
      %748 = vmatpush1.msra.mxu0 0.0
      %749 = vmatprep.subr.mxu0 0.0
      %750 = vmatpush1.msra.mxu0 0.0
      %751 = vmatprep.subr.mxu0 0.0
      %752 = vmatpush1.msra.mxu0 0.0
      %753 = vmatprep.subr.mxu0 0.0
      %754 = vmatpush1.msra.mxu0 0.0
      %755 = vmatprep.subr.mxu0 0.0
      %756 = vmatpush1.msra.mxu0 0.0
      %757 = vmatprep.subr.mxu0 0.0
      %758 = vmatpush1.msra.mxu0 0.0
      %759 = vmatprep.subr.mxu0 0.0
      %760 = vmatpush1.msra.mxu0 0.0
      %761 = vmatprep.subr.mxu0 0.0
      %762 = vmatpush1.msra.mxu0 0.0
      %763 = vmatprep.subr.mxu0 0.0
      %764 = vmatpush1.msra.mxu0 0.0
      %765 = vmatprep.subr.mxu0 0.0
      %766 = vmatpush1.msra.mxu0 0.0
      %767 = vmatprep.subr.mxu0 0.0
      %768 = vmatpush1.msra.mxu0 0.0
      %769 = vmatprep.subr.mxu0 0.0
      %770 = vmatpush1.msra.mxu0 0.0
      %771 = vmatprep.subr.mxu0 0.0
      %772 = vmatpush1.msra.mxu0 0.0
      %773 = vmatprep.subr.mxu0 0.0
      %774 = vmatpush1.msra.mxu0 0.0
      %775 = vmatprep.subr.mxu0 0.0
      %776 = vmatpush1.msra.mxu0 0.0
      %777 = vmatprep.subr.mxu0 0.0
      %778 = vmatpush1.msra.mxu0 0.0
      %779 = vmatprep.subr.mxu0 0.0
      %780 = vmatpush1.msra.mxu0 0.0
      %781 = vmatprep.subr.mxu0 0.0
      %782 = vmatpush1.msra.mxu0 0.0
      %783 = vmatprep.subr.mxu0 0.0
      %784 = vmatpush1.msra.mxu0 0.0
      %785 = vmatprep.subr.mxu0 0.0
      %786 = vmatpush1.msra.mxu0 0.0
      %787 = vmatprep.subr.mxu0 0.0
      %788 = vmatpush1.msra.mxu0 0.0
      %789 = vmatprep.subr.mxu0 0.0
      %790 = vmatpush1.msra.mxu0 0.0
      %791 = vmatprep.subr.mxu0 0.0
      %792 = vmatpush1.msra.mxu0 0.0
      %793 = vmatprep.mubr.f32.mxu0 0.0
      %794 = vmatmul.mubr.f32.gmra.mrb[0].mxu0 %v656
      %v795 = vpop.f32.mrb[0].mxu0
      %v796 = vadd.f32 0.0, %v795
      %v797 = vpop.f32.mrb[0].mxu0
      %798 = vdwg.mxu0
      %v799 = vadd.f32 %v564, %v725
      %v800 = vadd.f32 %v566, %v727
      %v801 = vadd.f32 %v635, %v796
      %s802 = scalar_lea.vmem %s2, 24
      %v803 = vld [vmem:[%s802] sm:$0xff]
      %804 = vrot.lane.b32.xlu0 %v310, 1
      %v805 = vpop.permute.xlu0 %804
      %806 = vrot.lane.b32.xlu0 %v311, 1
      %v807 = vpop.permute.xlu0 %806
      %808 = vrot.lane.b32.xlu0 %v312, 1
      %v809 = vpop.permute.xlu0 %808
      %810 = vrot.lane.b32.xlu0 %v313, 1
      %v811 = vpop.permute.xlu0 %810
      %vm812 = vcmask 7168
      %v813 = vsel %vm812, %v805, %v807
      %v814 = vsel %vm812, %v807, %v809
      %v815 = vsel %vm812, %v809, %v811
      %v820 = vsel %vm335, %v803, 0
      %822 = vmatprep.subr.mxu0 %v814
      %823 = vmatpush1.msra.mxu0 %v813
      %824 = vmatprep.subr.mxu0 0.0
      %825 = vmatpush1.msra.mxu0 0.0
      %826 = vmatprep.subr.mxu0 0.0
      %827 = vmatpush1.msra.mxu0 0.0
      %828 = vmatprep.subr.mxu0 0.0
      %829 = vmatpush1.msra.mxu0 0.0
      %830 = vmatprep.subr.mxu0 0.0
      %831 = vmatpush1.msra.mxu0 0.0
      %832 = vmatprep.subr.mxu0 0.0
      %833 = vmatpush1.msra.mxu0 0.0
      %834 = vmatprep.subr.mxu0 0.0
      %835 = vmatpush1.msra.mxu0 0.0
      %836 = vmatprep.subr.mxu0 0.0
      %837 = vmatpush1.msra.mxu0 0.0
      %838 = vmatprep.subr.mxu0 0.0
      %839 = vmatpush1.msra.mxu0 0.0
      %840 = vmatprep.subr.mxu0 0.0
      %841 = vmatpush1.msra.mxu0 0.0
      %842 = vmatprep.subr.mxu0 0.0
      %843 = vmatpush1.msra.mxu0 0.0
      %844 = vmatprep.subr.mxu0 0.0
      %845 = vmatpush1.msra.mxu0 0.0
      %846 = vmatprep.subr.mxu0 0.0
      %847 = vmatpush1.msra.mxu0 0.0
      %848 = vmatprep.subr.mxu0 0.0
      %849 = vmatpush1.msra.mxu0 0.0
      %850 = vmatprep.subr.mxu0 0.0
      %851 = vmatpush1.msra.mxu0 0.0
      %852 = vmatprep.subr.mxu0 0.0
      %853 = vmatpush1.msra.mxu0 0.0
      %854 = vmatprep.subr.mxu0 0.0
      %855 = vmatpush1.msra.mxu0 0.0
      %856 = vmatprep.subr.mxu0 0.0
      %857 = vmatpush1.msra.mxu0 0.0
      %858 = vmatprep.subr.mxu0 0.0
      %859 = vmatpush1.msra.mxu0 0.0
      %860 = vmatprep.subr.mxu0 0.0
      %861 = vmatpush1.msra.mxu0 0.0
      %862 = vmatprep.subr.mxu0 0.0
      %863 = vmatpush1.msra.mxu0 0.0
      %864 = vmatprep.subr.mxu0 0.0
      %865 = vmatpush1.msra.mxu0 0.0
      %866 = vmatprep.subr.mxu0 0.0
      %867 = vmatpush1.msra.mxu0 0.0
      %868 = vmatprep.subr.mxu0 0.0
      %869 = vmatpush1.msra.mxu0 0.0
      %870 = vmatprep.subr.mxu0 0.0
      %871 = vmatpush1.msra.mxu0 0.0
      %872 = vmatprep.subr.mxu0 0.0
      %873 = vmatpush1.msra.mxu0 0.0
      %874 = vmatprep.subr.mxu0 0.0
      %875 = vmatpush1.msra.mxu0 0.0
      %876 = vmatprep.subr.mxu0 0.0
      %877 = vmatpush1.msra.mxu0 0.0
      %878 = vmatprep.subr.mxu0 0.0
      %879 = vmatpush1.msra.mxu0 0.0
      %880 = vmatprep.subr.mxu0 0.0
      %881 = vmatpush1.msra.mxu0 0.0
      %882 = vmatprep.subr.mxu0 0.0
      %883 = vmatpush1.msra.mxu0 0.0
      %884 = vmatprep.subr.mxu0 0.0
      %885 = vmatpush1.msra.mxu0 0.0
      %886 = vmatprep.mubr.f32.mxu0 0.0
      %887 = vmatmul.mubr.f32.gmra.mrb[0].mxu0 %v820
      %v888 = vpop.f32.mrb[0].mxu0
      %v889 = vadd.f32 0.0, %v888
      %v890 = vpop.f32.mrb[0].mxu0
      %v891 = vadd.f32 0.0, %v890
      %892 = vdwg.mxu0
      %893 = vmatprep.subr.mxu0 0.0
      %894 = vmatpush1.msra.mxu0 %v815
      %895 = vmatprep.subr.mxu0 0.0
      %896 = vmatpush1.msra.mxu0 0.0
      %897 = vmatprep.subr.mxu0 0.0
      %898 = vmatpush1.msra.mxu0 0.0
      %899 = vmatprep.subr.mxu0 0.0
      %900 = vmatpush1.msra.mxu0 0.0
      %901 = vmatprep.subr.mxu0 0.0
      %902 = vmatpush1.msra.mxu0 0.0
      %903 = vmatprep.subr.mxu0 0.0
      %904 = vmatpush1.msra.mxu0 0.0
      %905 = vmatprep.subr.mxu0 0.0
      %906 = vmatpush1.msra.mxu0 0.0
      %907 = vmatprep.subr.mxu0 0.0
      %908 = vmatpush1.msra.mxu0 0.0
      %909 = vmatprep.subr.mxu0 0.0
      %910 = vmatpush1.msra.mxu0 0.0
      %911 = vmatprep.subr.mxu0 0.0
      %912 = vmatpush1.msra.mxu0 0.0
      %913 = vmatprep.subr.mxu0 0.0
      %914 = vmatpush1.msra.mxu0 0.0
      %915 = vmatprep.subr.mxu0 0.0
      %916 = vmatpush1.msra.mxu0 0.0
      %917 = vmatprep.subr.mxu0 0.0
      %918 = vmatpush1.msra.mxu0 0.0
      %919 = vmatprep.subr.mxu0 0.0
      %920 = vmatpush1.msra.mxu0 0.0
      %921 = vmatprep.subr.mxu0 0.0
      %922 = vmatpush1.msra.mxu0 0.0
      %923 = vmatprep.subr.mxu0 0.0
      %924 = vmatpush1.msra.mxu0 0.0
      %925 = vmatprep.subr.mxu0 0.0
      %926 = vmatpush1.msra.mxu0 0.0
      %927 = vmatprep.subr.mxu0 0.0
      %928 = vmatpush1.msra.mxu0 0.0
      %929 = vmatprep.subr.mxu0 0.0
      %930 = vmatpush1.msra.mxu0 0.0
      %931 = vmatprep.subr.mxu0 0.0
      %932 = vmatpush1.msra.mxu0 0.0
      %933 = vmatprep.subr.mxu0 0.0
      %934 = vmatpush1.msra.mxu0 0.0
      %935 = vmatprep.subr.mxu0 0.0
      %936 = vmatpush1.msra.mxu0 0.0
      %937 = vmatprep.subr.mxu0 0.0
      %938 = vmatpush1.msra.mxu0 0.0
      %939 = vmatprep.subr.mxu0 0.0
      %940 = vmatpush1.msra.mxu0 0.0
      %941 = vmatprep.subr.mxu0 0.0
      %942 = vmatpush1.msra.mxu0 0.0
      %943 = vmatprep.subr.mxu0 0.0
      %944 = vmatpush1.msra.mxu0 0.0
      %945 = vmatprep.subr.mxu0 0.0
      %946 = vmatpush1.msra.mxu0 0.0
      %947 = vmatprep.subr.mxu0 0.0
      %948 = vmatpush1.msra.mxu0 0.0
      %949 = vmatprep.subr.mxu0 0.0
      %950 = vmatpush1.msra.mxu0 0.0
      %951 = vmatprep.subr.mxu0 0.0
      %952 = vmatpush1.msra.mxu0 0.0
      %953 = vmatprep.subr.mxu0 0.0
      %954 = vmatpush1.msra.mxu0 0.0
      %955 = vmatprep.subr.mxu0 0.0
      %956 = vmatpush1.msra.mxu0 0.0
      %957 = vmatprep.mubr.f32.mxu0 0.0
      %958 = vmatmul.mubr.f32.gmra.mrb[0].mxu0 %v820
      %v959 = vpop.f32.mrb[0].mxu0
      %v960 = vadd.f32 0.0, %v959
      %v961 = vpop.f32.mrb[0].mxu0
      %962 = vdwg.mxu0
      %v963 = vadd.f32 %v799, %v889
      %v964 = vadd.f32 %v800, %v891
      %v965 = vadd.f32 %v801, %v960
      %s966 = scalar_lea.vmem %s2, 32
      %v967 = vld [vmem:[%s966] sm:$0xff]
      %v969 = vsel %vm335, %v967, 0
      %971 = vmatprep.subr.mxu0 %v312
      %972 = vmatpush1.msra.mxu0 %v311
      %973 = vmatprep.subr.mxu0 0.0
      %974 = vmatpush1.msra.mxu0 0.0
      %975 = vmatprep.subr.mxu0 0.0
      %976 = vmatpush1.msra.mxu0 0.0
      %977 = vmatprep.subr.mxu0 0.0
      %978 = vmatpush1.msra.mxu0 0.0
      %979 = vmatprep.subr.mxu0 0.0
      %980 = vmatpush1.msra.mxu0 0.0
      %981 = vmatprep.subr.mxu0 0.0
      %982 = vmatpush1.msra.mxu0 0.0
      %983 = vmatprep.subr.mxu0 0.0
      %984 = vmatpush1.msra.mxu0 0.0
      %985 = vmatprep.subr.mxu0 0.0
      %986 = vmatpush1.msra.mxu0 0.0
      %987 = vmatprep.subr.mxu0 0.0
      %988 = vmatpush1.msra.mxu0 0.0
      %989 = vmatprep.subr.mxu0 0.0
      %990 = vmatpush1.msra.mxu0 0.0
      %991 = vmatprep.subr.mxu0 0.0
      %992 = vmatpush1.msra.mxu0 0.0
      %993 = vmatprep.subr.mxu0 0.0
      %994 = vmatpush1.msra.mxu0 0.0
      %995 = vmatprep.subr.mxu0 0.0
      %996 = vmatpush1.msra.mxu0 0.0
      %997 = vmatprep.subr.mxu0 0.0
      %998 = vmatpush1.msra.mxu0 0.0
      %999 = vmatprep.subr.mxu0 0.0
      %1000 = vmatpush1.msra.mxu0 0.0
      %1001 = vmatprep.subr.mxu0 0.0
      %1002 = vmatpush1.msra.mxu0 0.0
      %1003 = vmatprep.subr.mxu0 0.0
      %1004 = vmatpush1.msra.mxu0 0.0
      %1005 = vmatprep.subr.mxu0 0.0
      %1006 = vmatpush1.msra.mxu0 0.0
      %1007 = vmatprep.subr.mxu0 0.0
      %1008 = vmatpush1.msra.mxu0 0.0
      %1009 = vmatprep.subr.mxu0 0.0
      %1010 = vmatpush1.msra.mxu0 0.0
      %1011 = vmatprep.subr.mxu0 0.0
      %1012 = vmatpush1.msra.mxu0 0.0
      %1013 = vmatprep.subr.mxu0 0.0
      %1014 = vmatpush1.msra.mxu0 0.0
      %1015 = vmatprep.subr.mxu0 0.0
      %1016 = vmatpush1.msra.mxu0 0.0
      %1017 = vmatprep.subr.mxu0 0.0
      %1018 = vmatpush1.msra.mxu0 0.0
      %1019 = vmatprep.subr.mxu0 0.0
      %1020 = vmatpush1.msra.mxu0 0.0
      %1021 = vmatprep.subr.mxu0 0.0
      %1022 = vmatpush1.msra.mxu0 0.0
      %1023 = vmatprep.subr.mxu0 0.0
      %1024 = vmatpush1.msra.mxu0 0.0
      %1025 = vmatprep.subr.mxu0 0.0
      %1026 = vmatpush1.msra.mxu0 0.0
      %1027 = vmatprep.subr.mxu0 0.0
      %1028 = vmatpush1.msra.mxu0 0.0
      %1029 = vmatprep.subr.mxu0 0.0
      %1030 = vmatpush1.msra.mxu0 0.0
      %1031 = vmatprep.subr.mxu0 0.0
      %1032 = vmatpush1.msra.mxu0 0.0
      %1033 = vmatprep.subr.mxu0 0.0
      %1034 = vmatpush1.msra.mxu0 0.0
      %1035 = vmatprep.mubr.f32.mxu0 0.0
      %1036 = vmatmul.mubr.f32.gmra.mrb[0].mxu0 %v969
      %v1037 = vpop.f32.mrb[0].mxu0
      %v1038 = vadd.f32 0.0, %v1037
      %v1039 = vpop.f32.mrb[0].mxu0
      %v1040 = vadd.f32 0.0, %v1039
      %1041 = vdwg.mxu0
      %1042 = vmatprep.subr.mxu0 0.0
      %1043 = vmatpush1.msra.mxu0 %v313
      %1044 = vmatprep.subr.mxu0 0.0
      %1045 = vmatpush1.msra.mxu0 0.0
      %1046 = vmatprep.subr.mxu0 0.0
      %1047 = vmatpush1.msra.mxu0 0.0
      %1048 = vmatprep.subr.mxu0 0.0
      %1049 = vmatpush1.msra.mxu0 0.0
      %1050 = vmatprep.subr.mxu0 0.0
      %1051 = vmatpush1.msra.mxu0 0.0
      %1052 = vmatprep.subr.mxu0 0.0
      %1053 = vmatpush1.msra.mxu0 0.0
      %1054 = vmatprep.subr.mxu0 0.0
      %1055 = vmatpush1.msra.mxu0 0.0
      %1056 = vmatprep.subr.mxu0 0.0
      %1057 = vmatpush1.msra.mxu0 0.0
      %1058 = vmatprep.subr.mxu0 0.0
      %1059 = vmatpush1.msra.mxu0 0.0
      %1060 = vmatprep.subr.mxu0 0.0
      %1061 = vmatpush1.msra.mxu0 0.0
      %1062 = vmatprep.subr.mxu0 0.0
      %1063 = vmatpush1.msra.mxu0 0.0
      %1064 = vmatprep.subr.mxu0 0.0
      %1065 = vmatpush1.msra.mxu0 0.0
      %1066 = vmatprep.subr.mxu0 0.0
      %1067 = vmatpush1.msra.mxu0 0.0
      %1068 = vmatprep.subr.mxu0 0.0
      %1069 = vmatpush1.msra.mxu0 0.0
      %1070 = vmatprep.subr.mxu0 0.0
      %1071 = vmatpush1.msra.mxu0 0.0
      %1072 = vmatprep.subr.mxu0 0.0
      %1073 = vmatpush1.msra.mxu0 0.0
      %1074 = vmatprep.subr.mxu0 0.0
      %1075 = vmatpush1.msra.mxu0 0.0
      %1076 = vmatprep.subr.mxu0 0.0
      %1077 = vmatpush1.msra.mxu0 0.0
      %1078 = vmatprep.subr.mxu0 0.0
      %1079 = vmatpush1.msra.mxu0 0.0
      %1080 = vmatprep.subr.mxu0 0.0
      %1081 = vmatpush1.msra.mxu0 0.0
      %1082 = vmatprep.subr.mxu0 0.0
      %1083 = vmatpush1.msra.mxu0 0.0
      %1084 = vmatprep.subr.mxu0 0.0
      %1085 = vmatpush1.msra.mxu0 0.0
      %1086 = vmatprep.subr.mxu0 0.0
      %1087 = vmatpush1.msra.mxu0 0.0
      %1088 = vmatprep.subr.mxu0 0.0
      %1089 = vmatpush1.msra.mxu0 0.0
      %1090 = vmatprep.subr.mxu0 0.0
      %1091 = vmatpush1.msra.mxu0 0.0
      %1092 = vmatprep.subr.mxu0 0.0
      %1093 = vmatpush1.msra.mxu0 0.0
      %1094 = vmatprep.subr.mxu0 0.0
      %1095 = vmatpush1.msra.mxu0 0.0
      %1096 = vmatprep.subr.mxu0 0.0
      %1097 = vmatpush1.msra.mxu0 0.0
      %1098 = vmatprep.subr.mxu0 0.0
      %1099 = vmatpush1.msra.mxu0 0.0
      %1100 = vmatprep.subr.mxu0 0.0
      %1101 = vmatpush1.msra.mxu0 0.0
      %1102 = vmatprep.subr.mxu0 0.0
      %1103 = vmatpush1.msra.mxu0 0.0
      %1104 = vmatprep.subr.mxu0 0.0
      %1105 = vmatpush1.msra.mxu0 0.0
      %1106 = vmatprep.mubr.f32.mxu0 0.0
      %1107 = vmatmul.mubr.f32.gmra.mrb[0].mxu0 %v969
      %v1108 = vpop.f32.mrb[0].mxu0
      %v1109 = vadd.f32 0.0, %v1108
      %v1110 = vpop.f32.mrb[0].mxu0
      %1111 = vdwg.mxu0
      %v1112 = vadd.f32 %v963, %v1038
      %v1113 = vadd.f32 %v964, %v1040
      %v1114 = vadd.f32 %v965, %v1109
      %s1115 = scalar_lea.vmem %s2, 40
      %v1116 = vld [vmem:[%s1115] sm:$0xff]
      %v1117 = vld [vmem:[%s290 + $0x8] sm:$0xff]
      %v1118 = vld [vmem:[%s290 + $0x10] sm:$0xff]
      %v1119 = vld [vmem:[%s290 + $0x18] sm:$0xff]
      %v1120 = vld [vmem:[%s290 + $0x20] sm:$0xff]
      %1125 = vrot.lane.b32.xlu0 %v1117, 127
      %v1126 = vpop.permute.xlu0 %1125
      %1127 = vrot.lane.b32.xlu0 %v1118, 127
      %v1128 = vpop.permute.xlu0 %1127
      %1129 = vrot.lane.b32.xlu0 %v1119, 127
      %v1130 = vpop.permute.xlu0 %1129
      %1131 = vrot.lane.b32.xlu0 %v1120, 127
      %v1132 = vpop.permute.xlu0 %1131
      %vm1133 = vcmask 1039360
      %v1134 = vsel %vm1133, %v1126, %v1128
      %v1135 = vsel %vm1133, %v1128, %v1130
      %v1136 = vsel %vm1133, %v1130, %v1132
      %v1141 = vsel %vm335, %v1116, 0
      %1143 = vmatprep.subr.mxu0 %v1135
      %1144 = vmatpush1.msra.mxu0 %v1134
      %1145 = vmatprep.subr.mxu0 0.0
      %1146 = vmatpush1.msra.mxu0 0.0
      %1147 = vmatprep.subr.mxu0 0.0
      %1148 = vmatpush1.msra.mxu0 0.0
      %1149 = vmatprep.subr.mxu0 0.0
      %1150 = vmatpush1.msra.mxu0 0.0
      %1151 = vmatprep.subr.mxu0 0.0
      %1152 = vmatpush1.msra.mxu0 0.0
      %1153 = vmatprep.subr.mxu0 0.0
      %1154 = vmatpush1.msra.mxu0 0.0
      %1155 = vmatprep.subr.mxu0 0.0
      %1156 = vmatpush1.msra.mxu0 0.0
      %1157 = vmatprep.subr.mxu0 0.0
      %1158 = vmatpush1.msra.mxu0 0.0
      %1159 = vmatprep.subr.mxu0 0.0
      %1160 = vmatpush1.msra.mxu0 0.0
      %1161 = vmatprep.subr.mxu0 0.0
      %1162 = vmatpush1.msra.mxu0 0.0
      %1163 = vmatprep.subr.mxu0 0.0
      %1164 = vmatpush1.msra.mxu0 0.0
      %1165 = vmatprep.subr.mxu0 0.0
      %1166 = vmatpush1.msra.mxu0 0.0
      %1167 = vmatprep.subr.mxu0 0.0
      %1168 = vmatpush1.msra.mxu0 0.0
      %1169 = vmatprep.subr.mxu0 0.0
      %1170 = vmatpush1.msra.mxu0 0.0
      %1171 = vmatprep.subr.mxu0 0.0
      %1172 = vmatpush1.msra.mxu0 0.0
      %1173 = vmatprep.subr.mxu0 0.0
      %1174 = vmatpush1.msra.mxu0 0.0
      %1175 = vmatprep.subr.mxu0 0.0
      %1176 = vmatpush1.msra.mxu0 0.0
      %1177 = vmatprep.subr.mxu0 0.0
      %1178 = vmatpush1.msra.mxu0 0.0
      %1179 = vmatprep.subr.mxu0 0.0
      %1180 = vmatpush1.msra.mxu0 0.0
      %1181 = vmatprep.subr.mxu0 0.0
      %1182 = vmatpush1.msra.mxu0 0.0
      %1183 = vmatprep.subr.mxu0 0.0
      %1184 = vmatpush1.msra.mxu0 0.0
      %1185 = vmatprep.subr.mxu0 0.0
      %1186 = vmatpush1.msra.mxu0 0.0
      %1187 = vmatprep.subr.mxu0 0.0
      %1188 = vmatpush1.msra.mxu0 0.0
      %1189 = vmatprep.subr.mxu0 0.0
      %1190 = vmatpush1.msra.mxu0 0.0
      %1191 = vmatprep.subr.mxu0 0.0
      %1192 = vmatpush1.msra.mxu0 0.0
      %1193 = vmatprep.subr.mxu0 0.0
      %1194 = vmatpush1.msra.mxu0 0.0
      %1195 = vmatprep.subr.mxu0 0.0
      %1196 = vmatpush1.msra.mxu0 0.0
      %1197 = vmatprep.subr.mxu0 0.0
      %1198 = vmatpush1.msra.mxu0 0.0
      %1199 = vmatprep.subr.mxu0 0.0
      %1200 = vmatpush1.msra.mxu0 0.0
      %1201 = vmatprep.subr.mxu0 0.0
      %1202 = vmatpush1.msra.mxu0 0.0
      %1203 = vmatprep.subr.mxu0 0.0
      %1204 = vmatpush1.msra.mxu0 0.0
      %1205 = vmatprep.subr.mxu0 0.0
      %1206 = vmatpush1.msra.mxu0 0.0
      %1207 = vmatprep.mubr.f32.mxu0 0.0
      %1208 = vmatmul.mubr.f32.gmra.mrb[0].mxu0 %v1141
      %v1209 = vpop.f32.mrb[0].mxu0
      %v1210 = vadd.f32 0.0, %v1209
      %v1211 = vpop.f32.mrb[0].mxu0
      %v1212 = vadd.f32 0.0, %v1211
      %1213 = vdwg.mxu0
      %1214 = vmatprep.subr.mxu0 0.0
      %1215 = vmatpush1.msra.mxu0 %v1136
      %1216 = vmatprep.subr.mxu0 0.0
      %1217 = vmatpush1.msra.mxu0 0.0
      %1218 = vmatprep.subr.mxu0 0.0
      %1219 = vmatpush1.msra.mxu0 0.0
      %1220 = vmatprep.subr.mxu0 0.0
      %1221 = vmatpush1.msra.mxu0 0.0
      %1222 = vmatprep.subr.mxu0 0.0
      %1223 = vmatpush1.msra.mxu0 0.0
      %1224 = vmatprep.subr.mxu0 0.0
      %1225 = vmatpush1.msra.mxu0 0.0
      %1226 = vmatprep.subr.mxu0 0.0
      %1227 = vmatpush1.msra.mxu0 0.0
      %1228 = vmatprep.subr.mxu0 0.0
      %1229 = vmatpush1.msra.mxu0 0.0
      %1230 = vmatprep.subr.mxu0 0.0
      %1231 = vmatpush1.msra.mxu0 0.0
      %1232 = vmatprep.subr.mxu0 0.0
      %1233 = vmatpush1.msra.mxu0 0.0
      %1234 = vmatprep.subr.mxu0 0.0
      %1235 = vmatpush1.msra.mxu0 0.0
      %1236 = vmatprep.subr.mxu0 0.0
      %1237 = vmatpush1.msra.mxu0 0.0
      %1238 = vmatprep.subr.mxu0 0.0
      %1239 = vmatpush1.msra.mxu0 0.0
      %1240 = vmatprep.subr.mxu0 0.0
      %1241 = vmatpush1.msra.mxu0 0.0
      %1242 = vmatprep.subr.mxu0 0.0
      %1243 = vmatpush1.msra.mxu0 0.0
      %1244 = vmatprep.subr.mxu0 0.0
      %1245 = vmatpush1.msra.mxu0 0.0
      %1246 = vmatprep.subr.mxu0 0.0
      %1247 = vmatpush1.msra.mxu0 0.0
      %1248 = vmatprep.subr.mxu0 0.0
      %1249 = vmatpush1.msra.mxu0 0.0
      %1250 = vmatprep.subr.mxu0 0.0
      %1251 = vmatpush1.msra.mxu0 0.0
      %1252 = vmatprep.subr.mxu0 0.0
      %1253 = vmatpush1.msra.mxu0 0.0
      %1254 = vmatprep.subr.mxu0 0.0
      %1255 = vmatpush1.msra.mxu0 0.0
      %1256 = vmatprep.subr.mxu0 0.0
      %1257 = vmatpush1.msra.mxu0 0.0
      %1258 = vmatprep.subr.mxu0 0.0
      %1259 = vmatpush1.msra.mxu0 0.0
      %1260 = vmatprep.subr.mxu0 0.0
      %1261 = vmatpush1.msra.mxu0 0.0
      %1262 = vmatprep.subr.mxu0 0.0
      %1263 = vmatpush1.msra.mxu0 0.0
      %1264 = vmatprep.subr.mxu0 0.0
      %1265 = vmatpush1.msra.mxu0 0.0
      %1266 = vmatprep.subr.mxu0 0.0
      %1267 = vmatpush1.msra.mxu0 0.0
      %1268 = vmatprep.subr.mxu0 0.0
      %1269 = vmatpush1.msra.mxu0 0.0
      %1270 = vmatprep.subr.mxu0 0.0
      %1271 = vmatpush1.msra.mxu0 0.0
      %1272 = vmatprep.subr.mxu0 0.0
      %1273 = vmatpush1.msra.mxu0 0.0
      %1274 = vmatprep.subr.mxu0 0.0
      %1275 = vmatpush1.msra.mxu0 0.0
      %1276 = vmatprep.subr.mxu0 0.0
      %1277 = vmatpush1.msra.mxu0 0.0
      %1278 = vmatprep.mubr.f32.mxu0 0.0
      %1279 = vmatmul.mubr.f32.gmra.mrb[0].mxu0 %v1141
      %v1280 = vpop.f32.mrb[0].mxu0
      %v1281 = vadd.f32 0.0, %v1280
      %v1282 = vpop.f32.mrb[0].mxu0
      %1283 = vdwg.mxu0
      %v1284 = vadd.f32 %v1112, %v1210
      %v1285 = vadd.f32 %v1113, %v1212
      %v1286 = vadd.f32 %v1114, %v1281
      %s1287 = scalar_lea.vmem %s2, 48
      %v1288 = vld [vmem:[%s1287] sm:$0xff]
      %1289 = vrot.lane.b32.xlu0 %v1117, 111
      %v1290 = vpop.permute.xlu0 %1289
      %1291 = vrot.lane.b32.xlu0 %v1118, 111
      %v1292 = vpop.permute.xlu0 %1291
      %1293 = vrot.lane.b32.xlu0 %v1119, 111
      %v1294 = vpop.permute.xlu0 %1293
      %1295 = vrot.lane.b32.xlu0 %v1120, 111
      %v1296 = vpop.permute.xlu0 %1295
      %vm1297 = vcmask 908288
      %v1298 = vsel %vm1297, %v1290, %v1292
      %v1299 = vsel %vm1297, %v1292, %v1294
      %v1300 = vsel %vm1297, %v1294, %v1296
      %v1305 = vsel %vm335, %v1288, 0
      %1307 = vmatprep.subr.mxu0 %v1299
      %1308 = vmatpush1.msra.mxu0 %v1298
      %1309 = vmatprep.subr.mxu0 0.0
      %1310 = vmatpush1.msra.mxu0 0.0
      %1311 = vmatprep.subr.mxu0 0.0
      %1312 = vmatpush1.msra.mxu0 0.0
      %1313 = vmatprep.subr.mxu0 0.0
      %1314 = vmatpush1.msra.mxu0 0.0
      %1315 = vmatprep.subr.mxu0 0.0
      %1316 = vmatpush1.msra.mxu0 0.0
      %1317 = vmatprep.subr.mxu0 0.0
      %1318 = vmatpush1.msra.mxu0 0.0
      %1319 = vmatprep.subr.mxu0 0.0
      %1320 = vmatpush1.msra.mxu0 0.0
      %1321 = vmatprep.subr.mxu0 0.0
      %1322 = vmatpush1.msra.mxu0 0.0
      %1323 = vmatprep.subr.mxu0 0.0
      %1324 = vmatpush1.msra.mxu0 0.0
      %1325 = vmatprep.subr.mxu0 0.0
      %1326 = vmatpush1.msra.mxu0 0.0
      %1327 = vmatprep.subr.mxu0 0.0
      %1328 = vmatpush1.msra.mxu0 0.0
      %1329 = vmatprep.subr.mxu0 0.0
      %1330 = vmatpush1.msra.mxu0 0.0
      %1331 = vmatprep.subr.mxu0 0.0
      %1332 = vmatpush1.msra.mxu0 0.0
      %1333 = vmatprep.subr.mxu0 0.0
      %1334 = vmatpush1.msra.mxu0 0.0
      %1335 = vmatprep.subr.mxu0 0.0
      %1336 = vmatpush1.msra.mxu0 0.0
      %1337 = vmatprep.subr.mxu0 0.0
      %1338 = vmatpush1.msra.mxu0 0.0
      %1339 = vmatprep.subr.mxu0 0.0
      %1340 = vmatpush1.msra.mxu0 0.0
      %1341 = vmatprep.subr.mxu0 0.0
      %1342 = vmatpush1.msra.mxu0 0.0
      %1343 = vmatprep.subr.mxu0 0.0
      %1344 = vmatpush1.msra.mxu0 0.0
      %1345 = vmatprep.subr.mxu0 0.0
      %1346 = vmatpush1.msra.mxu0 0.0
      %1347 = vmatprep.subr.mxu0 0.0
      %1348 = vmatpush1.msra.mxu0 0.0
      %1349 = vmatprep.subr.mxu0 0.0
      %1350 = vmatpush1.msra.mxu0 0.0
      %1351 = vmatprep.subr.mxu0 0.0
      %1352 = vmatpush1.msra.mxu0 0.0
      %1353 = vmatprep.subr.mxu0 0.0
      %1354 = vmatpush1.msra.mxu0 0.0
      %1355 = vmatprep.subr.mxu0 0.0
      %1356 = vmatpush1.msra.mxu0 0.0
      %1357 = vmatprep.subr.mxu0 0.0
      %1358 = vmatpush1.msra.mxu0 0.0
      %1359 = vmatprep.subr.mxu0 0.0
      %1360 = vmatpush1.msra.mxu0 0.0
      %1361 = vmatprep.subr.mxu0 0.0
      %1362 = vmatpush1.msra.mxu0 0.0
      %1363 = vmatprep.subr.mxu0 0.0
      %1364 = vmatpush1.msra.mxu0 0.0
      %1365 = vmatprep.subr.mxu0 0.0
      %1366 = vmatpush1.msra.mxu0 0.0
      %1367 = vmatprep.subr.mxu0 0.0
      %1368 = vmatpush1.msra.mxu0 0.0
      %1369 = vmatprep.subr.mxu0 0.0
      %1370 = vmatpush1.msra.mxu0 0.0
      %1371 = vmatprep.mubr.f32.mxu0 0.0
      %1372 = vmatmul.mubr.f32.gmra.mrb[0].mxu0 %v1305
      %v1373 = vpop.f32.mrb[0].mxu0
      %v1374 = vadd.f32 0.0, %v1373
      %v1375 = vpop.f32.mrb[0].mxu0
      %v1376 = vadd.f32 0.0, %v1375
      %1377 = vdwg.mxu0
      %1378 = vmatprep.subr.mxu0 0.0
      %1379 = vmatpush1.msra.mxu0 %v1300
      %1380 = vmatprep.subr.mxu0 0.0
      %1381 = vmatpush1.msra.mxu0 0.0
      %1382 = vmatprep.subr.mxu0 0.0
      %1383 = vmatpush1.msra.mxu0 0.0
      %1384 = vmatprep.subr.mxu0 0.0
      %1385 = vmatpush1.msra.mxu0 0.0
      %1386 = vmatprep.subr.mxu0 0.0
      %1387 = vmatpush1.msra.mxu0 0.0
      %1388 = vmatprep.subr.mxu0 0.0
      %1389 = vmatpush1.msra.mxu0 0.0
      %1390 = vmatprep.subr.mxu0 0.0
      %1391 = vmatpush1.msra.mxu0 0.0
      %1392 = vmatprep.subr.mxu0 0.0
      %1393 = vmatpush1.msra.mxu0 0.0
      %1394 = vmatprep.subr.mxu0 0.0
      %1395 = vmatpush1.msra.mxu0 0.0
      %1396 = vmatprep.subr.mxu0 0.0
      %1397 = vmatpush1.msra.mxu0 0.0
      %1398 = vmatprep.subr.mxu0 0.0
      %1399 = vmatpush1.msra.mxu0 0.0
      %1400 = vmatprep.subr.mxu0 0.0
      %1401 = vmatpush1.msra.mxu0 0.0
      %1402 = vmatprep.subr.mxu0 0.0
      %1403 = vmatpush1.msra.mxu0 0.0
      %1404 = vmatprep.subr.mxu0 0.0
      %1405 = vmatpush1.msra.mxu0 0.0
      %1406 = vmatprep.subr.mxu0 0.0
      %1407 = vmatpush1.msra.mxu0 0.0
      %1408 = vmatprep.subr.mxu0 0.0
      %1409 = vmatpush1.msra.mxu0 0.0
      %1410 = vmatprep.subr.mxu0 0.0
      %1411 = vmatpush1.msra.mxu0 0.0
      %1412 = vmatprep.subr.mxu0 0.0
      %1413 = vmatpush1.msra.mxu0 0.0
      %1414 = vmatprep.subr.mxu0 0.0
      %1415 = vmatpush1.msra.mxu0 0.0
      %1416 = vmatprep.subr.mxu0 0.0
      %1417 = vmatpush1.msra.mxu0 0.0
      %1418 = vmatprep.subr.mxu0 0.0
      %1419 = vmatpush1.msra.mxu0 0.0
      %1420 = vmatprep.subr.mxu0 0.0
      %1421 = vmatpush1.msra.mxu0 0.0
      %1422 = vmatprep.subr.mxu0 0.0
      %1423 = vmatpush1.msra.mxu0 0.0
      %1424 = vmatprep.subr.mxu0 0.0
      %1425 = vmatpush1.msra.mxu0 0.0
      %1426 = vmatprep.subr.mxu0 0.0
      %1427 = vmatpush1.msra.mxu0 0.0
      %1428 = vmatprep.subr.mxu0 0.0
      %1429 = vmatpush1.msra.mxu0 0.0
      %1430 = vmatprep.subr.mxu0 0.0
      %1431 = vmatpush1.msra.mxu0 0.0
      %1432 = vmatprep.subr.mxu0 0.0
      %1433 = vmatpush1.msra.mxu0 0.0
      %1434 = vmatprep.subr.mxu0 0.0
      %1435 = vmatpush1.msra.mxu0 0.0
      %1436 = vmatprep.subr.mxu0 0.0
      %1437 = vmatpush1.msra.mxu0 0.0
      %1438 = vmatprep.subr.mxu0 0.0
      %1439 = vmatpush1.msra.mxu0 0.0
      %1440 = vmatprep.subr.mxu0 0.0
      %1441 = vmatpush1.msra.mxu0 0.0
      %1442 = vmatprep.mubr.f32.mxu0 0.0
      %1443 = vmatmul.mubr.f32.gmra.mrb[0].mxu0 %v1305
      %v1444 = vpop.f32.mrb[0].mxu0
      %v1445 = vadd.f32 0.0, %v1444
      %v1446 = vpop.f32.mrb[0].mxu0
      %1447 = vdwg.mxu0
      %v1448 = vadd.f32 %v1284, %v1374
      %v1449 = vadd.f32 %v1285, %v1376
      %v1450 = vadd.f32 %v1286, %v1445
      %s1451 = scalar_lea.vmem %s2, 56
      %v1452 = vld [vmem:[%s1451] sm:$0xff]
      %1453 = vrot.lane.b32.xlu0 %v1117, 110
      %v1454 = vpop.permute.xlu0 %1453
      %1455 = vrot.lane.b32.xlu0 %v1118, 110
      %v1456 = vpop.permute.xlu0 %1455
      %1457 = vrot.lane.b32.xlu0 %v1119, 110
      %v1458 = vpop.permute.xlu0 %1457
      %1459 = vrot.lane.b32.xlu0 %v1120, 110
      %v1460 = vpop.permute.xlu0 %1459
      %vm1461 = vcmask 900096
      %v1462 = vsel %vm1461, %v1454, %v1456
      %v1463 = vsel %vm1461, %v1456, %v1458
      %v1464 = vsel %vm1461, %v1458, %v1460
      %v1469 = vsel %vm335, %v1452, 0
      %1471 = vmatprep.subr.mxu0 %v1463
      %1472 = vmatpush1.msra.mxu0 %v1462
      %1473 = vmatprep.subr.mxu0 0.0
      %1474 = vmatpush1.msra.mxu0 0.0
      %1475 = vmatprep.subr.mxu0 0.0
      %1476 = vmatpush1.msra.mxu0 0.0
      %1477 = vmatprep.subr.mxu0 0.0
      %1478 = vmatpush1.msra.mxu0 0.0
      %1479 = vmatprep.subr.mxu0 0.0
      %1480 = vmatpush1.msra.mxu0 0.0
      %1481 = vmatprep.subr.mxu0 0.0
      %1482 = vmatpush1.msra.mxu0 0.0
      %1483 = vmatprep.subr.mxu0 0.0
      %1484 = vmatpush1.msra.mxu0 0.0
      %1485 = vmatprep.subr.mxu0 0.0
      %1486 = vmatpush1.msra.mxu0 0.0
      %1487 = vmatprep.subr.mxu0 0.0
      %1488 = vmatpush1.msra.mxu0 0.0
      %1489 = vmatprep.subr.mxu0 0.0
      %1490 = vmatpush1.msra.mxu0 0.0
      %1491 = vmatprep.subr.mxu0 0.0
      %1492 = vmatpush1.msra.mxu0 0.0
      %1493 = vmatprep.subr.mxu0 0.0
      %1494 = vmatpush1.msra.mxu0 0.0
      %1495 = vmatprep.subr.mxu0 0.0
      %1496 = vmatpush1.msra.mxu0 0.0
      %1497 = vmatprep.subr.mxu0 0.0
      %1498 = vmatpush1.msra.mxu0 0.0
      %1499 = vmatprep.subr.mxu0 0.0
      %1500 = vmatpush1.msra.mxu0 0.0
      %1501 = vmatprep.subr.mxu0 0.0
      %1502 = vmatpush1.msra.mxu0 0.0
      %1503 = vmatprep.subr.mxu0 0.0
      %1504 = vmatpush1.msra.mxu0 0.0
      %1505 = vmatprep.subr.mxu0 0.0
      %1506 = vmatpush1.msra.mxu0 0.0
      %1507 = vmatprep.subr.mxu0 0.0
      %1508 = vmatpush1.msra.mxu0 0.0
      %1509 = vmatprep.subr.mxu0 0.0
      %1510 = vmatpush1.msra.mxu0 0.0
      %1511 = vmatprep.subr.mxu0 0.0
      %1512 = vmatpush1.msra.mxu0 0.0
      %1513 = vmatprep.subr.mxu0 0.0
      %1514 = vmatpush1.msra.mxu0 0.0
      %1515 = vmatprep.subr.mxu0 0.0
      %1516 = vmatpush1.msra.mxu0 0.0
      %1517 = vmatprep.subr.mxu0 0.0
      %1518 = vmatpush1.msra.mxu0 0.0
      %1519 = vmatprep.subr.mxu0 0.0
      %1520 = vmatpush1.msra.mxu0 0.0
      %1521 = vmatprep.subr.mxu0 0.0
      %1522 = vmatpush1.msra.mxu0 0.0
      %1523 = vmatprep.subr.mxu0 0.0
      %1524 = vmatpush1.msra.mxu0 0.0
      %1525 = vmatprep.subr.mxu0 0.0
      %1526 = vmatpush1.msra.mxu0 0.0
      %1527 = vmatprep.subr.mxu0 0.0
      %1528 = vmatpush1.msra.mxu0 0.0
      %1529 = vmatprep.subr.mxu0 0.0
      %1530 = vmatpush1.msra.mxu0 0.0
      %1531 = vmatprep.subr.mxu0 0.0
      %1532 = vmatpush1.msra.mxu0 0.0
      %1533 = vmatprep.subr.mxu0 0.0
      %1534 = vmatpush1.msra.mxu0 0.0
      %1535 = vmatprep.mubr.f32.mxu0 0.0
      %1536 = vmatmul.mubr.f32.gmra.mrb[0].mxu0 %v1469
      %v1537 = vpop.f32.mrb[0].mxu0
      %v1538 = vadd.f32 0.0, %v1537
      %v1539 = vpop.f32.mrb[0].mxu0
      %v1540 = vadd.f32 0.0, %v1539
      %1541 = vdwg.mxu0
      %1542 = vmatprep.subr.mxu0 0.0
      %1543 = vmatpush1.msra.mxu0 %v1464
      %1544 = vmatprep.subr.mxu0 0.0
      %1545 = vmatpush1.msra.mxu0 0.0
      %1546 = vmatprep.subr.mxu0 0.0
      %1547 = vmatpush1.msra.mxu0 0.0
      %1548 = vmatprep.subr.mxu0 0.0
      %1549 = vmatpush1.msra.mxu0 0.0
      %1550 = vmatprep.subr.mxu0 0.0
      %1551 = vmatpush1.msra.mxu0 0.0
      %1552 = vmatprep.subr.mxu0 0.0
      %1553 = vmatpush1.msra.mxu0 0.0
      %1554 = vmatprep.subr.mxu0 0.0
      %1555 = vmatpush1.msra.mxu0 0.0
      %1556 = vmatprep.subr.mxu0 0.0
      %1557 = vmatpush1.msra.mxu0 0.0
      %1558 = vmatprep.subr.mxu0 0.0
      %1559 = vmatpush1.msra.mxu0 0.0
      %1560 = vmatprep.subr.mxu0 0.0
      %1561 = vmatpush1.msra.mxu0 0.0
      %1562 = vmatprep.subr.mxu0 0.0
      %1563 = vmatpush1.msra.mxu0 0.0
      %1564 = vmatprep.subr.mxu0 0.0
      %1565 = vmatpush1.msra.mxu0 0.0
      %1566 = vmatprep.subr.mxu0 0.0
      %1567 = vmatpush1.msra.mxu0 0.0
      %1568 = vmatprep.subr.mxu0 0.0
      %1569 = vmatpush1.msra.mxu0 0.0
      %1570 = vmatprep.subr.mxu0 0.0
      %1571 = vmatpush1.msra.mxu0 0.0
      %1572 = vmatprep.subr.mxu0 0.0
      %1573 = vmatpush1.msra.mxu0 0.0
      %1574 = vmatprep.subr.mxu0 0.0
      %1575 = vmatpush1.msra.mxu0 0.0
      %1576 = vmatprep.subr.mxu0 0.0
      %1577 = vmatpush1.msra.mxu0 0.0
      %1578 = vmatprep.subr.mxu0 0.0
      %1579 = vmatpush1.msra.mxu0 0.0
      %1580 = vmatprep.subr.mxu0 0.0
      %1581 = vmatpush1.msra.mxu0 0.0
      %1582 = vmatprep.subr.mxu0 0.0
      %1583 = vmatpush1.msra.mxu0 0.0
      %1584 = vmatprep.subr.mxu0 0.0
      %1585 = vmatpush1.msra.mxu0 0.0
      %1586 = vmatprep.subr.mxu0 0.0
      %1587 = vmatpush1.msra.mxu0 0.0
      %1588 = vmatprep.subr.mxu0 0.0
      %1589 = vmatpush1.msra.mxu0 0.0
      %1590 = vmatprep.subr.mxu0 0.0
      %1591 = vmatpush1.msra.mxu0 0.0
      %1592 = vmatprep.subr.mxu0 0.0
      %1593 = vmatpush1.msra.mxu0 0.0
      %1594 = vmatprep.subr.mxu0 0.0
      %1595 = vmatpush1.msra.mxu0 0.0
      %1596 = vmatprep.subr.mxu0 0.0
      %1597 = vmatpush1.msra.mxu0 0.0
      %1598 = vmatprep.subr.mxu0 0.0
      %1599 = vmatpush1.msra.mxu0 0.0
      %1600 = vmatprep.subr.mxu0 0.0
      %1601 = vmatpush1.msra.mxu0 0.0
      %1602 = vmatprep.subr.mxu0 0.0
      %1603 = vmatpush1.msra.mxu0 0.0
      %1604 = vmatprep.subr.mxu0 0.0
      %1605 = vmatpush1.msra.mxu0 0.0
      %1606 = vmatprep.mubr.f32.mxu0 0.0
      %1607 = vmatmul.mubr.f32.gmra.mrb[0].mxu0 %v1469
      %v1608 = vpop.f32.mrb[0].mxu0
      %v1609 = vadd.f32 0.0, %v1608
      %v1610 = vpop.f32.mrb[0].mxu0
      %1611 = vdwg.mxu0
      %v1612 = vadd.f32 %v1448, %v1538
      %v1613 = vadd.f32 %v1449, %v1540
      %v1614 = vadd.f32 %v1450, %v1609
      %s1615 = scalar_lea.vmem %s2, 64
      %v1616 = vld [vmem:[%s1615] sm:$0xff]
      %1617 = vrot.lane.b32.xlu0 %v1117, 109
      %v1618 = vpop.permute.xlu0 %1617
      %1619 = vrot.lane.b32.xlu0 %v1118, 109
      %v1620 = vpop.permute.xlu0 %1619
      %1621 = vrot.lane.b32.xlu0 %v1119, 109
      %v1622 = vpop.permute.xlu0 %1621
      %1623 = vrot.lane.b32.xlu0 %v1120, 109
      %v1624 = vpop.permute.xlu0 %1623
      %vm1625 = vcmask 891904
      %v1626 = vsel %vm1625, %v1618, %v1620
      %v1627 = vsel %vm1625, %v1620, %v1622
      %v1628 = vsel %vm1625, %v1622, %v1624
      %v1633 = vsel %vm335, %v1616, 0
      %1635 = vmatprep.subr.mxu0 %v1627
      %1636 = vmatpush1.msra.mxu0 %v1626
      %1637 = vmatprep.subr.mxu0 0.0
      %1638 = vmatpush1.msra.mxu0 0.0
      %1639 = vmatprep.subr.mxu0 0.0
      %1640 = vmatpush1.msra.mxu0 0.0
      %1641 = vmatprep.subr.mxu0 0.0
      %1642 = vmatpush1.msra.mxu0 0.0
      %1643 = vmatprep.subr.mxu0 0.0
      %1644 = vmatpush1.msra.mxu0 0.0
      %1645 = vmatprep.subr.mxu0 0.0
      %1646 = vmatpush1.msra.mxu0 0.0
      %1647 = vmatprep.subr.mxu0 0.0
      %1648 = vmatpush1.msra.mxu0 0.0
      %1649 = vmatprep.subr.mxu0 0.0
      %1650 = vmatpush1.msra.mxu0 0.0
      %1651 = vmatprep.subr.mxu0 0.0
      %1652 = vmatpush1.msra.mxu0 0.0
      %1653 = vmatprep.subr.mxu0 0.0
      %1654 = vmatpush1.msra.mxu0 0.0
      %1655 = vmatprep.subr.mxu0 0.0
      %1656 = vmatpush1.msra.mxu0 0.0
      %1657 = vmatprep.subr.mxu0 0.0
      %1658 = vmatpush1.msra.mxu0 0.0
      %1659 = vmatprep.subr.mxu0 0.0
      %1660 = vmatpush1.msra.mxu0 0.0
      %1661 = vmatprep.subr.mxu0 0.0
      %1662 = vmatpush1.msra.mxu0 0.0
      %1663 = vmatprep.subr.mxu0 0.0
      %1664 = vmatpush1.msra.mxu0 0.0
      %1665 = vmatprep.subr.mxu0 0.0
      %1666 = vmatpush1.msra.mxu0 0.0
      %1667 = vmatprep.subr.mxu0 0.0
      %1668 = vmatpush1.msra.mxu0 0.0
      %1669 = vmatprep.subr.mxu0 0.0
      %1670 = vmatpush1.msra.mxu0 0.0
      %1671 = vmatprep.subr.mxu0 0.0
      %1672 = vmatpush1.msra.mxu0 0.0
      %1673 = vmatprep.subr.mxu0 0.0
      %1674 = vmatpush1.msra.mxu0 0.0
      %1675 = vmatprep.subr.mxu0 0.0
      %1676 = vmatpush1.msra.mxu0 0.0
      %1677 = vmatprep.subr.mxu0 0.0
      %1678 = vmatpush1.msra.mxu0 0.0
      %1679 = vmatprep.subr.mxu0 0.0
      %1680 = vmatpush1.msra.mxu0 0.0
      %1681 = vmatprep.subr.mxu0 0.0
      %1682 = vmatpush1.msra.mxu0 0.0
      %1683 = vmatprep.subr.mxu0 0.0
      %1684 = vmatpush1.msra.mxu0 0.0
      %1685 = vmatprep.subr.mxu0 0.0
      %1686 = vmatpush1.msra.mxu0 0.0
      %1687 = vmatprep.subr.mxu0 0.0
      %1688 = vmatpush1.msra.mxu0 0.0
      %1689 = vmatprep.subr.mxu0 0.0
      %1690 = vmatpush1.msra.mxu0 0.0
      %1691 = vmatprep.subr.mxu0 0.0
      %1692 = vmatpush1.msra.mxu0 0.0
      %1693 = vmatprep.subr.mxu0 0.0
      %1694 = vmatpush1.msra.mxu0 0.0
      %1695 = vmatprep.subr.mxu0 0.0
      %1696 = vmatpush1.msra.mxu0 0.0
      %1697 = vmatprep.subr.mxu0 0.0
      %1698 = vmatpush1.msra.mxu0 0.0
      %1699 = vmatprep.mubr.f32.mxu0 0.0
      %1700 = vmatmul.mubr.f32.gmra.mrb[0].mxu0 %v1633
      %v1701 = vpop.f32.mrb[0].mxu0
      %v1702 = vadd.f32 0.0, %v1701
      %v1703 = vpop.f32.mrb[0].mxu0
      %v1704 = vadd.f32 0.0, %v1703
      %1705 = vdwg.mxu0
      %1706 = vmatprep.subr.mxu0 0.0
      %1707 = vmatpush1.msra.mxu0 %v1628
      %1708 = vmatprep.subr.mxu0 0.0
      %1709 = vmatpush1.msra.mxu0 0.0
      %1710 = vmatprep.subr.mxu0 0.0
      %1711 = vmatpush1.msra.mxu0 0.0
      %1712 = vmatprep.subr.mxu0 0.0
      %1713 = vmatpush1.msra.mxu0 0.0
      %1714 = vmatprep.subr.mxu0 0.0
      %1715 = vmatpush1.msra.mxu0 0.0
      %1716 = vmatprep.subr.mxu0 0.0
      %1717 = vmatpush1.msra.mxu0 0.0
      %1718 = vmatprep.subr.mxu0 0.0
      %1719 = vmatpush1.msra.mxu0 0.0
      %1720 = vmatprep.subr.mxu0 0.0
      %1721 = vmatpush1.msra.mxu0 0.0
      %1722 = vmatprep.subr.mxu0 0.0
      %1723 = vmatpush1.msra.mxu0 0.0
      %1724 = vmatprep.subr.mxu0 0.0
      %1725 = vmatpush1.msra.mxu0 0.0
      %1726 = vmatprep.subr.mxu0 0.0
      %1727 = vmatpush1.msra.mxu0 0.0
      %1728 = vmatprep.subr.mxu0 0.0
      %1729 = vmatpush1.msra.mxu0 0.0
      %1730 = vmatprep.subr.mxu0 0.0
      %1731 = vmatpush1.msra.mxu0 0.0
      %1732 = vmatprep.subr.mxu0 0.0
      %1733 = vmatpush1.msra.mxu0 0.0
      %1734 = vmatprep.subr.mxu0 0.0
      %1735 = vmatpush1.msra.mxu0 0.0
      %1736 = vmatprep.subr.mxu0 0.0
      %1737 = vmatpush1.msra.mxu0 0.0
      %1738 = vmatprep.subr.mxu0 0.0
      %1739 = vmatpush1.msra.mxu0 0.0
      %1740 = vmatprep.subr.mxu0 0.0
      %1741 = vmatpush1.msra.mxu0 0.0
      %1742 = vmatprep.subr.mxu0 0.0
      %1743 = vmatpush1.msra.mxu0 0.0
      %1744 = vmatprep.subr.mxu0 0.0
      %1745 = vmatpush1.msra.mxu0 0.0
      %1746 = vmatprep.subr.mxu0 0.0
      %1747 = vmatpush1.msra.mxu0 0.0
      %1748 = vmatprep.subr.mxu0 0.0
      %1749 = vmatpush1.msra.mxu0 0.0
      %1750 = vmatprep.subr.mxu0 0.0
      %1751 = vmatpush1.msra.mxu0 0.0
      %1752 = vmatprep.subr.mxu0 0.0
      %1753 = vmatpush1.msra.mxu0 0.0
      %1754 = vmatprep.subr.mxu0 0.0
      %1755 = vmatpush1.msra.mxu0 0.0
      %1756 = vmatprep.subr.mxu0 0.0
      %1757 = vmatpush1.msra.mxu0 0.0
      %1758 = vmatprep.subr.mxu0 0.0
      %1759 = vmatpush1.msra.mxu0 0.0
      %1760 = vmatprep.subr.mxu0 0.0
      %1761 = vmatpush1.msra.mxu0 0.0
      %1762 = vmatprep.subr.mxu0 0.0
      %1763 = vmatpush1.msra.mxu0 0.0
      %1764 = vmatprep.subr.mxu0 0.0
      %1765 = vmatpush1.msra.mxu0 0.0
      %1766 = vmatprep.subr.mxu0 0.0
      %1767 = vmatpush1.msra.mxu0 0.0
      %1768 = vmatprep.subr.mxu0 0.0
      %1769 = vmatpush1.msra.mxu0 0.0
      %1770 = vmatprep.mubr.f32.mxu0 0.0
      %1771 = vmatmul.mubr.f32.gmra.mrb[0].mxu0 %v1633
      %v1772 = vpop.f32.mrb[0].mxu0
      %v1773 = vadd.f32 0.0, %v1772
      %v1774 = vpop.f32.mrb[0].mxu0
      %1775 = vdwg.mxu0
      %v1776 = vadd.f32 %v1612, %v1702
      %v1777 = vadd.f32 %v1613, %v1704
      %v1778 = vadd.f32 %v1614, %v1773
      %v1779 = vld [vmem:[%s3] sm:$0xff]
      %1781 = vset.pattern.permute.xlu0 0
      %1782 = vperm.xlu0 %1781, %v1779
      %v1783 = vpop.permute.xlu0 %1782
      %v1785 = vadd.f32 %v1776, %v1783
      %v1786 = vadd.f32 %v1777, %v1783
      %v1787 = vadd.f32 %v1778, %v1783
      %v1788 = vmax.f32 %v1785, 0.0
      %v1789 = vmax.f32 %v1786, 0.0
      %v1790 = vmax.f32 %v1787, 0.0
      %v1792 = vlaneseq
      %v1793 = vshrl.u32 %v1792, 7
      %v1794 = vsub.s32 0, %v1793
      %v1795 = vrot.slane %v304, %v1794
      %v1796 = vlaneseq
      %v1797 = vshrl.u32 %v1796, 7
      %v1798 = vsub.s32 1, %v1797
      %v1799 = vrot.slane %v304, %v1798
      %v1800 = vlaneseq
      %v1801 = vshrl.u32 %v1800, 7
      %v1802 = vsub.s32 2, %v1801
      %v1803 = vrot.slane %v304, %v1802
      %v1807 = vmul.f32 %v1788, %v1795
      %v1808 = vmul.f32 %v1789, %v1799
      %v1809 = vmul.f32 %v1790, %v1803
      %1810 = vst [vmem:[#allocation2 + $0x8] sm:$0xff] %v1807
      %1811 = vst [vmem:[#allocation2 + $0x10] sm:$0xff] %v1808
      %1812 = vst [vmem:[#allocation2 + $0x18] sm:$0xff] %v1809
      %v1813 = vld [vmem:[%s4] sm:$0xff]
      %v1814 = vld [vmem:[#allocation2] sm:$0xff]
      %v1815 = vld [vmem:[#allocation2 + $0x8] sm:$0xff]
      %v1816 = vld [vmem:[#allocation2 + $0x10] sm:$0xff]
      %v1817 = vld [vmem:[#allocation2 + $0x18] sm:$0xff]
      %s1818 = scalar_lea.vmem %s4, 8
      %v1819 = vld [vmem:[%s1818] sm:$0xff]
      %1824 = vrot.lane.b32.xlu0 %v1814, 18
      %v1825 = vpop.permute.xlu0 %1824
      %1826 = vrot.lane.b32.xlu0 %v1815, 18
      %v1827 = vpop.permute.xlu0 %1826
      %1828 = vrot.lane.b32.xlu0 %v1816, 18
      %v1829 = vpop.permute.xlu0 %1828
      %1830 = vrot.lane.b32.xlu0 %v1817, 18
      %v1831 = vpop.permute.xlu0 %1830
      %v1832 = vsel %vm328, %v1825, %v1827
      %v1833 = vsel %vm328, %v1827, %v1829
      %v1834 = vsel %vm328, %v1829, %v1831
      %v1839 = vsel %vm335, %v1819, 0
      %1841 = vmatprep.subr.mxu0 %v1833
      %1842 = vmatpush1.msra.mxu0 %v1832
      %1843 = vmatprep.subr.mxu0 0.0
      %1844 = vmatpush1.msra.mxu0 0.0
      %1845 = vmatprep.subr.mxu0 0.0
      %1846 = vmatpush1.msra.mxu0 0.0
      %1847 = vmatprep.subr.mxu0 0.0
      %1848 = vmatpush1.msra.mxu0 0.0
      %1849 = vmatprep.subr.mxu0 0.0
      %1850 = vmatpush1.msra.mxu0 0.0
      %1851 = vmatprep.subr.mxu0 0.0
      %1852 = vmatpush1.msra.mxu0 0.0
      %1853 = vmatprep.subr.mxu0 0.0
      %1854 = vmatpush1.msra.mxu0 0.0
      %1855 = vmatprep.subr.mxu0 0.0
      %1856 = vmatpush1.msra.mxu0 0.0
      %1857 = vmatprep.subr.mxu0 0.0
      %1858 = vmatpush1.msra.mxu0 0.0
      %1859 = vmatprep.subr.mxu0 0.0
      %1860 = vmatpush1.msra.mxu0 0.0
      %1861 = vmatprep.subr.mxu0 0.0
      %1862 = vmatpush1.msra.mxu0 0.0
      %1863 = vmatprep.subr.mxu0 0.0
      %1864 = vmatpush1.msra.mxu0 0.0
      %1865 = vmatprep.subr.mxu0 0.0
      %1866 = vmatpush1.msra.mxu0 0.0
      %1867 = vmatprep.subr.mxu0 0.0
      %1868 = vmatpush1.msra.mxu0 0.0
      %1869 = vmatprep.subr.mxu0 0.0
      %1870 = vmatpush1.msra.mxu0 0.0
      %1871 = vmatprep.subr.mxu0 0.0
      %1872 = vmatpush1.msra.mxu0 0.0
      %1873 = vmatprep.subr.mxu0 0.0
      %1874 = vmatpush1.msra.mxu0 0.0
      %1875 = vmatprep.subr.mxu0 0.0
      %1876 = vmatpush1.msra.mxu0 0.0
      %1877 = vmatprep.subr.mxu0 0.0
      %1878 = vmatpush1.msra.mxu0 0.0
      %1879 = vmatprep.subr.mxu0 0.0
      %1880 = vmatpush1.msra.mxu0 0.0
      %1881 = vmatprep.subr.mxu0 0.0
      %1882 = vmatpush1.msra.mxu0 0.0
      %1883 = vmatprep.subr.mxu0 0.0
      %1884 = vmatpush1.msra.mxu0 0.0
      %1885 = vmatprep.subr.mxu0 0.0
      %1886 = vmatpush1.msra.mxu0 0.0
      %1887 = vmatprep.subr.mxu0 0.0
      %1888 = vmatpush1.msra.mxu0 0.0
      %1889 = vmatprep.subr.mxu0 0.0
      %1890 = vmatpush1.msra.mxu0 0.0
      %1891 = vmatprep.subr.mxu0 0.0
      %1892 = vmatpush1.msra.mxu0 0.0
      %1893 = vmatprep.subr.mxu0 0.0
      %1894 = vmatpush1.msra.mxu0 0.0
      %1895 = vmatprep.subr.mxu0 0.0
      %1896 = vmatpush1.msra.mxu0 0.0
      %1897 = vmatprep.subr.mxu0 0.0
      %1898 = vmatpush1.msra.mxu0 0.0
      %1899 = vmatprep.subr.mxu0 0.0
      %1900 = vmatpush1.msra.mxu0 0.0
      %1901 = vmatprep.subr.mxu0 0.0
      %1902 = vmatpush1.msra.mxu0 0.0
      %1903 = vmatprep.subr.mxu0 0.0
      %1904 = vmatpush1.msra.mxu0 0.0
      %1905 = vmatprep.mubr.f32.mxu0 0.0
      %1906 = vmatmul.mubr.f32.gmra.mrb[0].mxu0 %v1839
      %v1907 = vpop.f32.mrb[0].mxu0
      %v1908 = vadd.f32 0.0, %v1907
      %v1909 = vpop.f32.mrb[0].mxu0
      %v1910 = vadd.f32 0.0, %v1909
      %1911 = vdwg.mxu0
      %1912 = vmatprep.subr.mxu0 0.0
      %1913 = vmatpush1.msra.mxu0 %v1834
      %1914 = vmatprep.subr.mxu0 0.0
      %1915 = vmatpush1.msra.mxu0 0.0
      %1916 = vmatprep.subr.mxu0 0.0
      %1917 = vmatpush1.msra.mxu0 0.0
      %1918 = vmatprep.subr.mxu0 0.0
      %1919 = vmatpush1.msra.mxu0 0.0
      %1920 = vmatprep.subr.mxu0 0.0
      %1921 = vmatpush1.msra.mxu0 0.0
      %1922 = vmatprep.subr.mxu0 0.0
      %1923 = vmatpush1.msra.mxu0 0.0
      %1924 = vmatprep.subr.mxu0 0.0
      %1925 = vmatpush1.msra.mxu0 0.0
      %1926 = vmatprep.subr.mxu0 0.0
      %1927 = vmatpush1.msra.mxu0 0.0
      %1928 = vmatprep.subr.mxu0 0.0
      %1929 = vmatpush1.msra.mxu0 0.0
      %1930 = vmatprep.subr.mxu0 0.0
      %1931 = vmatpush1.msra.mxu0 0.0
      %1932 = vmatprep.subr.mxu0 0.0
      %1933 = vmatpush1.msra.mxu0 0.0
      %1934 = vmatprep.subr.mxu0 0.0
      %1935 = vmatpush1.msra.mxu0 0.0
      %1936 = vmatprep.subr.mxu0 0.0
      %1937 = vmatpush1.msra.mxu0 0.0
      %1938 = vmatprep.subr.mxu0 0.0
      %1939 = vmatpush1.msra.mxu0 0.0
      %1940 = vmatprep.subr.mxu0 0.0
      %1941 = vmatpush1.msra.mxu0 0.0
      %1942 = vmatprep.subr.mxu0 0.0
      %1943 = vmatpush1.msra.mxu0 0.0
      %1944 = vmatprep.subr.mxu0 0.0
      %1945 = vmatpush1.msra.mxu0 0.0
      %1946 = vmatprep.subr.mxu0 0.0
      %1947 = vmatpush1.msra.mxu0 0.0
      %1948 = vmatprep.subr.mxu0 0.0
      %1949 = vmatpush1.msra.mxu0 0.0
      %1950 = vmatprep.subr.mxu0 0.0
      %1951 = vmatpush1.msra.mxu0 0.0
      %1952 = vmatprep.subr.mxu0 0.0
      %1953 = vmatpush1.msra.mxu0 0.0
      %1954 = vmatprep.subr.mxu0 0.0
      %1955 = vmatpush1.msra.mxu0 0.0
      %1956 = vmatprep.subr.mxu0 0.0
      %1957 = vmatpush1.msra.mxu0 0.0
      %1958 = vmatprep.subr.mxu0 0.0
      %1959 = vmatpush1.msra.mxu0 0.0
      %1960 = vmatprep.subr.mxu0 0.0
      %1961 = vmatpush1.msra.mxu0 0.0
      %1962 = vmatprep.subr.mxu0 0.0
      %1963 = vmatpush1.msra.mxu0 0.0
      %1964 = vmatprep.subr.mxu0 0.0
      %1965 = vmatpush1.msra.mxu0 0.0
      %1966 = vmatprep.subr.mxu0 0.0
      %1967 = vmatpush1.msra.mxu0 0.0
      %1968 = vmatprep.subr.mxu0 0.0
      %1969 = vmatpush1.msra.mxu0 0.0
      %1970 = vmatprep.subr.mxu0 0.0
      %1971 = vmatpush1.msra.mxu0 0.0
      %1972 = vmatprep.subr.mxu0 0.0
      %1973 = vmatpush1.msra.mxu0 0.0
      %1974 = vmatprep.subr.mxu0 0.0
      %1975 = vmatpush1.msra.mxu0 0.0
      %1976 = vmatprep.mubr.f32.mxu0 0.0
      %1977 = vmatmul.mubr.f32.gmra.mrb[0].mxu0 %v1839
      %v1978 = vpop.f32.mrb[0].mxu0
      %v1979 = vadd.f32 0.0, %v1978
      %v1980 = vpop.f32.mrb[0].mxu0
      %1981 = vdwg.mxu0
      %1982 = vrot.lane.b32.xlu0 %v1814, 19
      %v1983 = vpop.permute.xlu0 %1982
      %1984 = vrot.lane.b32.xlu0 %v1815, 19
      %v1985 = vpop.permute.xlu0 %1984
      %1986 = vrot.lane.b32.xlu0 %v1816, 19
      %v1987 = vpop.permute.xlu0 %1986
      %1988 = vrot.lane.b32.xlu0 %v1817, 19
      %v1989 = vpop.permute.xlu0 %1988
      %v1990 = vsel %vm307, %v1983, %v1985
      %v1991 = vsel %vm307, %v1985, %v1987
      %v1992 = vsel %vm307, %v1987, %v1989
      %v1997 = vsel %vm335, %v1813, 0
      %1999 = vmatprep.subr.mxu0 %v1991
      %2000 = vmatpush1.msra.mxu0 %v1990
      %2001 = vmatprep.subr.mxu0 0.0
      %2002 = vmatpush1.msra.mxu0 0.0
      %2003 = vmatprep.subr.mxu0 0.0
      %2004 = vmatpush1.msra.mxu0 0.0
      %2005 = vmatprep.subr.mxu0 0.0
      %2006 = vmatpush1.msra.mxu0 0.0
      %2007 = vmatprep.subr.mxu0 0.0
      %2008 = vmatpush1.msra.mxu0 0.0
      %2009 = vmatprep.subr.mxu0 0.0
      %2010 = vmatpush1.msra.mxu0 0.0
      %2011 = vmatprep.subr.mxu0 0.0
      %2012 = vmatpush1.msra.mxu0 0.0
      %2013 = vmatprep.subr.mxu0 0.0
      %2014 = vmatpush1.msra.mxu0 0.0
      %2015 = vmatprep.subr.mxu0 0.0
      %2016 = vmatpush1.msra.mxu0 0.0
      %2017 = vmatprep.subr.mxu0 0.0
      %2018 = vmatpush1.msra.mxu0 0.0
      %2019 = vmatprep.subr.mxu0 0.0
      %2020 = vmatpush1.msra.mxu0 0.0
      %2021 = vmatprep.subr.mxu0 0.0
      %2022 = vmatpush1.msra.mxu0 0.0
      %2023 = vmatprep.subr.mxu0 0.0
      %2024 = vmatpush1.msra.mxu0 0.0
      %2025 = vmatprep.subr.mxu0 0.0
      %2026 = vmatpush1.msra.mxu0 0.0
      %2027 = vmatprep.subr.mxu0 0.0
      %2028 = vmatpush1.msra.mxu0 0.0
      %2029 = vmatprep.subr.mxu0 0.0
      %2030 = vmatpush1.msra.mxu0 0.0
      %2031 = vmatprep.subr.mxu0 0.0
      %2032 = vmatpush1.msra.mxu0 0.0
      %2033 = vmatprep.subr.mxu0 0.0
      %2034 = vmatpush1.msra.mxu0 0.0
      %2035 = vmatprep.subr.mxu0 0.0
      %2036 = vmatpush1.msra.mxu0 0.0
      %2037 = vmatprep.subr.mxu0 0.0
      %2038 = vmatpush1.msra.mxu0 0.0
      %2039 = vmatprep.subr.mxu0 0.0
      %2040 = vmatpush1.msra.mxu0 0.0
      %2041 = vmatprep.subr.mxu0 0.0
      %2042 = vmatpush1.msra.mxu0 0.0
      %2043 = vmatprep.subr.mxu0 0.0
      %2044 = vmatpush1.msra.mxu0 0.0
      %2045 = vmatprep.subr.mxu0 0.0
      %2046 = vmatpush1.msra.mxu0 0.0
      %2047 = vmatprep.subr.mxu0 0.0
      %2048 = vmatpush1.msra.mxu0 0.0
      %2049 = vmatprep.subr.mxu0 0.0
      %2050 = vmatpush1.msra.mxu0 0.0
      %2051 = vmatprep.subr.mxu0 0.0
      %2052 = vmatpush1.msra.mxu0 0.0
      %2053 = vmatprep.subr.mxu0 0.0
      %2054 = vmatpush1.msra.mxu0 0.0
      %2055 = vmatprep.subr.mxu0 0.0
      %2056 = vmatpush1.msra.mxu0 0.0
      %2057 = vmatprep.subr.mxu0 0.0
      %2058 = vmatpush1.msra.mxu0 0.0
      %2059 = vmatprep.subr.mxu0 0.0
      %2060 = vmatpush1.msra.mxu0 0.0
      %2061 = vmatprep.subr.mxu0 0.0
      %2062 = vmatpush1.msra.mxu0 0.0
      %2063 = vmatprep.mubr.f32.mxu0 0.0
      %2064 = vmatmul.mubr.f32.gmra.mrb[0].mxu0 %v1997
      %v2065 = vpop.f32.mrb[0].mxu0
      %v2066 = vadd.f32 %v1908, %v2065
      %v2067 = vpop.f32.mrb[0].mxu0
      %v2068 = vadd.f32 %v1910, %v2067
      %2069 = vdwg.mxu0
      %2070 = vmatprep.subr.mxu0 0.0
      %2071 = vmatpush1.msra.mxu0 %v1992
      %2072 = vmatprep.subr.mxu0 0.0
      %2073 = vmatpush1.msra.mxu0 0.0
      %2074 = vmatprep.subr.mxu0 0.0
      %2075 = vmatpush1.msra.mxu0 0.0
      %2076 = vmatprep.subr.mxu0 0.0
      %2077 = vmatpush1.msra.mxu0 0.0
      %2078 = vmatprep.subr.mxu0 0.0
      %2079 = vmatpush1.msra.mxu0 0.0
      %2080 = vmatprep.subr.mxu0 0.0
      %2081 = vmatpush1.msra.mxu0 0.0
      %2082 = vmatprep.subr.mxu0 0.0
      %2083 = vmatpush1.msra.mxu0 0.0
      %2084 = vmatprep.subr.mxu0 0.0
      %2085 = vmatpush1.msra.mxu0 0.0
      %2086 = vmatprep.subr.mxu0 0.0
      %2087 = vmatpush1.msra.mxu0 0.0
      %2088 = vmatprep.subr.mxu0 0.0
      %2089 = vmatpush1.msra.mxu0 0.0
      %2090 = vmatprep.subr.mxu0 0.0
      %2091 = vmatpush1.msra.mxu0 0.0
      %2092 = vmatprep.subr.mxu0 0.0
      %2093 = vmatpush1.msra.mxu0 0.0
      %2094 = vmatprep.subr.mxu0 0.0
      %2095 = vmatpush1.msra.mxu0 0.0
      %2096 = vmatprep.subr.mxu0 0.0
      %2097 = vmatpush1.msra.mxu0 0.0
      %2098 = vmatprep.subr.mxu0 0.0
      %2099 = vmatpush1.msra.mxu0 0.0
      %2100 = vmatprep.subr.mxu0 0.0
      %2101 = vmatpush1.msra.mxu0 0.0
      %2102 = vmatprep.subr.mxu0 0.0
      %2103 = vmatpush1.msra.mxu0 0.0
      %2104 = vmatprep.subr.mxu0 0.0
      %2105 = vmatpush1.msra.mxu0 0.0
      %2106 = vmatprep.subr.mxu0 0.0
      %2107 = vmatpush1.msra.mxu0 0.0
      %2108 = vmatprep.subr.mxu0 0.0
      %2109 = vmatpush1.msra.mxu0 0.0
      %2110 = vmatprep.subr.mxu0 0.0
      %2111 = vmatpush1.msra.mxu0 0.0
      %2112 = vmatprep.subr.mxu0 0.0
      %2113 = vmatpush1.msra.mxu0 0.0
      %2114 = vmatprep.subr.mxu0 0.0
      %2115 = vmatpush1.msra.mxu0 0.0
      %2116 = vmatprep.subr.mxu0 0.0
      %2117 = vmatpush1.msra.mxu0 0.0
      %2118 = vmatprep.subr.mxu0 0.0
      %2119 = vmatpush1.msra.mxu0 0.0
      %2120 = vmatprep.subr.mxu0 0.0
      %2121 = vmatpush1.msra.mxu0 0.0
      %2122 = vmatprep.subr.mxu0 0.0
      %2123 = vmatpush1.msra.mxu0 0.0
      %2124 = vmatprep.subr.mxu0 0.0
      %2125 = vmatpush1.msra.mxu0 0.0
      %2126 = vmatprep.subr.mxu0 0.0
      %2127 = vmatpush1.msra.mxu0 0.0
      %2128 = vmatprep.subr.mxu0 0.0
      %2129 = vmatpush1.msra.mxu0 0.0
      %2130 = vmatprep.subr.mxu0 0.0
      %2131 = vmatpush1.msra.mxu0 0.0
      %2132 = vmatprep.subr.mxu0 0.0
      %2133 = vmatpush1.msra.mxu0 0.0
      %2134 = vmatprep.mubr.f32.mxu0 0.0
      %2135 = vmatmul.mubr.f32.gmra.mrb[0].mxu0 %v1997
      %v2136 = vpop.f32.mrb[0].mxu0
      %v2137 = vadd.f32 %v1979, %v2136
      %v2138 = vpop.f32.mrb[0].mxu0
      %2139 = vdwg.mxu0
      %s2140 = scalar_lea.vmem %s4, 16
      %v2141 = vld [vmem:[%s2140] sm:$0xff]
      %2142 = vrot.lane.b32.xlu0 %v1814, 17
      %v2143 = vpop.permute.xlu0 %2142
      %2144 = vrot.lane.b32.xlu0 %v1815, 17
      %v2145 = vpop.permute.xlu0 %2144
      %2146 = vrot.lane.b32.xlu0 %v1816, 17
      %v2147 = vpop.permute.xlu0 %2146
      %2148 = vrot.lane.b32.xlu0 %v1817, 17
      %v2149 = vpop.permute.xlu0 %2148
      %v2150 = vsel %vm648, %v2143, %v2145
      %v2151 = vsel %vm648, %v2145, %v2147
      %v2152 = vsel %vm648, %v2147, %v2149
      %v2157 = vsel %vm335, %v2141, 0
      %2159 = vmatprep.subr.mxu0 %v2151
      %2160 = vmatpush1.msra.mxu0 %v2150
      %2161 = vmatprep.subr.mxu0 0.0
      %2162 = vmatpush1.msra.mxu0 0.0
      %2163 = vmatprep.subr.mxu0 0.0
      %2164 = vmatpush1.msra.mxu0 0.0
      %2165 = vmatprep.subr.mxu0 0.0
      %2166 = vmatpush1.msra.mxu0 0.0
      %2167 = vmatprep.subr.mxu0 0.0
      %2168 = vmatpush1.msra.mxu0 0.0
      %2169 = vmatprep.subr.mxu0 0.0
      %2170 = vmatpush1.msra.mxu0 0.0
      %2171 = vmatprep.subr.mxu0 0.0
      %2172 = vmatpush1.msra.mxu0 0.0
      %2173 = vmatprep.subr.mxu0 0.0
      %2174 = vmatpush1.msra.mxu0 0.0
      %2175 = vmatprep.subr.mxu0 0.0
      %2176 = vmatpush1.msra.mxu0 0.0
      %2177 = vmatprep.subr.mxu0 0.0
      %2178 = vmatpush1.msra.mxu0 0.0
      %2179 = vmatprep.subr.mxu0 0.0
      %2180 = vmatpush1.msra.mxu0 0.0
      %2181 = vmatprep.subr.mxu0 0.0
      %2182 = vmatpush1.msra.mxu0 0.0
      %2183 = vmatprep.subr.mxu0 0.0
      %2184 = vmatpush1.msra.mxu0 0.0
      %2185 = vmatprep.subr.mxu0 0.0
      %2186 = vmatpush1.msra.mxu0 0.0
      %2187 = vmatprep.subr.mxu0 0.0
      %2188 = vmatpush1.msra.mxu0 0.0
      %2189 = vmatprep.subr.mxu0 0.0
      %2190 = vmatpush1.msra.mxu0 0.0
      %2191 = vmatprep.subr.mxu0 0.0
      %2192 = vmatpush1.msra.mxu0 0.0
      %2193 = vmatprep.subr.mxu0 0.0
      %2194 = vmatpush1.msra.mxu0 0.0
      %2195 = vmatprep.subr.mxu0 0.0
      %2196 = vmatpush1.msra.mxu0 0.0
      %2197 = vmatprep.subr.mxu0 0.0
      %2198 = vmatpush1.msra.mxu0 0.0
      %2199 = vmatprep.subr.mxu0 0.0
      %2200 = vmatpush1.msra.mxu0 0.0
      %2201 = vmatprep.subr.mxu0 0.0
      %2202 = vmatpush1.msra.mxu0 0.0
      %2203 = vmatprep.subr.mxu0 0.0
      %2204 = vmatpush1.msra.mxu0 0.0
      %2205 = vmatprep.subr.mxu0 0.0
      %2206 = vmatpush1.msra.mxu0 0.0
      %2207 = vmatprep.subr.mxu0 0.0
      %2208 = vmatpush1.msra.mxu0 0.0
      %2209 = vmatprep.subr.mxu0 0.0
      %2210 = vmatpush1.msra.mxu0 0.0
      %2211 = vmatprep.subr.mxu0 0.0
      %2212 = vmatpush1.msra.mxu0 0.0
      %2213 = vmatprep.subr.mxu0 0.0
      %2214 = vmatpush1.msra.mxu0 0.0
      %2215 = vmatprep.subr.mxu0 0.0
      %2216 = vmatpush1.msra.mxu0 0.0
      %2217 = vmatprep.subr.mxu0 0.0
      %2218 = vmatpush1.msra.mxu0 0.0
      %2219 = vmatprep.subr.mxu0 0.0
      %2220 = vmatpush1.msra.mxu0 0.0
      %2221 = vmatprep.subr.mxu0 0.0
      %2222 = vmatpush1.msra.mxu0 0.0
      %2223 = vmatprep.mubr.f32.mxu0 0.0
      %2224 = vmatmul.mubr.f32.gmra.mrb[0].mxu0 %v2157
      %v2225 = vpop.f32.mrb[0].mxu0
      %v2226 = vadd.f32 0.0, %v2225
      %v2227 = vpop.f32.mrb[0].mxu0
      %v2228 = vadd.f32 0.0, %v2227
      %2229 = vdwg.mxu0
      %2230 = vmatprep.subr.mxu0 0.0
      %2231 = vmatpush1.msra.mxu0 %v2152
      %2232 = vmatprep.subr.mxu0 0.0
      %2233 = vmatpush1.msra.mxu0 0.0
      %2234 = vmatprep.subr.mxu0 0.0
      %2235 = vmatpush1.msra.mxu0 0.0
      %2236 = vmatprep.subr.mxu0 0.0
      %2237 = vmatpush1.msra.mxu0 0.0
      %2238 = vmatprep.subr.mxu0 0.0
      %2239 = vmatpush1.msra.mxu0 0.0
      %2240 = vmatprep.subr.mxu0 0.0
      %2241 = vmatpush1.msra.mxu0 0.0
      %2242 = vmatprep.subr.mxu0 0.0
      %2243 = vmatpush1.msra.mxu0 0.0
      %2244 = vmatprep.subr.mxu0 0.0
      %2245 = vmatpush1.msra.mxu0 0.0
      %2246 = vmatprep.subr.mxu0 0.0
      %2247 = vmatpush1.msra.mxu0 0.0
      %2248 = vmatprep.subr.mxu0 0.0
      %2249 = vmatpush1.msra.mxu0 0.0
      %2250 = vmatprep.subr.mxu0 0.0
      %2251 = vmatpush1.msra.mxu0 0.0
      %2252 = vmatprep.subr.mxu0 0.0
      %2253 = vmatpush1.msra.mxu0 0.0
      %2254 = vmatprep.subr.mxu0 0.0
      %2255 = vmatpush1.msra.mxu0 0.0
      %2256 = vmatprep.subr.mxu0 0.0
      %2257 = vmatpush1.msra.mxu0 0.0
      %2258 = vmatprep.subr.mxu0 0.0
      %2259 = vmatpush1.msra.mxu0 0.0
      %2260 = vmatprep.subr.mxu0 0.0
      %2261 = vmatpush1.msra.mxu0 0.0
      %2262 = vmatprep.subr.mxu0 0.0
      %2263 = vmatpush1.msra.mxu0 0.0
      %2264 = vmatprep.subr.mxu0 0.0
      %2265 = vmatpush1.msra.mxu0 0.0
      %2266 = vmatprep.subr.mxu0 0.0
      %2267 = vmatpush1.msra.mxu0 0.0
      %2268 = vmatprep.subr.mxu0 0.0
      %2269 = vmatpush1.msra.mxu0 0.0
      %2270 = vmatprep.subr.mxu0 0.0
      %2271 = vmatpush1.msra.mxu0 0.0
      %2272 = vmatprep.subr.mxu0 0.0
      %2273 = vmatpush1.msra.mxu0 0.0
      %2274 = vmatprep.subr.mxu0 0.0
      %2275 = vmatpush1.msra.mxu0 0.0
      %2276 = vmatprep.subr.mxu0 0.0
      %2277 = vmatpush1.msra.mxu0 0.0
      %2278 = vmatprep.subr.mxu0 0.0
      %2279 = vmatpush1.msra.mxu0 0.0
      %2280 = vmatprep.subr.mxu0 0.0
      %2281 = vmatpush1.msra.mxu0 0.0
      %2282 = vmatprep.subr.mxu0 0.0
      %2283 = vmatpush1.msra.mxu0 0.0
      %2284 = vmatprep.subr.mxu0 0.0
      %2285 = vmatpush1.msra.mxu0 0.0
      %2286 = vmatprep.subr.mxu0 0.0
      %2287 = vmatpush1.msra.mxu0 0.0
      %2288 = vmatprep.subr.mxu0 0.0
      %2289 = vmatpush1.msra.mxu0 0.0
      %2290 = vmatprep.subr.mxu0 0.0
      %2291 = vmatpush1.msra.mxu0 0.0
      %2292 = vmatprep.subr.mxu0 0.0
      %2293 = vmatpush1.msra.mxu0 0.0
      %2294 = vmatprep.mubr.f32.mxu0 0.0
      %2295 = vmatmul.mubr.f32.gmra.mrb[0].mxu0 %v2157
      %v2296 = vpop.f32.mrb[0].mxu0
      %v2297 = vadd.f32 0.0, %v2296
      %v2298 = vpop.f32.mrb[0].mxu0
      %2299 = vdwg.mxu0
      %v2300 = vadd.f32 %v2066, %v2226
      %v2301 = vadd.f32 %v2068, %v2228
      %v2302 = vadd.f32 %v2137, %v2297
      %s2303 = scalar_lea.vmem %s4, 24
      %v2304 = vld [vmem:[%s2303] sm:$0xff]
      %2305 = vrot.lane.b32.xlu0 %v1814, 1
      %v2306 = vpop.permute.xlu0 %2305
      %2307 = vrot.lane.b32.xlu0 %v1815, 1
      %v2308 = vpop.permute.xlu0 %2307
      %2309 = vrot.lane.b32.xlu0 %v1816, 1
      %v2310 = vpop.permute.xlu0 %2309
      %2311 = vrot.lane.b32.xlu0 %v1817, 1
      %v2312 = vpop.permute.xlu0 %2311
      %v2313 = vsel %vm812, %v2306, %v2308
      %v2314 = vsel %vm812, %v2308, %v2310
      %v2315 = vsel %vm812, %v2310, %v2312
      %v2320 = vsel %vm335, %v2304, 0
      %2322 = vmatprep.subr.mxu0 %v2314
      %2323 = vmatpush1.msra.mxu0 %v2313
      %2324 = vmatprep.subr.mxu0 0.0
      %2325 = vmatpush1.msra.mxu0 0.0
      %2326 = vmatprep.subr.mxu0 0.0
      %2327 = vmatpush1.msra.mxu0 0.0
      %2328 = vmatprep.subr.mxu0 0.0
      %2329 = vmatpush1.msra.mxu0 0.0
      %2330 = vmatprep.subr.mxu0 0.0
      %2331 = vmatpush1.msra.mxu0 0.0
      %2332 = vmatprep.subr.mxu0 0.0
      %2333 = vmatpush1.msra.mxu0 0.0
      %2334 = vmatprep.subr.mxu0 0.0
      %2335 = vmatpush1.msra.mxu0 0.0
      %2336 = vmatprep.subr.mxu0 0.0
      %2337 = vmatpush1.msra.mxu0 0.0
      %2338 = vmatprep.subr.mxu0 0.0
      %2339 = vmatpush1.msra.mxu0 0.0
      %2340 = vmatprep.subr.mxu0 0.0
      %2341 = vmatpush1.msra.mxu0 0.0
      %2342 = vmatprep.subr.mxu0 0.0
      %2343 = vmatpush1.msra.mxu0 0.0
      %2344 = vmatprep.subr.mxu0 0.0
      %2345 = vmatpush1.msra.mxu0 0.0
      %2346 = vmatprep.subr.mxu0 0.0
      %2347 = vmatpush1.msra.mxu0 0.0
      %2348 = vmatprep.subr.mxu0 0.0
      %2349 = vmatpush1.msra.mxu0 0.0
      %2350 = vmatprep.subr.mxu0 0.0
      %2351 = vmatpush1.msra.mxu0 0.0
      %2352 = vmatprep.subr.mxu0 0.0
      %2353 = vmatpush1.msra.mxu0 0.0
      %2354 = vmatprep.subr.mxu0 0.0
      %2355 = vmatpush1.msra.mxu0 0.0
      %2356 = vmatprep.subr.mxu0 0.0
      %2357 = vmatpush1.msra.mxu0 0.0
      %2358 = vmatprep.subr.mxu0 0.0
      %2359 = vmatpush1.msra.mxu0 0.0
      %2360 = vmatprep.subr.mxu0 0.0
      %2361 = vmatpush1.msra.mxu0 0.0
      %2362 = vmatprep.subr.mxu0 0.0
      %2363 = vmatpush1.msra.mxu0 0.0
      %2364 = vmatprep.subr.mxu0 0.0
      %2365 = vmatpush1.msra.mxu0 0.0
      %2366 = vmatprep.subr.mxu0 0.0
      %2367 = vmatpush1.msra.mxu0 0.0
      %2368 = vmatprep.subr.mxu0 0.0
      %2369 = vmatpush1.msra.mxu0 0.0
      %2370 = vmatprep.subr.mxu0 0.0
      %2371 = vmatpush1.msra.mxu0 0.0
      %2372 = vmatprep.subr.mxu0 0.0
      %2373 = vmatpush1.msra.mxu0 0.0
      %2374 = vmatprep.subr.mxu0 0.0
      %2375 = vmatpush1.msra.mxu0 0.0
      %2376 = vmatprep.subr.mxu0 0.0
      %2377 = vmatpush1.msra.mxu0 0.0
      %2378 = vmatprep.subr.mxu0 0.0
      %2379 = vmatpush1.msra.mxu0 0.0
      %2380 = vmatprep.subr.mxu0 0.0
      %2381 = vmatpush1.msra.mxu0 0.0
      %2382 = vmatprep.subr.mxu0 0.0
      %2383 = vmatpush1.msra.mxu0 0.0
      %2384 = vmatprep.subr.mxu0 0.0
      %2385 = vmatpush1.msra.mxu0 0.0
      %2386 = vmatprep.mubr.f32.mxu0 0.0
      %2387 = vmatmul.mubr.f32.gmra.mrb[0].mxu0 %v2320
      %v2388 = vpop.f32.mrb[0].mxu0
      %v2389 = vadd.f32 0.0, %v2388
      %v2390 = vpop.f32.mrb[0].mxu0
      %v2391 = vadd.f32 0.0, %v2390
      %2392 = vdwg.mxu0
      %2393 = vmatprep.subr.mxu0 0.0
      %2394 = vmatpush1.msra.mxu0 %v2315
      %2395 = vmatprep.subr.mxu0 0.0
      %2396 = vmatpush1.msra.mxu0 0.0
      %2397 = vmatprep.subr.mxu0 0.0
      %2398 = vmatpush1.msra.mxu0 0.0
      %2399 = vmatprep.subr.mxu0 0.0
      %2400 = vmatpush1.msra.mxu0 0.0
      %2401 = vmatprep.subr.mxu0 0.0
      %2402 = vmatpush1.msra.mxu0 0.0
      %2403 = vmatprep.subr.mxu0 0.0
      %2404 = vmatpush1.msra.mxu0 0.0
      %2405 = vmatprep.subr.mxu0 0.0
      %2406 = vmatpush1.msra.mxu0 0.0
      %2407 = vmatprep.subr.mxu0 0.0
      %2408 = vmatpush1.msra.mxu0 0.0
      %2409 = vmatprep.subr.mxu0 0.0
      %2410 = vmatpush1.msra.mxu0 0.0
      %2411 = vmatprep.subr.mxu0 0.0
      %2412 = vmatpush1.msra.mxu0 0.0
      %2413 = vmatprep.subr.mxu0 0.0
      %2414 = vmatpush1.msra.mxu0 0.0
      %2415 = vmatprep.subr.mxu0 0.0
      %2416 = vmatpush1.msra.mxu0 0.0
      %2417 = vmatprep.subr.mxu0 0.0
      %2418 = vmatpush1.msra.mxu0 0.0
      %2419 = vmatprep.subr.mxu0 0.0
      %2420 = vmatpush1.msra.mxu0 0.0
      %2421 = vmatprep.subr.mxu0 0.0
      %2422 = vmatpush1.msra.mxu0 0.0
      %2423 = vmatprep.subr.mxu0 0.0
      %2424 = vmatpush1.msra.mxu0 0.0
      %2425 = vmatprep.subr.mxu0 0.0
      %2426 = vmatpush1.msra.mxu0 0.0
      %2427 = vmatprep.subr.mxu0 0.0
      %2428 = vmatpush1.msra.mxu0 0.0
      %2429 = vmatprep.subr.mxu0 0.0
      %2430 = vmatpush1.msra.mxu0 0.0
      %2431 = vmatprep.subr.mxu0 0.0
      %2432 = vmatpush1.msra.mxu0 0.0
      %2433 = vmatprep.subr.mxu0 0.0
      %2434 = vmatpush1.msra.mxu0 0.0
      %2435 = vmatprep.subr.mxu0 0.0
      %2436 = vmatpush1.msra.mxu0 0.0
      %2437 = vmatprep.subr.mxu0 0.0
      %2438 = vmatpush1.msra.mxu0 0.0
      %2439 = vmatprep.subr.mxu0 0.0
      %2440 = vmatpush1.msra.mxu0 0.0
      %2441 = vmatprep.subr.mxu0 0.0
      %2442 = vmatpush1.msra.mxu0 0.0
      %2443 = vmatprep.subr.mxu0 0.0
      %2444 = vmatpush1.msra.mxu0 0.0
      %2445 = vmatprep.subr.mxu0 0.0
      %2446 = vmatpush1.msra.mxu0 0.0
      %2447 = vmatprep.subr.mxu0 0.0
      %2448 = vmatpush1.msra.mxu0 0.0
      %2449 = vmatprep.subr.mxu0 0.0
      %2450 = vmatpush1.msra.mxu0 0.0
      %2451 = vmatprep.subr.mxu0 0.0
      %2452 = vmatpush1.msra.mxu0 0.0
      %2453 = vmatprep.subr.mxu0 0.0
      %2454 = vmatpush1.msra.mxu0 0.0
      %2455 = vmatprep.subr.mxu0 0.0
      %2456 = vmatpush1.msra.mxu0 0.0
      %2457 = vmatprep.mubr.f32.mxu0 0.0
      %2458 = vmatmul.mubr.f32.gmra.mrb[0].mxu0 %v2320
      %v2459 = vpop.f32.mrb[0].mxu0
      %v2460 = vadd.f32 0.0, %v2459
      %v2461 = vpop.f32.mrb[0].mxu0
      %2462 = vdwg.mxu0
      %v2463 = vadd.f32 %v2300, %v2389
      %v2464 = vadd.f32 %v2301, %v2391
      %v2465 = vadd.f32 %v2302, %v2460
      %s2466 = scalar_lea.vmem %s4, 32
      %v2467 = vld [vmem:[%s2466] sm:$0xff]
      %v2469 = vsel %vm335, %v2467, 0
      %2471 = vmatprep.subr.mxu0 %v1816
      %2472 = vmatpush1.msra.mxu0 %v1815
      %2473 = vmatprep.subr.mxu0 0.0
      %2474 = vmatpush1.msra.mxu0 0.0
      %2475 = vmatprep.subr.mxu0 0.0
      %2476 = vmatpush1.msra.mxu0 0.0
      %2477 = vmatprep.subr.mxu0 0.0
      %2478 = vmatpush1.msra.mxu0 0.0
      %2479 = vmatprep.subr.mxu0 0.0
      %2480 = vmatpush1.msra.mxu0 0.0
      %2481 = vmatprep.subr.mxu0 0.0
      %2482 = vmatpush1.msra.mxu0 0.0
      %2483 = vmatprep.subr.mxu0 0.0
      %2484 = vmatpush1.msra.mxu0 0.0
      %2485 = vmatprep.subr.mxu0 0.0
      %2486 = vmatpush1.msra.mxu0 0.0
      %2487 = vmatprep.subr.mxu0 0.0
      %2488 = vmatpush1.msra.mxu0 0.0
      %2489 = vmatprep.subr.mxu0 0.0
      %2490 = vmatpush1.msra.mxu0 0.0
      %2491 = vmatprep.subr.mxu0 0.0
      %2492 = vmatpush1.msra.mxu0 0.0
      %2493 = vmatprep.subr.mxu0 0.0
      %2494 = vmatpush1.msra.mxu0 0.0
      %2495 = vmatprep.subr.mxu0 0.0
      %2496 = vmatpush1.msra.mxu0 0.0
      %2497 = vmatprep.subr.mxu0 0.0
      %2498 = vmatpush1.msra.mxu0 0.0
      %2499 = vmatprep.subr.mxu0 0.0
      %2500 = vmatpush1.msra.mxu0 0.0
      %2501 = vmatprep.subr.mxu0 0.0
      %2502 = vmatpush1.msra.mxu0 0.0
      %2503 = vmatprep.subr.mxu0 0.0
      %2504 = vmatpush1.msra.mxu0 0.0
      %2505 = vmatprep.subr.mxu0 0.0
      %2506 = vmatpush1.msra.mxu0 0.0
      %2507 = vmatprep.subr.mxu0 0.0
      %2508 = vmatpush1.msra.mxu0 0.0
      %2509 = vmatprep.subr.mxu0 0.0
      %2510 = vmatpush1.msra.mxu0 0.0
      %2511 = vmatprep.subr.mxu0 0.0
      %2512 = vmatpush1.msra.mxu0 0.0
      %2513 = vmatprep.subr.mxu0 0.0
      %2514 = vmatpush1.msra.mxu0 0.0
      %2515 = vmatprep.subr.mxu0 0.0
      %2516 = vmatpush1.msra.mxu0 0.0
      %2517 = vmatprep.subr.mxu0 0.0
      %2518 = vmatpush1.msra.mxu0 0.0
      %2519 = vmatprep.subr.mxu0 0.0
      %2520 = vmatpush1.msra.mxu0 0.0
      %2521 = vmatprep.subr.mxu0 0.0
      %2522 = vmatpush1.msra.mxu0 0.0
      %2523 = vmatprep.subr.mxu0 0.0
      %2524 = vmatpush1.msra.mxu0 0.0
      %2525 = vmatprep.subr.mxu0 0.0
      %2526 = vmatpush1.msra.mxu0 0.0
      %2527 = vmatprep.subr.mxu0 0.0
      %2528 = vmatpush1.msra.mxu0 0.0
      %2529 = vmatprep.subr.mxu0 0.0
      %2530 = vmatpush1.msra.mxu0 0.0
      %2531 = vmatprep.subr.mxu0 0.0
      %2532 = vmatpush1.msra.mxu0 0.0
      %2533 = vmatprep.subr.mxu0 0.0
      %2534 = vmatpush1.msra.mxu0 0.0
      %2535 = vmatprep.mubr.f32.mxu0 0.0
      %2536 = vmatmul.mubr.f32.gmra.mrb[0].mxu0 %v2469
      %v2537 = vpop.f32.mrb[0].mxu0
      %v2538 = vadd.f32 0.0, %v2537
      %v2539 = vpop.f32.mrb[0].mxu0
      %v2540 = vadd.f32 0.0, %v2539
      %2541 = vdwg.mxu0
      %2542 = vmatprep.subr.mxu0 0.0
      %2543 = vmatpush1.msra.mxu0 %v1817
      %2544 = vmatprep.subr.mxu0 0.0
      %2545 = vmatpush1.msra.mxu0 0.0
      %2546 = vmatprep.subr.mxu0 0.0
      %2547 = vmatpush1.msra.mxu0 0.0
      %2548 = vmatprep.subr.mxu0 0.0
      %2549 = vmatpush1.msra.mxu0 0.0
      %2550 = vmatprep.subr.mxu0 0.0
      %2551 = vmatpush1.msra.mxu0 0.0
      %2552 = vmatprep.subr.mxu0 0.0
      %2553 = vmatpush1.msra.mxu0 0.0
      %2554 = vmatprep.subr.mxu0 0.0
      %2555 = vmatpush1.msra.mxu0 0.0
      %2556 = vmatprep.subr.mxu0 0.0
      %2557 = vmatpush1.msra.mxu0 0.0
      %2558 = vmatprep.subr.mxu0 0.0
      %2559 = vmatpush1.msra.mxu0 0.0
      %2560 = vmatprep.subr.mxu0 0.0
      %2561 = vmatpush1.msra.mxu0 0.0
      %2562 = vmatprep.subr.mxu0 0.0
      %2563 = vmatpush1.msra.mxu0 0.0
      %2564 = vmatprep.subr.mxu0 0.0
      %2565 = vmatpush1.msra.mxu0 0.0
      %2566 = vmatprep.subr.mxu0 0.0
      %2567 = vmatpush1.msra.mxu0 0.0
      %2568 = vmatprep.subr.mxu0 0.0
      %2569 = vmatpush1.msra.mxu0 0.0
      %2570 = vmatprep.subr.mxu0 0.0
      %2571 = vmatpush1.msra.mxu0 0.0
      %2572 = vmatprep.subr.mxu0 0.0
      %2573 = vmatpush1.msra.mxu0 0.0
      %2574 = vmatprep.subr.mxu0 0.0
      %2575 = vmatpush1.msra.mxu0 0.0
      %2576 = vmatprep.subr.mxu0 0.0
      %2577 = vmatpush1.msra.mxu0 0.0
      %2578 = vmatprep.subr.mxu0 0.0
      %2579 = vmatpush1.msra.mxu0 0.0
      %2580 = vmatprep.subr.mxu0 0.0
      %2581 = vmatpush1.msra.mxu0 0.0
      %2582 = vmatprep.subr.mxu0 0.0
      %2583 = vmatpush1.msra.mxu0 0.0
      %2584 = vmatprep.subr.mxu0 0.0
      %2585 = vmatpush1.msra.mxu0 0.0
      %2586 = vmatprep.subr.mxu0 0.0
      %2587 = vmatpush1.msra.mxu0 0.0
      %2588 = vmatprep.subr.mxu0 0.0
      %2589 = vmatpush1.msra.mxu0 0.0
      %2590 = vmatprep.subr.mxu0 0.0
      %2591 = vmatpush1.msra.mxu0 0.0
      %2592 = vmatprep.subr.mxu0 0.0
      %2593 = vmatpush1.msra.mxu0 0.0
      %2594 = vmatprep.subr.mxu0 0.0
      %2595 = vmatpush1.msra.mxu0 0.0
      %2596 = vmatprep.subr.mxu0 0.0
      %2597 = vmatpush1.msra.mxu0 0.0
      %2598 = vmatprep.subr.mxu0 0.0
      %2599 = vmatpush1.msra.mxu0 0.0
      %2600 = vmatprep.subr.mxu0 0.0
      %2601 = vmatpush1.msra.mxu0 0.0
      %2602 = vmatprep.subr.mxu0 0.0
      %2603 = vmatpush1.msra.mxu0 0.0
      %2604 = vmatprep.subr.mxu0 0.0
      %2605 = vmatpush1.msra.mxu0 0.0
      %2606 = vmatprep.mubr.f32.mxu0 0.0
      %2607 = vmatmul.mubr.f32.gmra.mrb[0].mxu0 %v2469
      %v2608 = vpop.f32.mrb[0].mxu0
      %v2609 = vadd.f32 0.0, %v2608
      %v2610 = vpop.f32.mrb[0].mxu0
      %2611 = vdwg.mxu0
      %v2612 = vadd.f32 %v2463, %v2538
      %v2613 = vadd.f32 %v2464, %v2540
      %v2614 = vadd.f32 %v2465, %v2609
      %s2615 = scalar_lea.vmem %s4, 40
      %v2616 = vld [vmem:[%s2615] sm:$0xff]
      %v2617 = vld [vmem:[#allocation2 + $0x8] sm:$0xff]
      %v2618 = vld [vmem:[#allocation2 + $0x10] sm:$0xff]
      %v2619 = vld [vmem:[#allocation2 + $0x18] sm:$0xff]
      %v2620 = vld [vmem:[#allocation2 + $0x20] sm:$0xff]
      %2625 = vrot.lane.b32.xlu0 %v2617, 127
      %v2626 = vpop.permute.xlu0 %2625
      %2627 = vrot.lane.b32.xlu0 %v2618, 127
      %v2628 = vpop.permute.xlu0 %2627
      %2629 = vrot.lane.b32.xlu0 %v2619, 127
      %v2630 = vpop.permute.xlu0 %2629
      %2631 = vrot.lane.b32.xlu0 %v2620, 127
      %v2632 = vpop.permute.xlu0 %2631
      %v2633 = vsel %vm1133, %v2626, %v2628
      %v2634 = vsel %vm1133, %v2628, %v2630
      %v2635 = vsel %vm1133, %v2630, %v2632
      %v2640 = vsel %vm335, %v2616, 0
      %2642 = vmatprep.subr.mxu0 %v2634
      %2643 = vmatpush1.msra.mxu0 %v2633
      %2644 = vmatprep.subr.mxu0 0.0
      %2645 = vmatpush1.msra.mxu0 0.0
      %2646 = vmatprep.subr.mxu0 0.0
      %2647 = vmatpush1.msra.mxu0 0.0
      %2648 = vmatprep.subr.mxu0 0.0
      %2649 = vmatpush1.msra.mxu0 0.0
      %2650 = vmatprep.subr.mxu0 0.0
      %2651 = vmatpush1.msra.mxu0 0.0
      %2652 = vmatprep.subr.mxu0 0.0
      %2653 = vmatpush1.msra.mxu0 0.0
      %2654 = vmatprep.subr.mxu0 0.0
      %2655 = vmatpush1.msra.mxu0 0.0
      %2656 = vmatprep.subr.mxu0 0.0
      %2657 = vmatpush1.msra.mxu0 0.0
      %2658 = vmatprep.subr.mxu0 0.0
      %2659 = vmatpush1.msra.mxu0 0.0
      %2660 = vmatprep.subr.mxu0 0.0
      %2661 = vmatpush1.msra.mxu0 0.0
      %2662 = vmatprep.subr.mxu0 0.0
      %2663 = vmatpush1.msra.mxu0 0.0
      %2664 = vmatprep.subr.mxu0 0.0
      %2665 = vmatpush1.msra.mxu0 0.0
      %2666 = vmatprep.subr.mxu0 0.0
      %2667 = vmatpush1.msra.mxu0 0.0
      %2668 = vmatprep.subr.mxu0 0.0
      %2669 = vmatpush1.msra.mxu0 0.0
      %2670 = vmatprep.subr.mxu0 0.0
      %2671 = vmatpush1.msra.mxu0 0.0
      %2672 = vmatprep.subr.mxu0 0.0
      %2673 = vmatpush1.msra.mxu0 0.0
      %2674 = vmatprep.subr.mxu0 0.0
      %2675 = vmatpush1.msra.mxu0 0.0
      %2676 = vmatprep.subr.mxu0 0.0
      %2677 = vmatpush1.msra.mxu0 0.0
      %2678 = vmatprep.subr.mxu0 0.0
      %2679 = vmatpush1.msra.mxu0 0.0
      %2680 = vmatprep.subr.mxu0 0.0
      %2681 = vmatpush1.msra.mxu0 0.0
      %2682 = vmatprep.subr.mxu0 0.0
      %2683 = vmatpush1.msra.mxu0 0.0
      %2684 = vmatprep.subr.mxu0 0.0
      %2685 = vmatpush1.msra.mxu0 0.0
      %2686 = vmatprep.subr.mxu0 0.0
      %2687 = vmatpush1.msra.mxu0 0.0
      %2688 = vmatprep.subr.mxu0 0.0
      %2689 = vmatpush1.msra.mxu0 0.0
      %2690 = vmatprep.subr.mxu0 0.0
      %2691 = vmatpush1.msra.mxu0 0.0
      %2692 = vmatprep.subr.mxu0 0.0
      %2693 = vmatpush1.msra.mxu0 0.0
      %2694 = vmatprep.subr.mxu0 0.0
      %2695 = vmatpush1.msra.mxu0 0.0
      %2696 = vmatprep.subr.mxu0 0.0
      %2697 = vmatpush1.msra.mxu0 0.0
      %2698 = vmatprep.subr.mxu0 0.0
      %2699 = vmatpush1.msra.mxu0 0.0
      %2700 = vmatprep.subr.mxu0 0.0
      %2701 = vmatpush1.msra.mxu0 0.0
      %2702 = vmatprep.subr.mxu0 0.0
      %2703 = vmatpush1.msra.mxu0 0.0
      %2704 = vmatprep.subr.mxu0 0.0
      %2705 = vmatpush1.msra.mxu0 0.0
      %2706 = vmatprep.mubr.f32.mxu0 0.0
      %2707 = vmatmul.mubr.f32.gmra.mrb[0].mxu0 %v2640
      %v2708 = vpop.f32.mrb[0].mxu0
      %v2709 = vadd.f32 0.0, %v2708
      %v2710 = vpop.f32.mrb[0].mxu0
      %v2711 = vadd.f32 0.0, %v2710
      %2712 = vdwg.mxu0
      %2713 = vmatprep.subr.mxu0 0.0
      %2714 = vmatpush1.msra.mxu0 %v2635
      %2715 = vmatprep.subr.mxu0 0.0
      %2716 = vmatpush1.msra.mxu0 0.0
      %2717 = vmatprep.subr.mxu0 0.0
      %2718 = vmatpush1.msra.mxu0 0.0
      %2719 = vmatprep.subr.mxu0 0.0
      %2720 = vmatpush1.msra.mxu0 0.0
      %2721 = vmatprep.subr.mxu0 0.0
      %2722 = vmatpush1.msra.mxu0 0.0
      %2723 = vmatprep.subr.mxu0 0.0
      %2724 = vmatpush1.msra.mxu0 0.0
      %2725 = vmatprep.subr.mxu0 0.0
      %2726 = vmatpush1.msra.mxu0 0.0
      %2727 = vmatprep.subr.mxu0 0.0
      %2728 = vmatpush1.msra.mxu0 0.0
      %2729 = vmatprep.subr.mxu0 0.0
      %2730 = vmatpush1.msra.mxu0 0.0
      %2731 = vmatprep.subr.mxu0 0.0
      %2732 = vmatpush1.msra.mxu0 0.0
      %2733 = vmatprep.subr.mxu0 0.0
      %2734 = vmatpush1.msra.mxu0 0.0
      %2735 = vmatprep.subr.mxu0 0.0
      %2736 = vmatpush1.msra.mxu0 0.0
      %2737 = vmatprep.subr.mxu0 0.0
      %2738 = vmatpush1.msra.mxu0 0.0
      %2739 = vmatprep.subr.mxu0 0.0
      %2740 = vmatpush1.msra.mxu0 0.0
      %2741 = vmatprep.subr.mxu0 0.0
      %2742 = vmatpush1.msra.mxu0 0.0
      %2743 = vmatprep.subr.mxu0 0.0
      %2744 = vmatpush1.msra.mxu0 0.0
      %2745 = vmatprep.subr.mxu0 0.0
      %2746 = vmatpush1.msra.mxu0 0.0
      %2747 = vmatprep.subr.mxu0 0.0
      %2748 = vmatpush1.msra.mxu0 0.0
      %2749 = vmatprep.subr.mxu0 0.0
      %2750 = vmatpush1.msra.mxu0 0.0
      %2751 = vmatprep.subr.mxu0 0.0
      %2752 = vmatpush1.msra.mxu0 0.0
      %2753 = vmatprep.subr.mxu0 0.0
      %2754 = vmatpush1.msra.mxu0 0.0
      %2755 = vmatprep.subr.mxu0 0.0
      %2756 = vmatpush1.msra.mxu0 0.0
      %2757 = vmatprep.subr.mxu0 0.0
      %2758 = vmatpush1.msra.mxu0 0.0
      %2759 = vmatprep.subr.mxu0 0.0
      %2760 = vmatpush1.msra.mxu0 0.0
      %2761 = vmatprep.subr.mxu0 0.0
      %2762 = vmatpush1.msra.mxu0 0.0
      %2763 = vmatprep.subr.mxu0 0.0
      %2764 = vmatpush1.msra.mxu0 0.0
      %2765 = vmatprep.subr.mxu0 0.0
      %2766 = vmatpush1.msra.mxu0 0.0
      %2767 = vmatprep.subr.mxu0 0.0
      %2768 = vmatpush1.msra.mxu0 0.0
      %2769 = vmatprep.subr.mxu0 0.0
      %2770 = vmatpush1.msra.mxu0 0.0
      %2771 = vmatprep.subr.mxu0 0.0
      %2772 = vmatpush1.msra.mxu0 0.0
      %2773 = vmatprep.subr.mxu0 0.0
      %2774 = vmatpush1.msra.mxu0 0.0
      %2775 = vmatprep.subr.mxu0 0.0
      %2776 = vmatpush1.msra.mxu0 0.0
      %2777 = vmatprep.mubr.f32.mxu0 0.0
      %2778 = vmatmul.mubr.f32.gmra.mrb[0].mxu0 %v2640
      %v2779 = vpop.f32.mrb[0].mxu0
      %v2780 = vadd.f32 0.0, %v2779
      %v2781 = vpop.f32.mrb[0].mxu0
      %2782 = vdwg.mxu0
      %v2783 = vadd.f32 %v2612, %v2709
      %v2784 = vadd.f32 %v2613, %v2711
      %v2785 = vadd.f32 %v2614, %v2780
      %s2786 = scalar_lea.vmem %s4, 48
      %v2787 = vld [vmem:[%s2786] sm:$0xff]
      %2788 = vrot.lane.b32.xlu0 %v2617, 111
      %v2789 = vpop.permute.xlu0 %2788
      %2790 = vrot.lane.b32.xlu0 %v2618, 111
      %v2791 = vpop.permute.xlu0 %2790
      %2792 = vrot.lane.b32.xlu0 %v2619, 111
      %v2793 = vpop.permute.xlu0 %2792
      %2794 = vrot.lane.b32.xlu0 %v2620, 111
      %v2795 = vpop.permute.xlu0 %2794
      %v2796 = vsel %vm1297, %v2789, %v2791
      %v2797 = vsel %vm1297, %v2791, %v2793
      %v2798 = vsel %vm1297, %v2793, %v2795
      %v2803 = vsel %vm335, %v2787, 0
      %2805 = vmatprep.subr.mxu0 %v2797
      %2806 = vmatpush1.msra.mxu0 %v2796
      %2807 = vmatprep.subr.mxu0 0.0
      %2808 = vmatpush1.msra.mxu0 0.0
      %2809 = vmatprep.subr.mxu0 0.0
      %2810 = vmatpush1.msra.mxu0 0.0
      %2811 = vmatprep.subr.mxu0 0.0
      %2812 = vmatpush1.msra.mxu0 0.0
      %2813 = vmatprep.subr.mxu0 0.0
      %2814 = vmatpush1.msra.mxu0 0.0
      %2815 = vmatprep.subr.mxu0 0.0
      %2816 = vmatpush1.msra.mxu0 0.0
      %2817 = vmatprep.subr.mxu0 0.0
      %2818 = vmatpush1.msra.mxu0 0.0
      %2819 = vmatprep.subr.mxu0 0.0
      %2820 = vmatpush1.msra.mxu0 0.0
      %2821 = vmatprep.subr.mxu0 0.0
      %2822 = vmatpush1.msra.mxu0 0.0
      %2823 = vmatprep.subr.mxu0 0.0
      %2824 = vmatpush1.msra.mxu0 0.0
      %2825 = vmatprep.subr.mxu0 0.0
      %2826 = vmatpush1.msra.mxu0 0.0
      %2827 = vmatprep.subr.mxu0 0.0
      %2828 = vmatpush1.msra.mxu0 0.0
      %2829 = vmatprep.subr.mxu0 0.0
      %2830 = vmatpush1.msra.mxu0 0.0
      %2831 = vmatprep.subr.mxu0 0.0
      %2832 = vmatpush1.msra.mxu0 0.0
      %2833 = vmatprep.subr.mxu0 0.0
      %2834 = vmatpush1.msra.mxu0 0.0
      %2835 = vmatprep.subr.mxu0 0.0
      %2836 = vmatpush1.msra.mxu0 0.0
      %2837 = vmatprep.subr.mxu0 0.0
      %2838 = vmatpush1.msra.mxu0 0.0
      %2839 = vmatprep.subr.mxu0 0.0
      %2840 = vmatpush1.msra.mxu0 0.0
      %2841 = vmatprep.subr.mxu0 0.0
      %2842 = vmatpush1.msra.mxu0 0.0
      %2843 = vmatprep.subr.mxu0 0.0
      %2844 = vmatpush1.msra.mxu0 0.0
      %2845 = vmatprep.subr.mxu0 0.0
      %2846 = vmatpush1.msra.mxu0 0.0
      %2847 = vmatprep.subr.mxu0 0.0
      %2848 = vmatpush1.msra.mxu0 0.0
      %2849 = vmatprep.subr.mxu0 0.0
      %2850 = vmatpush1.msra.mxu0 0.0
      %2851 = vmatprep.subr.mxu0 0.0
      %2852 = vmatpush1.msra.mxu0 0.0
      %2853 = vmatprep.subr.mxu0 0.0
      %2854 = vmatpush1.msra.mxu0 0.0
      %2855 = vmatprep.subr.mxu0 0.0
      %2856 = vmatpush1.msra.mxu0 0.0
      %2857 = vmatprep.subr.mxu0 0.0
      %2858 = vmatpush1.msra.mxu0 0.0
      %2859 = vmatprep.subr.mxu0 0.0
      %2860 = vmatpush1.msra.mxu0 0.0
      %2861 = vmatprep.subr.mxu0 0.0
      %2862 = vmatpush1.msra.mxu0 0.0
      %2863 = vmatprep.subr.mxu0 0.0
      %2864 = vmatpush1.msra.mxu0 0.0
      %2865 = vmatprep.subr.mxu0 0.0
      %2866 = vmatpush1.msra.mxu0 0.0
      %2867 = vmatprep.subr.mxu0 0.0
      %2868 = vmatpush1.msra.mxu0 0.0
      %2869 = vmatprep.mubr.f32.mxu0 0.0
      %2870 = vmatmul.mubr.f32.gmra.mrb[0].mxu0 %v2803
      %v2871 = vpop.f32.mrb[0].mxu0
      %v2872 = vadd.f32 0.0, %v2871
      %v2873 = vpop.f32.mrb[0].mxu0
      %v2874 = vadd.f32 0.0, %v2873
      %2875 = vdwg.mxu0
      %2876 = vmatprep.subr.mxu0 0.0
      %2877 = vmatpush1.msra.mxu0 %v2798
      %2878 = vmatprep.subr.mxu0 0.0
      %2879 = vmatpush1.msra.mxu0 0.0
      %2880 = vmatprep.subr.mxu0 0.0
      %2881 = vmatpush1.msra.mxu0 0.0
      %2882 = vmatprep.subr.mxu0 0.0
      %2883 = vmatpush1.msra.mxu0 0.0
      %2884 = vmatprep.subr.mxu0 0.0
      %2885 = vmatpush1.msra.mxu0 0.0
      %2886 = vmatprep.subr.mxu0 0.0
      %2887 = vmatpush1.msra.mxu0 0.0
      %2888 = vmatprep.subr.mxu0 0.0
      %2889 = vmatpush1.msra.mxu0 0.0
      %2890 = vmatprep.subr.mxu0 0.0
      %2891 = vmatpush1.msra.mxu0 0.0
      %2892 = vmatprep.subr.mxu0 0.0
      %2893 = vmatpush1.msra.mxu0 0.0
      %2894 = vmatprep.subr.mxu0 0.0
      %2895 = vmatpush1.msra.mxu0 0.0
      %2896 = vmatprep.subr.mxu0 0.0
      %2897 = vmatpush1.msra.mxu0 0.0
      %2898 = vmatprep.subr.mxu0 0.0
      %2899 = vmatpush1.msra.mxu0 0.0
      %2900 = vmatprep.subr.mxu0 0.0
      %2901 = vmatpush1.msra.mxu0 0.0
      %2902 = vmatprep.subr.mxu0 0.0
      %2903 = vmatpush1.msra.mxu0 0.0
      %2904 = vmatprep.subr.mxu0 0.0
      %2905 = vmatpush1.msra.mxu0 0.0
      %2906 = vmatprep.subr.mxu0 0.0
      %2907 = vmatpush1.msra.mxu0 0.0
      %2908 = vmatprep.subr.mxu0 0.0
      %2909 = vmatpush1.msra.mxu0 0.0
      %2910 = vmatprep.subr.mxu0 0.0
      %2911 = vmatpush1.msra.mxu0 0.0
      %2912 = vmatprep.subr.mxu0 0.0
      %2913 = vmatpush1.msra.mxu0 0.0
      %2914 = vmatprep.subr.mxu0 0.0
      %2915 = vmatpush1.msra.mxu0 0.0
      %2916 = vmatprep.subr.mxu0 0.0
      %2917 = vmatpush1.msra.mxu0 0.0
      %2918 = vmatprep.subr.mxu0 0.0
      %2919 = vmatpush1.msra.mxu0 0.0
      %2920 = vmatprep.subr.mxu0 0.0
      %2921 = vmatpush1.msra.mxu0 0.0
      %2922 = vmatprep.subr.mxu0 0.0
      %2923 = vmatpush1.msra.mxu0 0.0
      %2924 = vmatprep.subr.mxu0 0.0
      %2925 = vmatpush1.msra.mxu0 0.0
      %2926 = vmatprep.subr.mxu0 0.0
      %2927 = vmatpush1.msra.mxu0 0.0
      %2928 = vmatprep.subr.mxu0 0.0
      %2929 = vmatpush1.msra.mxu0 0.0
      %2930 = vmatprep.subr.mxu0 0.0
      %2931 = vmatpush1.msra.mxu0 0.0
      %2932 = vmatprep.subr.mxu0 0.0
      %2933 = vmatpush1.msra.mxu0 0.0
      %2934 = vmatprep.subr.mxu0 0.0
      %2935 = vmatpush1.msra.mxu0 0.0
      %2936 = vmatprep.subr.mxu0 0.0
      %2937 = vmatpush1.msra.mxu0 0.0
      %2938 = vmatprep.subr.mxu0 0.0
      %2939 = vmatpush1.msra.mxu0 0.0
      %2940 = vmatprep.mubr.f32.mxu0 0.0
      %2941 = vmatmul.mubr.f32.gmra.mrb[0].mxu0 %v2803
      %v2942 = vpop.f32.mrb[0].mxu0
      %v2943 = vadd.f32 0.0, %v2942
      %v2944 = vpop.f32.mrb[0].mxu0
      %2945 = vdwg.mxu0
      %v2946 = vadd.f32 %v2783, %v2872
      %v2947 = vadd.f32 %v2784, %v2874
      %v2948 = vadd.f32 %v2785, %v2943
      %s2949 = scalar_lea.vmem %s4, 56
      %v2950 = vld [vmem:[%s2949] sm:$0xff]
      %2951 = vrot.lane.b32.xlu0 %v2617, 110
      %v2952 = vpop.permute.xlu0 %2951
      %2953 = vrot.lane.b32.xlu0 %v2618, 110
      %v2954 = vpop.permute.xlu0 %2953
      %2955 = vrot.lane.b32.xlu0 %v2619, 110
      %v2956 = vpop.permute.xlu0 %2955
      %2957 = vrot.lane.b32.xlu0 %v2620, 110
      %v2958 = vpop.permute.xlu0 %2957
      %v2959 = vsel %vm1461, %v2952, %v2954
      %v2960 = vsel %vm1461, %v2954, %v2956
      %v2961 = vsel %vm1461, %v2956, %v2958
      %v2966 = vsel %vm335, %v2950, 0
      %2968 = vmatprep.subr.mxu0 %v2960
      %2969 = vmatpush1.msra.mxu0 %v2959
      %2970 = vmatprep.subr.mxu0 0.0
      %2971 = vmatpush1.msra.mxu0 0.0
      %2972 = vmatprep.subr.mxu0 0.0
      %2973 = vmatpush1.msra.mxu0 0.0
      %2974 = vmatprep.subr.mxu0 0.0
      %2975 = vmatpush1.msra.mxu0 0.0
      %2976 = vmatprep.subr.mxu0 0.0
      %2977 = vmatpush1.msra.mxu0 0.0
      %2978 = vmatprep.subr.mxu0 0.0
      %2979 = vmatpush1.msra.mxu0 0.0
      %2980 = vmatprep.subr.mxu0 0.0
      %2981 = vmatpush1.msra.mxu0 0.0
      %2982 = vmatprep.subr.mxu0 0.0
      %2983 = vmatpush1.msra.mxu0 0.0
      %2984 = vmatprep.subr.mxu0 0.0
      %2985 = vmatpush1.msra.mxu0 0.0
      %2986 = vmatprep.subr.mxu0 0.0
      %2987 = vmatpush1.msra.mxu0 0.0
      %2988 = vmatprep.subr.mxu0 0.0
      %2989 = vmatpush1.msra.mxu0 0.0
      %2990 = vmatprep.subr.mxu0 0.0
      %2991 = vmatpush1.msra.mxu0 0.0
      %2992 = vmatprep.subr.mxu0 0.0
      %2993 = vmatpush1.msra.mxu0 0.0
      %2994 = vmatprep.subr.mxu0 0.0
      %2995 = vmatpush1.msra.mxu0 0.0
      %2996 = vmatprep.subr.mxu0 0.0
      %2997 = vmatpush1.msra.mxu0 0.0
      %2998 = vmatprep.subr.mxu0 0.0
      %2999 = vmatpush1.msra.mxu0 0.0
      %3000 = vmatprep.subr.mxu0 0.0
      %3001 = vmatpush1.msra.mxu0 0.0
      %3002 = vmatprep.subr.mxu0 0.0
      %3003 = vmatpush1.msra.mxu0 0.0
      %3004 = vmatprep.subr.mxu0 0.0
      %3005 = vmatpush1.msra.mxu0 0.0
      %3006 = vmatprep.subr.mxu0 0.0
      %3007 = vmatpush1.msra.mxu0 0.0
      %3008 = vmatprep.subr.mxu0 0.0
      %3009 = vmatpush1.msra.mxu0 0.0
      %3010 = vmatprep.subr.mxu0 0.0
      %3011 = vmatpush1.msra.mxu0 0.0
      %3012 = vmatprep.subr.mxu0 0.0
      %3013 = vmatpush1.msra.mxu0 0.0
      %3014 = vmatprep.subr.mxu0 0.0
      %3015 = vmatpush1.msra.mxu0 0.0
      %3016 = vmatprep.subr.mxu0 0.0
      %3017 = vmatpush1.msra.mxu0 0.0
      %3018 = vmatprep.subr.mxu0 0.0
      %3019 = vmatpush1.msra.mxu0 0.0
      %3020 = vmatprep.subr.mxu0 0.0
      %3021 = vmatpush1.msra.mxu0 0.0
      %3022 = vmatprep.subr.mxu0 0.0
      %3023 = vmatpush1.msra.mxu0 0.0
      %3024 = vmatprep.subr.mxu0 0.0
      %3025 = vmatpush1.msra.mxu0 0.0
      %3026 = vmatprep.subr.mxu0 0.0
      %3027 = vmatpush1.msra.mxu0 0.0
      %3028 = vmatprep.subr.mxu0 0.0
      %3029 = vmatpush1.msra.mxu0 0.0
      %3030 = vmatprep.subr.mxu0 0.0
      %3031 = vmatpush1.msra.mxu0 0.0
      %3032 = vmatprep.mubr.f32.mxu0 0.0
      %3033 = vmatmul.mubr.f32.gmra.mrb[0].mxu0 %v2966
      %v3034 = vpop.f32.mrb[0].mxu0
      %v3035 = vadd.f32 0.0, %v3034
      %v3036 = vpop.f32.mrb[0].mxu0
      %v3037 = vadd.f32 0.0, %v3036
      %3038 = vdwg.mxu0
      %3039 = vmatprep.subr.mxu0 0.0
      %3040 = vmatpush1.msra.mxu0 %v2961
      %3041 = vmatprep.subr.mxu0 0.0
      %3042 = vmatpush1.msra.mxu0 0.0
      %3043 = vmatprep.subr.mxu0 0.0
      %3044 = vmatpush1.msra.mxu0 0.0
      %3045 = vmatprep.subr.mxu0 0.0
      %3046 = vmatpush1.msra.mxu0 0.0
      %3047 = vmatprep.subr.mxu0 0.0
      %3048 = vmatpush1.msra.mxu0 0.0
      %3049 = vmatprep.subr.mxu0 0.0
      %3050 = vmatpush1.msra.mxu0 0.0
      %3051 = vmatprep.subr.mxu0 0.0
      %3052 = vmatpush1.msra.mxu0 0.0
      %3053 = vmatprep.subr.mxu0 0.0
      %3054 = vmatpush1.msra.mxu0 0.0
      %3055 = vmatprep.subr.mxu0 0.0
      %3056 = vmatpush1.msra.mxu0 0.0
      %3057 = vmatprep.subr.mxu0 0.0
      %3058 = vmatpush1.msra.mxu0 0.0
      %3059 = vmatprep.subr.mxu0 0.0
      %3060 = vmatpush1.msra.mxu0 0.0
      %3061 = vmatprep.subr.mxu0 0.0
      %3062 = vmatpush1.msra.mxu0 0.0
      %3063 = vmatprep.subr.mxu0 0.0
      %3064 = vmatpush1.msra.mxu0 0.0
      %3065 = vmatprep.subr.mxu0 0.0
      %3066 = vmatpush1.msra.mxu0 0.0
      %3067 = vmatprep.subr.mxu0 0.0
      %3068 = vmatpush1.msra.mxu0 0.0
      %3069 = vmatprep.subr.mxu0 0.0
      %3070 = vmatpush1.msra.mxu0 0.0
      %3071 = vmatprep.subr.mxu0 0.0
      %3072 = vmatpush1.msra.mxu0 0.0
      %3073 = vmatprep.subr.mxu0 0.0
      %3074 = vmatpush1.msra.mxu0 0.0
      %3075 = vmatprep.subr.mxu0 0.0
      %3076 = vmatpush1.msra.mxu0 0.0
      %3077 = vmatprep.subr.mxu0 0.0
      %3078 = vmatpush1.msra.mxu0 0.0
      %3079 = vmatprep.subr.mxu0 0.0
      %3080 = vmatpush1.msra.mxu0 0.0
      %3081 = vmatprep.subr.mxu0 0.0
      %3082 = vmatpush1.msra.mxu0 0.0
      %3083 = vmatprep.subr.mxu0 0.0
      %3084 = vmatpush1.msra.mxu0 0.0
      %3085 = vmatprep.subr.mxu0 0.0
      %3086 = vmatpush1.msra.mxu0 0.0
      %3087 = vmatprep.subr.mxu0 0.0
      %3088 = vmatpush1.msra.mxu0 0.0
      %3089 = vmatprep.subr.mxu0 0.0
      %3090 = vmatpush1.msra.mxu0 0.0
      %3091 = vmatprep.subr.mxu0 0.0
      %3092 = vmatpush1.msra.mxu0 0.0
      %3093 = vmatprep.subr.mxu0 0.0
      %3094 = vmatpush1.msra.mxu0 0.0
      %3095 = vmatprep.subr.mxu0 0.0
      %3096 = vmatpush1.msra.mxu0 0.0
      %3097 = vmatprep.subr.mxu0 0.0
      %3098 = vmatpush1.msra.mxu0 0.0
      %3099 = vmatprep.subr.mxu0 0.0
      %3100 = vmatpush1.msra.mxu0 0.0
      %3101 = vmatprep.subr.mxu0 0.0
      %3102 = vmatpush1.msra.mxu0 0.0
      %3103 = vmatprep.mubr.f32.mxu0 0.0
      %3104 = vmatmul.mubr.f32.gmra.mrb[0].mxu0 %v2966
      %v3105 = vpop.f32.mrb[0].mxu0
      %v3106 = vadd.f32 0.0, %v3105
      %v3107 = vpop.f32.mrb[0].mxu0
      %3108 = vdwg.mxu0
      %v3109 = vadd.f32 %v2946, %v3035
      %v3110 = vadd.f32 %v2947, %v3037
      %v3111 = vadd.f32 %v2948, %v3106
      %s3112 = scalar_lea.vmem %s4, 64
      %v3113 = vld [vmem:[%s3112] sm:$0xff]
      %3114 = vrot.lane.b32.xlu0 %v2617, 109
      %v3115 = vpop.permute.xlu0 %3114
      %3116 = vrot.lane.b32.xlu0 %v2618, 109
      %v3117 = vpop.permute.xlu0 %3116
      %3118 = vrot.lane.b32.xlu0 %v2619, 109
      %v3119 = vpop.permute.xlu0 %3118
      %3120 = vrot.lane.b32.xlu0 %v2620, 109
      %v3121 = vpop.permute.xlu0 %3120
      %v3122 = vsel %vm1625, %v3115, %v3117
      %v3123 = vsel %vm1625, %v3117, %v3119
      %v3124 = vsel %vm1625, %v3119, %v3121
      %v3129 = vsel %vm335, %v3113, 0
      %3131 = vmatprep.subr.mxu0 %v3123
      %3132 = vmatpush1.msra.mxu0 %v3122
      %3133 = vmatprep.subr.mxu0 0.0
      %3134 = vmatpush1.msra.mxu0 0.0
      %3135 = vmatprep.subr.mxu0 0.0
      %3136 = vmatpush1.msra.mxu0 0.0
      %3137 = vmatprep.subr.mxu0 0.0
      %3138 = vmatpush1.msra.mxu0 0.0
      %3139 = vmatprep.subr.mxu0 0.0
      %3140 = vmatpush1.msra.mxu0 0.0
      %3141 = vmatprep.subr.mxu0 0.0
      %3142 = vmatpush1.msra.mxu0 0.0
      %3143 = vmatprep.subr.mxu0 0.0
      %3144 = vmatpush1.msra.mxu0 0.0
      %3145 = vmatprep.subr.mxu0 0.0
      %3146 = vmatpush1.msra.mxu0 0.0
      %3147 = vmatprep.subr.mxu0 0.0
      %3148 = vmatpush1.msra.mxu0 0.0
      %3149 = vmatprep.subr.mxu0 0.0
      %3150 = vmatpush1.msra.mxu0 0.0
      %3151 = vmatprep.subr.mxu0 0.0
      %3152 = vmatpush1.msra.mxu0 0.0
      %3153 = vmatprep.subr.mxu0 0.0
      %3154 = vmatpush1.msra.mxu0 0.0
      %3155 = vmatprep.subr.mxu0 0.0
      %3156 = vmatpush1.msra.mxu0 0.0
      %3157 = vmatprep.subr.mxu0 0.0
      %3158 = vmatpush1.msra.mxu0 0.0
      %3159 = vmatprep.subr.mxu0 0.0
      %3160 = vmatpush1.msra.mxu0 0.0
      %3161 = vmatprep.subr.mxu0 0.0
      %3162 = vmatpush1.msra.mxu0 0.0
      %3163 = vmatprep.subr.mxu0 0.0
      %3164 = vmatpush1.msra.mxu0 0.0
      %3165 = vmatprep.subr.mxu0 0.0
      %3166 = vmatpush1.msra.mxu0 0.0
      %3167 = vmatprep.subr.mxu0 0.0
      %3168 = vmatpush1.msra.mxu0 0.0
      %3169 = vmatprep.subr.mxu0 0.0
      %3170 = vmatpush1.msra.mxu0 0.0
      %3171 = vmatprep.subr.mxu0 0.0
      %3172 = vmatpush1.msra.mxu0 0.0
      %3173 = vmatprep.subr.mxu0 0.0
      %3174 = vmatpush1.msra.mxu0 0.0
      %3175 = vmatprep.subr.mxu0 0.0
      %3176 = vmatpush1.msra.mxu0 0.0
      %3177 = vmatprep.subr.mxu0 0.0
      %3178 = vmatpush1.msra.mxu0 0.0
      %3179 = vmatprep.subr.mxu0 0.0
      %3180 = vmatpush1.msra.mxu0 0.0
      %3181 = vmatprep.subr.mxu0 0.0
      %3182 = vmatpush1.msra.mxu0 0.0
      %3183 = vmatprep.subr.mxu0 0.0
      %3184 = vmatpush1.msra.mxu0 0.0
      %3185 = vmatprep.subr.mxu0 0.0
      %3186 = vmatpush1.msra.mxu0 0.0
      %3187 = vmatprep.subr.mxu0 0.0
      %3188 = vmatpush1.msra.mxu0 0.0
      %3189 = vmatprep.subr.mxu0 0.0
      %3190 = vmatpush1.msra.mxu0 0.0
      %3191 = vmatprep.subr.mxu0 0.0
      %3192 = vmatpush1.msra.mxu0 0.0
      %3193 = vmatprep.subr.mxu0 0.0
      %3194 = vmatpush1.msra.mxu0 0.0
      %3195 = vmatprep.mubr.f32.mxu0 0.0
      %3196 = vmatmul.mubr.f32.gmra.mrb[0].mxu0 %v3129
      %v3197 = vpop.f32.mrb[0].mxu0
      %v3198 = vadd.f32 0.0, %v3197
      %v3199 = vpop.f32.mrb[0].mxu0
      %v3200 = vadd.f32 0.0, %v3199
      %3201 = vdwg.mxu0
      %3202 = vmatprep.subr.mxu0 0.0
      %3203 = vmatpush1.msra.mxu0 %v3124
      %3204 = vmatprep.subr.mxu0 0.0
      %3205 = vmatpush1.msra.mxu0 0.0
      %3206 = vmatprep.subr.mxu0 0.0
      %3207 = vmatpush1.msra.mxu0 0.0
      %3208 = vmatprep.subr.mxu0 0.0
      %3209 = vmatpush1.msra.mxu0 0.0
      %3210 = vmatprep.subr.mxu0 0.0
      %3211 = vmatpush1.msra.mxu0 0.0
      %3212 = vmatprep.subr.mxu0 0.0
      %3213 = vmatpush1.msra.mxu0 0.0
      %3214 = vmatprep.subr.mxu0 0.0
      %3215 = vmatpush1.msra.mxu0 0.0
      %3216 = vmatprep.subr.mxu0 0.0
      %3217 = vmatpush1.msra.mxu0 0.0
      %3218 = vmatprep.subr.mxu0 0.0
      %3219 = vmatpush1.msra.mxu0 0.0
      %3220 = vmatprep.subr.mxu0 0.0
      %3221 = vmatpush1.msra.mxu0 0.0
      %3222 = vmatprep.subr.mxu0 0.0
      %3223 = vmatpush1.msra.mxu0 0.0
      %3224 = vmatprep.subr.mxu0 0.0
      %3225 = vmatpush1.msra.mxu0 0.0
      %3226 = vmatprep.subr.mxu0 0.0
      %3227 = vmatpush1.msra.mxu0 0.0
      %3228 = vmatprep.subr.mxu0 0.0
      %3229 = vmatpush1.msra.mxu0 0.0
      %3230 = vmatprep.subr.mxu0 0.0
      %3231 = vmatpush1.msra.mxu0 0.0
      %3232 = vmatprep.subr.mxu0 0.0
      %3233 = vmatpush1.msra.mxu0 0.0
      %3234 = vmatprep.subr.mxu0 0.0
      %3235 = vmatpush1.msra.mxu0 0.0
      %3236 = vmatprep.subr.mxu0 0.0
      %3237 = vmatpush1.msra.mxu0 0.0
      %3238 = vmatprep.subr.mxu0 0.0
      %3239 = vmatpush1.msra.mxu0 0.0
      %3240 = vmatprep.subr.mxu0 0.0
      %3241 = vmatpush1.msra.mxu0 0.0
      %3242 = vmatprep.subr.mxu0 0.0
      %3243 = vmatpush1.msra.mxu0 0.0
      %3244 = vmatprep.subr.mxu0 0.0
      %3245 = vmatpush1.msra.mxu0 0.0
      %3246 = vmatprep.subr.mxu0 0.0
      %3247 = vmatpush1.msra.mxu0 0.0
      %3248 = vmatprep.subr.mxu0 0.0
      %3249 = vmatpush1.msra.mxu0 0.0
      %3250 = vmatprep.subr.mxu0 0.0
      %3251 = vmatpush1.msra.mxu0 0.0
      %3252 = vmatprep.subr.mxu0 0.0
      %3253 = vmatpush1.msra.mxu0 0.0
      %3254 = vmatprep.subr.mxu0 0.0
      %3255 = vmatpush1.msra.mxu0 0.0
      %3256 = vmatprep.subr.mxu0 0.0
      %3257 = vmatpush1.msra.mxu0 0.0
      %3258 = vmatprep.subr.mxu0 0.0
      %3259 = vmatpush1.msra.mxu0 0.0
      %3260 = vmatprep.subr.mxu0 0.0
      %3261 = vmatpush1.msra.mxu0 0.0
      %3262 = vmatprep.subr.mxu0 0.0
      %3263 = vmatpush1.msra.mxu0 0.0
      %3264 = vmatprep.subr.mxu0 0.0
      %3265 = vmatpush1.msra.mxu0 0.0
      %3266 = vmatprep.mubr.f32.mxu0 0.0
      %3267 = vmatmul.mubr.f32.gmra.mrb[0].mxu0 %v3129
      %v3268 = vpop.f32.mrb[0].mxu0
      %v3269 = vadd.f32 0.0, %v3268
      %v3270 = vpop.f32.mrb[0].mxu0
      %3271 = vdwg.mxu0
      %v3272 = vadd.f32 %v3109, %v3198
      %v3273 = vadd.f32 %v3110, %v3200
      %v3274 = vadd.f32 %v3111, %v3269
      %v3275 = vld [vmem:[%s5] sm:$0xff]
      %3277 = vset.pattern.permute.xlu0 0
      %3278 = vperm.xlu0 %3277, %v3275
      %v3279 = vpop.permute.xlu0 %3278
      %v3281 = vadd.f32 %v3272, %v3279
      %v3282 = vadd.f32 %v3273, %v3279
      %v3283 = vadd.f32 %v3274, %v3279
      %v3284 = vld [vmem:[%s296] sm:$0xff]
      %v3285 = vld [vmem:[%s296 + $0x8] sm:$0xff]
      %v3286 = vld [vmem:[%s296 + $0x10] sm:$0xff]
      %v3287 = vadd.f32 %v3281, %v3284
      %v3288 = vadd.f32 %v3282, %v3285
      %v3289 = vadd.f32 %v3283, %v3286
      %v3290 = vmax.f32 %v3287, 0.0
      %v3291 = vmax.f32 %v3288, 0.0
      %v3292 = vmax.f32 %v3289, 0.0
      %3293 = vst [vmem:[%s302] sm:$0xff] %v3290
      %3294 = vst [vmem:[%s302 + $0x8] sm:$0xff] %v3291
      %3295 = vst [vmem:[%s302 + $0x10] sm:$0xff] %v3292
      %s3296 = smul.u32 3, %s18
      %p3297 = scmp.lt.s32.totalorder %s3296, 5
      %s3298 = scalar_select %p3297, %s3296, 5
      %s3299 = smul.addr %s3298, 8
      %s3300 = scalar_lea.vmem %s7, %s3299
      // Predicated region
      $region49: #{qbasicblock_forward.1} parent=47 // pred_check
        %p3301 = pneg %p193
      $region50: #{qbasicblock_forward.1} parent=47 // pred_check_branch
        %3303 = sbr.rel (%p3301) target = $region52
      $region51: #{qbasicblock_forward.1} parent=47 // pred_region
        %s3304 = smul.u32 3, %s18
      $region52: #{qbasicblock_forward.1} parent=47 // pred_fallthru
        _
    $region48: #{qbasicblock_forward.1} parent=5 // pred_fallthru
      _
    %p3305 = scmp.le.s32.totalorder 2, %s13
    // Predicated region
    $region53: #{qbasicblock_forward.1} parent=5 // pred_check
      %p3306 = pneg %p3305
    $region54: #{qbasicblock_forward.1} parent=5 // pred_check_branch
      %3308 = sbr.rel (%p3306) target = $region56
    $region55: #{qbasicblock_forward.1} parent=5 // pred_region
      %s3309 = ssub.s32 %s13, 2
      // Predicated region
      $region57: #{qbasicblock_forward.1} parent=55 // pred_check
        %p3310 = pneg %p199
      $region58: #{qbasicblock_forward.1} parent=55 // pred_check_branch
        %3312 = sbr.rel (%p3310) target = $region60
      $region59: #{qbasicblock_forward.1} parent=55 // pred_region
        %s3313 = smul.u32 3, %s19
        %p3314 = scmp.lt.s32.totalorder %s3313, 5
        %s3315 = scalar_select %p3314, %s3313, 5
        %s3316 = smul.addr %s3315, 8
        %s3317 = scalar_lea.vmem %s7, %s3316
      $region60: #{qbasicblock_forward.1} parent=55 // pred_fallthru
        _
    $region56: #{qbasicblock_forward.1} parent=5 // pred_fallthru
      _
  $region6: #{qbasicblock_forward.1} parent=0 // loop_footer
    %s17 = sadd.s32 1, %s13
  $region7: #{qbasicblock_forward.1} parent=0 // loop_footer_branch
    %12 = sbr.rel target = $region3
  $region8: #{qbasicblock_forward.1} parent=0 // loop_exit
    _

</llo_original>
